<compile_context>
chip_gen: v6e
topology: v6e:2x2x1
jax: 0.10.0
libtpu: 0.0.40
codegen_flags: <defaults>
</compile_context>

<pallas_src>
import functools

import jax
import jax.numpy as jnp
import numpy as np
from jax.experimental import pallas as pl
from jax.experimental.pallas import tpu as pltpu


def _gru_kernel(num_layers, hidden_size, seq_len, batch, *refs):
    # refs = (x2d_ref,
    #         [w_ih_l, w_hh_l, b_rz_l, b_in_l, b_hn_l] * num_layers,
    #         w_lin_ref, b_lin_ref,
    #         out_ref,
    #         gi0_scratch)
    H = hidden_size
    x_ref = refs[0]
    layer_refs = refs[1:1 + 5 * num_layers]
    w_lin_ref = refs[1 + 5 * num_layers]
    b_lin_ref = refs[2 + 5 * num_layers]
    out_ref = refs[3 + 5 * num_layers]
    gi0_ref = refs[4 + 5 * num_layers]

    wdt = layer_refs[0].dtype  # matmul operand dtype (f32 or bf16)

    # ---- Hoisted layer-0 input projection: one big (T*B, D) x (D, 3H) matmul.
    # M = T*B fills far more of the MXU than T separate M=B matmuls, and it is
    # off the serial recurrence path entirely.
    gi0_ref[...] = jnp.dot(
        x_ref[...].astype(wdt), layer_refs[0][...],
        preferred_element_type=jnp.float32)

    def step(t, hs):
        """One timestep through all layers. hs: tuple of (B, H) f32 states."""
        start = t * batch  # static (Python int) -> static slice of gi0 scratch
        new_hs = []
        inp = None
        for l in range(num_layers):
            w_ih_ref = layer_refs[5 * l + 0]
            w_hh_ref = layer_refs[5 * l + 1]
            b_rz = layer_refs[5 * l + 2][...]   # (1, 2H) = b_ih[:,:2H]+b_hh[:,:2H]
            b_in = layer_refs[5 * l + 3][...]   # (1, H)
            b_hn = layer_refs[5 * l + 4][...]   # (1, H)
            h_prev = hs[l]                      # (B, H) f32

            if l == 0:
                gi = gi0_ref[pl.ds(start, batch), :]           # precomputed
            else:
                gi = jnp.dot(inp.astype(wdt), w_ih_ref[...],
                             preferred_element_type=jnp.float32)
            gh = jnp.dot(h_prev.astype(wdt), w_hh_ref[...],
                         preferred_element_type=jnp.float32)

            # r/z in one combined (B, 2H) sigmoid; gate math stays in f32.
            rz = jax.nn.sigmoid(gi[:, :2 * H] + gh[:, :2 * H] + b_rz)
            r = rz[:, :H]
            z = rz[:, H:]
            n = jnp.tanh(gi[:, 2 * H:] + b_in + r * (gh[:, 2 * H:] + b_hn))
            h_new = (1.0 - z) * n + z * h_prev

            new_hs.append(h_new)
            inp = h_new
        return tuple(new_hs)

    hs = tuple(jnp.zeros((batch, H), jnp.float32) for _ in range(num_layers))
    # T is small and static -> fully unrolled in-kernel time loop (no grid
    # step overhead, static slices into gi0).  For long sequences switch to
    # lax.fori_loop / a grid axis.
    for t in range(seq_len):
        hs = step(t, hs)

    # Final Linear on the last timestep's top-layer hidden state.
    out_ref[...] = (
        jnp.dot(hs[-1].astype(wdt), w_lin_ref[...],
                preferred_element_type=jnp.float32)
        + b_lin_ref[...]
    )


def gru_model_forward(x, params, *, hidden_size, num_layers,
                      weight_dtype=jnp.bfloat16):
    """x: (B, T, D_in) batch-first (PyTorch convention). Returns (B, output_size)."""
    B, T, D = x.shape
    H = hidden_size
    O = params["w_lin"].shape[1]

    # Layout: batch-first -> time-major -> flattened (T*B, D) so the layer-0
    # input projection is a single MXU matmul inside the kernel.
    x2d = jnp.transpose(x, (1, 0, 2)).reshape(T * B, D)

    flat_args = [x2d]
    in_specs = [pl.BlockSpec((T * B, D), lambda i: (0, 0))]

    for l in range(num_layers):
        w_ih = params[f"w_ih_{l}"].astype(weight_dtype)
        w_hh = params[f"w_hh_{l}"].astype(weight_dtype)
        b_ih = params[f"b_ih_{l}"].astype(jnp.float32)
        b_hh = params[f"b_hh_{l}"].astype(jnp.float32)
        # Fold r/z biases host-side (saves a VPU add per layer per step).
        b_rz = b_ih[:, :2 * H] + b_hh[:, :2 * H]
        b_in = b_ih[:, 2 * H:]
        b_hn = b_hh[:, 2 * H:]
        for arr in (w_ih, w_hh, b_rz, b_in, b_hn):
            flat_args.append(arr)
            in_specs.append(pl.BlockSpec(arr.shape, lambda i: (0, 0)))

    w_lin = params["w_lin"].astype(weight_dtype)
    b_lin = params["b_lin"].astype(jnp.float32)
    for arr in (w_lin, b_lin):
        flat_args.append(arr)
        in_specs.append(pl.BlockSpec(arr.shape, lambda i: (0, 0)))

    kernel = functools.partial(_gru_kernel, num_layers, hidden_size, T, B)

    return pl.pallas_call(
        kernel,
        out_shape=jax.ShapeDtypeStruct((B, O), jnp.float32),
        grid=(1,),
        in_specs=in_specs,
        out_specs=pl.BlockSpec((B, O), lambda i: (0, 0)),
        scratch_shapes=[pltpu.VMEM((T * B, 3 * H), jnp.float32)],
        compiler_params=pltpu.CompilerParams(
            dimension_semantics=("arbitrary",),
        ),
    )(*flat_args)


def gru_model_reference(x, params, *, hidden_size, num_layers):
    """Pure-JAX f32 reference with identical semantics (eval mode, h0 = 0)."""
    B, T, _ = x.shape
    H = hidden_size
    seq = x
    for l in range(num_layers):
        w_ih = params[f"w_ih_{l}"]
        w_hh = params[f"w_hh_{l}"]
        b_ih = params[f"b_ih_{l}"][0]
        b_hh = params[f"b_hh_{l}"][0]

        def step(h, x_t, w_ih=w_ih, w_hh=w_hh, b_ih=b_ih, b_hh=b_hh):
            gi = x_t @ w_ih + b_ih
            gh = h @ w_hh + b_hh
            r = jax.nn.sigmoid(gi[:, :H] + gh[:, :H])
            z = jax.nn.sigmoid(gi[:, H:2 * H] + gh[:, H:2 * H])
            n = jnp.tanh(gi[:, 2 * H:] + r * gh[:, 2 * H:])
            h_new = (1.0 - z) * n + z * h
            return h_new, h_new

        h0 = jnp.zeros((B, H), jnp.float32)
        _, ys = jax.lax.scan(step, h0, jnp.transpose(seq, (1, 0, 2)))
        seq = jnp.transpose(ys, (1, 0, 2))

    last_step = seq[:, -1, :]
    return last_step @ params["w_lin"] + params["b_lin"][0]


def init_params(key, *, input_size, hidden_size, output_size, num_layers):
    """Deterministic init mirroring PyTorch's U(-1/sqrt(H), 1/sqrt(H))."""
    k = 1.0 / np.sqrt(hidden_size)
    params = {}
    for l in range(num_layers):
        d_in = input_size if l == 0 else hidden_size
        key, k1, k2, k3, k4 = jax.random.split(key, 5)
        params[f"w_ih_{l}"] = jax.random.uniform(
            k1, (d_in, 3 * hidden_size), jnp.float32, -k, k)
        params[f"w_hh_{l}"] = jax.random.uniform(
            k2, (hidden_size, 3 * hidden_size), jnp.float32, -k, k)
        params[f"b_ih_{l}"] = jax.random.uniform(
            k3, (1, 3 * hidden_size), jnp.float32, -k, k)
        params[f"b_hh_{l}"] = jax.random.uniform(
            k4, (1, 3 * hidden_size), jnp.float32, -k, k)
    key, k1, k2 = jax.random.split(key, 3)
    params["w_lin"] = jax.random.uniform(
        k1, (hidden_size, output_size), jnp.float32, -k, k)
    params["b_lin"] = jax.random.uniform(
        k2, (1, output_size), jnp.float32, -k, k)
    return params


if __name__ == "__main__":
    # config: input_size=32, hidden_size=128, output_size=16, num_layers=2, dropout=0.0
    B, T = 8, 8
    INPUT_SIZE, HIDDEN_SIZE, OUTPUT_SIZE, NUM_LAYERS = 32, 128, 16, 2

    root = jax.random.PRNGKey(0)
    kx, kp = jax.random.split(root)
    x = jax.random.normal(kx, (B, T, INPUT_SIZE), jnp.float32)
    params = init_params(kp, input_size=INPUT_SIZE, hidden_size=HIDDEN_SIZE,
                         output_size=OUTPUT_SIZE, num_layers=NUM_LAYERS)

    y_ref = gru_model_reference(x, params, hidden_size=HIDDEN_SIZE,
                                num_layers=NUM_LAYERS)
    y_ref = jax.block_until_ready(y_ref)

    # Tight correctness check: f32-weight kernel path vs f32 reference.
    y_f32 = gru_model_forward(x, params, hidden_size=HIDDEN_SIZE,
                              num_layers=NUM_LAYERS, weight_dtype=jnp.float32)
    y_f32 = jax.block_until_ready(y_f32)
    np.testing.assert_allclose(np.asarray(y_f32), np.asarray(y_ref),
                               rtol=1e-5, atol=1e-5)

    # Performance path: bf16 weights (native MXU mode on v6e/v7x), f32 accum.
    # Looser tolerance: bf16 weight rounding through an 8-step recurrence.
    y_bf16 = gru_model_forward(x, params, hidden_size=HIDDEN_SIZE,
                               num_layers=NUM_LAYERS, weight_dtype=jnp.bfloat16)
    y_bf16 = jax.block_until_ready(y_bf16)
    np.testing.assert_allclose(np.asarray(y_bf16), np.asarray(y_ref),
                               rtol=1e-1, atol=1e-1)

    print("KERNEL_OK")
</pallas_src>

<mosaic_0001>
module attributes {stable_mosaic.version = 11 : i64} {
  func.func @_gru_kernel(%arg0: i32, %arg1: memref<64x32xf32, #tpu.memory_space<vmem>>, %arg2: memref<32x384xf32, #tpu.memory_space<vmem>>, %arg3: memref<128x384xf32, #tpu.memory_space<vmem>>, %arg4: memref<1x256xf32, #tpu.memory_space<vmem>>, %arg5: memref<1x128xf32, #tpu.memory_space<vmem>>, %arg6: memref<1x128xf32, #tpu.memory_space<vmem>>, %arg7: memref<128x384xf32, #tpu.memory_space<vmem>>, %arg8: memref<128x384xf32, #tpu.memory_space<vmem>>, %arg9: memref<1x256xf32, #tpu.memory_space<vmem>>, %arg10: memref<1x128xf32, #tpu.memory_space<vmem>>, %arg11: memref<1x128xf32, #tpu.memory_space<vmem>>, %arg12: memref<128x16xf32, #tpu.memory_space<vmem>>, %arg13: memref<1x16xf32, #tpu.memory_space<vmem>>, %arg14: memref<8x16xf32, #tpu.memory_space<vmem>>, %arg15: memref<64x384xf32, #tpu.memory_space<vmem>>) attributes {dimension_semantics = [#tpu.dimension_semantics<arbitrary>], iteration_bounds = array<i64: 1>, scalar_prefetch = 0 : i64, scratch_operands = 1 : i64, tpu.core_type = #tpu.core_type<tc>, window_params = [{pipeline_mode = #tpu.pipeline_mode<synchronous>, transform_indices = @transform_0, window_bounds = array<i64: 64, 32>}, {pipeline_mode = #tpu.pipeline_mode<synchronous>, transform_indices = @transform_1, window_bounds = array<i64: 32, 384>}, {pipeline_mode = #tpu.pipeline_mode<synchronous>, transform_indices = @transform_2, window_bounds = array<i64: 128, 384>}, {pipeline_mode = #tpu.pipeline_mode<synchronous>, transform_indices = @transform_3, window_bounds = array<i64: 1, 256>}, {pipeline_mode = #tpu.pipeline_mode<synchronous>, transform_indices = @transform_4, window_bounds = array<i64: 1, 128>}, {pipeline_mode = #tpu.pipeline_mode<synchronous>, transform_indices = @transform_5, window_bounds = array<i64: 1, 128>}, {pipeline_mode = #tpu.pipeline_mode<synchronous>, transform_indices = @transform_6, window_bounds = array<i64: 128, 384>}, {pipeline_mode = #tpu.pipeline_mode<synchronous>, transform_indices = @transform_7, window_bounds = array<i64: 128, 384>}, {pipeline_mode = #tpu.pipeline_mode<synchronous>, transform_indices = @transform_8, window_bounds = array<i64: 1, 256>}, {pipeline_mode = #tpu.pipeline_mode<synchronous>, transform_indices = @transform_9, window_bounds = array<i64: 1, 128>}, {pipeline_mode = #tpu.pipeline_mode<synchronous>, transform_indices = @transform_10, window_bounds = array<i64: 1, 128>}, {pipeline_mode = #tpu.pipeline_mode<synchronous>, transform_indices = @transform_11, window_bounds = array<i64: 128, 16>}, {pipeline_mode = #tpu.pipeline_mode<synchronous>, transform_indices = @transform_12, window_bounds = array<i64: 1, 16>}, {pipeline_mode = #tpu.pipeline_mode<synchronous>, transform_indices = @transform_13, window_bounds = array<i64: 8, 16>}]} {
    %c0 = arith.constant 0 : index
    %c0_0 = arith.constant 0 : index
    %0 = vector.load %arg1[%c0, %c0_0] : memref<64x32xf32, #tpu.memory_space<vmem>>, vector<64x32xf32>
    %c0_1 = arith.constant 0 : index
    %c0_2 = arith.constant 0 : index
    %1 = vector.load %arg2[%c0_1, %c0_2] : memref<32x384xf32, #tpu.memory_space<vmem>>, vector<32x384xf32>
    %cst = arith.constant dense<0.000000e+00> : vector<64x384xf32>
    %2 = tpu.matmul %0, %1, %cst {dimension_numbers = #tpu.dot_dimension_numbers<[1], [0], [0], [1], [0, 0, 1, 1], [], []>} : vector<64x32xf32>, vector<32x384xf32>, vector<64x384xf32> -> vector<64x384xf32>
    %c0_3 = arith.constant 0 : index
    %c0_4 = arith.constant 0 : index
    %3 = vector.load %arg15[%c0_3, %c0_4] : memref<64x384xf32, #tpu.memory_space<vmem>>, vector<64x384xf32>
    tpu.vector_store %arg15[%c0_3, %c0_4], %2 {strides = array<i32>} : memref<64x384xf32, #tpu.memory_space<vmem>>, vector<64x384xf32>,
    %cst_5 = arith.constant 0.000000e+00 : f32
    %4 = vector.broadcast %cst_5 : f32 to vector<8x128xf32>
    %cst_6 = arith.constant 0.000000e+00 : f32
    %5 = vector.broadcast %cst_6 : f32 to vector<8x128xf32>
    %c0_7 = arith.constant 0 : index
    %c0_8 = arith.constant 0 : index
    %6 = vector.load %arg4[%c0_7, %c0_8] : memref<1x256xf32, #tpu.memory_space<vmem>>, vector<1x256xf32>
    %c0_9 = arith.constant 0 : index
    %c0_10 = arith.constant 0 : index
    %7 = vector.load %arg5[%c0_9, %c0_10] : memref<1x128xf32, #tpu.memory_space<vmem>>, vector<1x128xf32>
    %c0_11 = arith.constant 0 : index
    %c0_12 = arith.constant 0 : index
    %8 = vector.load %arg6[%c0_11, %c0_12] : memref<1x128xf32, #tpu.memory_space<vmem>>, vector<1x128xf32>
    %c0_13 = arith.constant 0 : index
    %c0_14 = arith.constant 0 : index
    %9 = vector.load %arg15[%c0_13, %c0_14] : memref<64x384xf32, #tpu.memory_space<vmem>>, vector<8x384xf32>
    %c0_15 = arith.constant 0 : index
    %c0_16 = arith.constant 0 : index
    %10 = vector.load %arg3[%c0_15, %c0_16] : memref<128x384xf32, #tpu.memory_space<vmem>>, vector<128x384xf32>
    %cst_17 = arith.constant dense<0.000000e+00> : vector<8x384xf32>
    %11 = tpu.matmul %4, %10, %cst_17 {dimension_numbers = #tpu.dot_dimension_numbers<[1], [0], [0], [1], [0, 0, 1, 1], [], []>} : vector<8x128xf32>, vector<128x384xf32>, vector<8x384xf32> -> vector<8x384xf32>
    %12 = vector.extract_strided_slice %9 {offsets = [0, 0], sizes = [8, 256], strides = [1, 1]} : vector<8x384xf32> to vector<8x256xf32>
    %13 = vector.extract_strided_slice %11 {offsets = [0, 0], sizes = [8, 256], strides = [1, 1]} : vector<8x384xf32> to vector<8x256xf32>
    %14 = arith.addf %12, %13 : vector<8x256xf32>
    %15 = vector.broadcast %6 : vector<1x256xf32> to vector<8x256xf32>
    %16 = arith.addf %14, %15 : vector<8x256xf32>
    %17 = arith.negf %16 : vector<8x256xf32>
    %18 = math.exp %17 : vector<8x256xf32>
    %cst_18 = arith.constant 1.000000e+00 : f32
    %19 = vector.broadcast %cst_18 : f32 to vector<8x256xf32>
    %20 = arith.addf %19, %18 : vector<8x256xf32>
    %21 = arith.divf %19, %20 : vector<8x256xf32>
    %22 = vector.extract_strided_slice %21 {offsets = [0, 0], sizes = [8, 128], strides = [1, 1]} : vector<8x256xf32> to vector<8x128xf32>
    %23 = vector.extract_strided_slice %21 {offsets = [0, 128], sizes = [8, 128], strides = [1, 1]} : vector<8x256xf32> to vector<8x128xf32>
    %24 = vector.extract_strided_slice %9 {offsets = [0, 256], sizes = [8, 128], strides = [1, 1]} : vector<8x384xf32> to vector<8x128xf32>
    %25 = vector.broadcast %7 : vector<1x128xf32> to vector<8x128xf32>
    %26 = arith.addf %24, %25 : vector<8x128xf32>
    %27 = vector.extract_strided_slice %11 {offsets = [0, 256], sizes = [8, 128], strides = [1, 1]} : vector<8x384xf32> to vector<8x128xf32>
    %28 = vector.broadcast %8 : vector<1x128xf32> to vector<8x128xf32>
    %29 = arith.addf %27, %28 : vector<8x128xf32>
    %30 = arith.mulf %22, %29 : vector<8x128xf32>
    %31 = arith.addf %26, %30 : vector<8x128xf32>
    %32 = math.tanh %31 : vector<8x128xf32>
    %cst_19 = arith.constant 1.000000e+00 : f32
    %33 = vector.broadcast %cst_19 : f32 to vector<8x128xf32>
    %34 = arith.subf %33, %23 : vector<8x128xf32>
    %35 = arith.mulf %34, %32 : vector<8x128xf32>
    %36 = arith.mulf %23, %4 : vector<8x128xf32>
    %37 = arith.addf %35, %36 : vector<8x128xf32>
    %c0_20 = arith.constant 0 : index
    %c0_21 = arith.constant 0 : index
    %38 = vector.load %arg9[%c0_20, %c0_21] : memref<1x256xf32, #tpu.memory_space<vmem>>, vector<1x256xf32>
    %c0_22 = arith.constant 0 : index
    %c0_23 = arith.constant 0 : index
    %39 = vector.load %arg10[%c0_22, %c0_23] : memref<1x128xf32, #tpu.memory_space<vmem>>, vector<1x128xf32>
    %c0_24 = arith.constant 0 : index
    %c0_25 = arith.constant 0 : index
    %40 = vector.load %arg11[%c0_24, %c0_25] : memref<1x128xf32, #tpu.memory_space<vmem>>, vector<1x128xf32>
    %c0_26 = arith.constant 0 : index
    %c0_27 = arith.constant 0 : index
    %41 = vector.load %arg7[%c0_26, %c0_27] : memref<128x384xf32, #tpu.memory_space<vmem>>, vector<128x384xf32>
    %cst_28 = arith.constant dense<0.000000e+00> : vector<8x384xf32>
    %42 = tpu.matmul %37, %41, %cst_28 {dimension_numbers = #tpu.dot_dimension_numbers<[1], [0], [0], [1], [0, 0, 1, 1], [], []>} : vector<8x128xf32>, vector<128x384xf32>, vector<8x384xf32> -> vector<8x384xf32>
    %c0_29 = arith.constant 0 : index
    %c0_30 = arith.constant 0 : index
    %43 = vector.load %arg8[%c0_29, %c0_30] : memref<128x384xf32, #tpu.memory_space<vmem>>, vector<128x384xf32>
    %cst_31 = arith.constant dense<0.000000e+00> : vector<8x384xf32>
    %44 = tpu.matmul %5, %43, %cst_31 {dimension_numbers = #tpu.dot_dimension_numbers<[1], [0], [0], [1], [0, 0, 1, 1], [], []>} : vector<8x128xf32>, vector<128x384xf32>, vector<8x384xf32> -> vector<8x384xf32>
    %45 = vector.extract_strided_slice %42 {offsets = [0, 0], sizes = [8, 256], strides = [1, 1]} : vector<8x384xf32> to vector<8x256xf32>
    %46 = vector.extract_strided_slice %44 {offsets = [0, 0], sizes = [8, 256], strides = [1, 1]} : vector<8x384xf32> to vector<8x256xf32>
    %47 = arith.addf %45, %46 : vector<8x256xf32>
    %48 = vector.broadcast %38 : vector<1x256xf32> to vector<8x256xf32>
    %49 = arith.addf %47, %48 : vector<8x256xf32>
    %50 = arith.negf %49 : vector<8x256xf32>
    %51 = math.exp %50 : vector<8x256xf32>
    %cst_32 = arith.constant 1.000000e+00 : f32
    %52 = vector.broadcast %cst_32 : f32 to vector<8x256xf32>
    %53 = arith.addf %52, %51 : vector<8x256xf32>
    %54 = arith.divf %52, %53 : vector<8x256xf32>
    %55 = vector.extract_strided_slice %54 {offsets = [0, 0], sizes = [8, 128], strides = [1, 1]} : vector<8x256xf32> to vector<8x128xf32>
    %56 = vector.extract_strided_slice %54 {offsets = [0, 128], sizes = [8, 128], strides = [1, 1]} : vector<8x256xf32> to vector<8x128xf32>
    %57 = vector.extract_strided_slice %42 {offsets = [0, 256], sizes = [8, 128], strides = [1, 1]} : vector<8x384xf32> to vector<8x128xf32>
    %58 = vector.broadcast %39 : vector<1x128xf32> to vector<8x128xf32>
    %59 = arith.addf %57, %58 : vector<8x128xf32>
    %60 = vector.extract_strided_slice %44 {offsets = [0, 256], sizes = [8, 128], strides = [1, 1]} : vector<8x384xf32> to vector<8x128xf32>
    %61 = vector.broadcast %40 : vector<1x128xf32> to vector<8x128xf32>
    %62 = arith.addf %60, %61 : vector<8x128xf32>
    %63 = arith.mulf %55, %62 : vector<8x128xf32>
    %64 = arith.addf %59, %63 : vector<8x128xf32>
    %65 = math.tanh %64 : vector<8x128xf32>
    %cst_33 = arith.constant 1.000000e+00 : f32
    %66 = vector.broadcast %cst_33 : f32 to vector<8x128xf32>
    %67 = arith.subf %66, %56 : vector<8x128xf32>
    %68 = arith.mulf %67, %65 : vector<8x128xf32>
    %69 = arith.mulf %56, %5 : vector<8x128xf32>
    %70 = arith.addf %68, %69 : vector<8x128xf32>
    %c0_34 = arith.constant 0 : index
    %c0_35 = arith.constant 0 : index
    %71 = vector.load %arg4[%c0_34, %c0_35] : memref<1x256xf32, #tpu.memory_space<vmem>>, vector<1x256xf32>
    %c0_36 = arith.constant 0 : index
    %c0_37 = arith.constant 0 : index
    %72 = vector.load %arg5[%c0_36, %c0_37] : memref<1x128xf32, #tpu.memory_space<vmem>>, vector<1x128xf32>
    %c0_38 = arith.constant 0 : index
    %c0_39 = arith.constant 0 : index
    %73 = vector.load %arg6[%c0_38, %c0_39] : memref<1x128xf32, #tpu.memory_space<vmem>>, vector<1x128xf32>
    %c8 = arith.constant 8 : index
    %c0_40 = arith.constant 0 : index
    %74 = vector.load %arg15[%c8, %c0_40] : memref<64x384xf32, #tpu.memory_space<vmem>>, vector<8x384xf32>
    %c0_41 = arith.constant 0 : index
    %c0_42 = arith.constant 0 : index
    %75 = vector.load %arg3[%c0_41, %c0_42] : memref<128x384xf32, #tpu.memory_space<vmem>>, vector<128x384xf32>
    %cst_43 = arith.constant dense<0.000000e+00> : vector<8x384xf32>
    %76 = tpu.matmul %37, %75, %cst_43 {dimension_numbers = #tpu.dot_dimension_numbers<[1], [0], [0], [1], [0, 0, 1, 1], [], []>} : vector<8x128xf32>, vector<128x384xf32>, vector<8x384xf32> -> vector<8x384xf32>
    %77 = vector.extract_strided_slice %74 {offsets = [0, 0], sizes = [8, 256], strides = [1, 1]} : vector<8x384xf32> to vector<8x256xf32>
    %78 = vector.extract_strided_slice %76 {offsets = [0, 0], sizes = [8, 256], strides = [1, 1]} : vector<8x384xf32> to vector<8x256xf32>
    %79 = arith.addf %77, %78 : vector<8x256xf32>
    %80 = vector.broadcast %71 : vector<1x256xf32> to vector<8x256xf32>
    %81 = arith.addf %79, %80 : vector<8x256xf32>
    %82 = arith.negf %81 : vector<8x256xf32>
    %83 = math.exp %82 : vector<8x256xf32>
    %cst_44 = arith.constant 1.000000e+00 : f32
    %84 = vector.broadcast %cst_44 : f32 to vector<8x256xf32>
    %85 = arith.addf %84, %83 : vector<8x256xf32>
    %86 = arith.divf %84, %85 : vector<8x256xf32>
    %87 = vector.extract_strided_slice %86 {offsets = [0, 0], sizes = [8, 128], strides = [1, 1]} : vector<8x256xf32> to vector<8x128xf32>
    %88 = vector.extract_strided_slice %86 {offsets = [0, 128], sizes = [8, 128], strides = [1, 1]} : vector<8x256xf32> to vector<8x128xf32>
    %89 = vector.extract_strided_slice %74 {offsets = [0, 256], sizes = [8, 128], strides = [1, 1]} : vector<8x384xf32> to vector<8x128xf32>
    %90 = vector.broadcast %72 : vector<1x128xf32> to vector<8x128xf32>
    %91 = arith.addf %89, %90 : vector<8x128xf32>
    %92 = vector.extract_strided_slice %76 {offsets = [0, 256], sizes = [8, 128], strides = [1, 1]} : vector<8x384xf32> to vector<8x128xf32>
    %93 = vector.broadcast %73 : vector<1x128xf32> to vector<8x128xf32>
    %94 = arith.addf %92, %93 : vector<8x128xf32>
    %95 = arith.mulf %87, %94 : vector<8x128xf32>
    %96 = arith.addf %91, %95 : vector<8x128xf32>
    %97 = math.tanh %96 : vector<8x128xf32>
    %cst_45 = arith.constant 1.000000e+00 : f32
    %98 = vector.broadcast %cst_45 : f32 to vector<8x128xf32>
    %99 = arith.subf %98, %88 : vector<8x128xf32>
    %100 = arith.mulf %99, %97 : vector<8x128xf32>
    %101 = arith.mulf %88, %37 : vector<8x128xf32>
    %102 = arith.addf %100, %101 : vector<8x128xf32>
    %c0_46 = arith.constant 0 : index
    %c0_47 = arith.constant 0 : index
    %103 = vector.load %arg9[%c0_46, %c0_47] : memref<1x256xf32, #tpu.memory_space<vmem>>, vector<1x256xf32>
    %c0_48 = arith.constant 0 : index
    %c0_49 = arith.constant 0 : index
    %104 = vector.load %arg10[%c0_48, %c0_49] : memref<1x128xf32, #tpu.memory_space<vmem>>, vector<1x128xf32>
    %c0_50 = arith.constant 0 : index
    %c0_51 = arith.constant 0 : index
    %105 = vector.load %arg11[%c0_50, %c0_51] : memref<1x128xf32, #tpu.memory_space<vmem>>, vector<1x128xf32>
    %c0_52 = arith.constant 0 : index
    %c0_53 = arith.constant 0 : index
    %106 = vector.load %arg7[%c0_52, %c0_53] : memref<128x384xf32, #tpu.memory_space<vmem>>, vector<128x384xf32>
    %cst_54 = arith.constant dense<0.000000e+00> : vector<8x384xf32>
    %107 = tpu.matmul %102, %106, %cst_54 {dimension_numbers = #tpu.dot_dimension_numbers<[1], [0], [0], [1], [0, 0, 1, 1], [], []>} : vector<8x128xf32>, vector<128x384xf32>, vector<8x384xf32> -> vector<8x384xf32>
    %c0_55 = arith.constant 0 : index
    %c0_56 = arith.constant 0 : index
    %108 = vector.load %arg8[%c0_55, %c0_56] : memref<128x384xf32, #tpu.memory_space<vmem>>, vector<128x384xf32>
    %cst_57 = arith.constant dense<0.000000e+00> : vector<8x384xf32>
    %109 = tpu.matmul %70, %108, %cst_57 {dimension_numbers = #tpu.dot_dimension_numbers<[1], [0], [0], [1], [0, 0, 1, 1], [], []>} : vector<8x128xf32>, vector<128x384xf32>, vector<8x384xf32> -> vector<8x384xf32>
    %110 = vector.extract_strided_slice %107 {offsets = [0, 0], sizes = [8, 256], strides = [1, 1]} : vector<8x384xf32> to vector<8x256xf32>
    %111 = vector.extract_strided_slice %109 {offsets = [0, 0], sizes = [8, 256], strides = [1, 1]} : vector<8x384xf32> to vector<8x256xf32>
    %112 = arith.addf %110, %111 : vector<8x256xf32>
    %113 = vector.broadcast %103 : vector<1x256xf32> to vector<8x256xf32>
    %114 = arith.addf %112, %113 : vector<8x256xf32>
    %115 = arith.negf %114 : vector<8x256xf32>
    %116 = math.exp %115 : vector<8x256xf32>
    %cst_58 = arith.constant 1.000000e+00 : f32
    %117 = vector.broadcast %cst_58 : f32 to vector<8x256xf32>
    %118 = arith.addf %117, %116 : vector<8x256xf32>
    %119 = arith.divf %117, %118 : vector<8x256xf32>
    %120 = vector.extract_strided_slice %119 {offsets = [0, 0], sizes = [8, 128], strides = [1, 1]} : vector<8x256xf32> to vector<8x128xf32>
    %121 = vector.extract_strided_slice %119 {offsets = [0, 128], sizes = [8, 128], strides = [1, 1]} : vector<8x256xf32> to vector<8x128xf32>
    %122 = vector.extract_strided_slice %107 {offsets = [0, 256], sizes = [8, 128], strides = [1, 1]} : vector<8x384xf32> to vector<8x128xf32>
    %123 = vector.broadcast %104 : vector<1x128xf32> to vector<8x128xf32>
    %124 = arith.addf %122, %123 : vector<8x128xf32>
    %125 = vector.extract_strided_slice %109 {offsets = [0, 256], sizes = [8, 128], strides = [1, 1]} : vector<8x384xf32> to vector<8x128xf32>
    %126 = vector.broadcast %105 : vector<1x128xf32> to vector<8x128xf32>
    %127 = arith.addf %125, %126 : vector<8x128xf32>
    %128 = arith.mulf %120, %127 : vector<8x128xf32>
    %129 = arith.addf %124, %128 : vector<8x128xf32>
    %130 = math.tanh %129 : vector<8x128xf32>
    %cst_59 = arith.constant 1.000000e+00 : f32
    %131 = vector.broadcast %cst_59 : f32 to vector<8x128xf32>
    %132 = arith.subf %131, %121 : vector<8x128xf32>
    %133 = arith.mulf %132, %130 : vector<8x128xf32>
    %134 = arith.mulf %121, %70 : vector<8x128xf32>
    %135 = arith.addf %133, %134 : vector<8x128xf32>
    %c0_60 = arith.constant 0 : index
    %c0_61 = arith.constant 0 : index
    %136 = vector.load %arg4[%c0_60, %c0_61] : memref<1x256xf32, #tpu.memory_space<vmem>>, vector<1x256xf32>
    %c0_62 = arith.constant 0 : index
    %c0_63 = arith.constant 0 : index
    %137 = vector.load %arg5[%c0_62, %c0_63] : memref<1x128xf32, #tpu.memory_space<vmem>>, vector<1x128xf32>
    %c0_64 = arith.constant 0 : index
    %c0_65 = arith.constant 0 : index
    %138 = vector.load %arg6[%c0_64, %c0_65] : memref<1x128xf32, #tpu.memory_space<vmem>>, vector<1x128xf32>
    %c16 = arith.constant 16 : index
    %c0_66 = arith.constant 0 : index
    %139 = vector.load %arg15[%c16, %c0_66] : memref<64x384xf32, #tpu.memory_space<vmem>>, vector<8x384xf32>
    %c0_67 = arith.constant 0 : index
    %c0_68 = arith.constant 0 : index
    %140 = vector.load %arg3[%c0_67, %c0_68] : memref<128x384xf32, #tpu.memory_space<vmem>>, vector<128x384xf32>
    %cst_69 = arith.constant dense<0.000000e+00> : vector<8x384xf32>
    %141 = tpu.matmul %102, %140, %cst_69 {dimension_numbers = #tpu.dot_dimension_numbers<[1], [0], [0], [1], [0, 0, 1, 1], [], []>} : vector<8x128xf32>, vector<128x384xf32>, vector<8x384xf32> -> vector<8x384xf32>
    %142 = vector.extract_strided_slice %139 {offsets = [0, 0], sizes = [8, 256], strides = [1, 1]} : vector<8x384xf32> to vector<8x256xf32>
    %143 = vector.extract_strided_slice %141 {offsets = [0, 0], sizes = [8, 256], strides = [1, 1]} : vector<8x384xf32> to vector<8x256xf32>
    %144 = arith.addf %142, %143 : vector<8x256xf32>
    %145 = vector.broadcast %136 : vector<1x256xf32> to vector<8x256xf32>
    %146 = arith.addf %144, %145 : vector<8x256xf32>
    %147 = arith.negf %146 : vector<8x256xf32>
    %148 = math.exp %147 : vector<8x256xf32>
    %cst_70 = arith.constant 1.000000e+00 : f32
    %149 = vector.broadcast %cst_70 : f32 to vector<8x256xf32>
    %150 = arith.addf %149, %148 : vector<8x256xf32>
    %151 = arith.divf %149, %150 : vector<8x256xf32>
    %152 = vector.extract_strided_slice %151 {offsets = [0, 0], sizes = [8, 128], strides = [1, 1]} : vector<8x256xf32> to vector<8x128xf32>
    %153 = vector.extract_strided_slice %151 {offsets = [0, 128], sizes = [8, 128], strides = [1, 1]} : vector<8x256xf32> to vector<8x128xf32>
    %154 = vector.extract_strided_slice %139 {offsets = [0, 256], sizes = [8, 128], strides = [1, 1]} : vector<8x384xf32> to vector<8x128xf32>
    %155 = vector.broadcast %137 : vector<1x128xf32> to vector<8x128xf32>
    %156 = arith.addf %154, %155 : vector<8x128xf32>
    %157 = vector.extract_strided_slice %141 {offsets = [0, 256], sizes = [8, 128], strides = [1, 1]} : vector<8x384xf32> to vector<8x128xf32>
    %158 = vector.broadcast %138 : vector<1x128xf32> to vector<8x128xf32>
    %159 = arith.addf %157, %158 : vector<8x128xf32>
    %160 = arith.mulf %152, %159 : vector<8x128xf32>
    %161 = arith.addf %156, %160 : vector<8x128xf32>
    %162 = math.tanh %161 : vector<8x128xf32>
    %cst_71 = arith.constant 1.000000e+00 : f32
    %163 = vector.broadcast %cst_71 : f32 to vector<8x128xf32>
    %164 = arith.subf %163, %153 : vector<8x128xf32>
    %165 = arith.mulf %164, %162 : vector<8x128xf32>
    %166 = arith.mulf %153, %102 : vector<8x128xf32>
    %167 = arith.addf %165, %166 : vector<8x128xf32>
    %c0_72 = arith.constant 0 : index
    %c0_73 = arith.constant 0 : index
    %168 = vector.load %arg9[%c0_72, %c0_73] : memref<1x256xf32, #tpu.memory_space<vmem>>, vector<1x256xf32>
    %c0_74 = arith.constant 0 : index
    %c0_75 = arith.constant 0 : index
    %169 = vector.load %arg10[%c0_74, %c0_75] : memref<1x128xf32, #tpu.memory_space<vmem>>, vector<1x128xf32>
    %c0_76 = arith.constant 0 : index
    %c0_77 = arith.constant 0 : index
    %170 = vector.load %arg11[%c0_76, %c0_77] : memref<1x128xf32, #tpu.memory_space<vmem>>, vector<1x128xf32>
    %c0_78 = arith.constant 0 : index
    %c0_79 = arith.constant 0 : index
    %171 = vector.load %arg7[%c0_78, %c0_79] : memref<128x384xf32, #tpu.memory_space<vmem>>, vector<128x384xf32>
    %cst_80 = arith.constant dense<0.000000e+00> : vector<8x384xf32>
    %172 = tpu.matmul %167, %171, %cst_80 {dimension_numbers = #tpu.dot_dimension_numbers<[1], [0], [0], [1], [0, 0, 1, 1], [], []>} : vector<8x128xf32>, vector<128x384xf32>, vector<8x384xf32> -> vector<8x384xf32>
    %c0_81 = arith.constant 0 : index
    %c0_82 = arith.constant 0 : index
    %173 = vector.load %arg8[%c0_81, %c0_82] : memref<128x384xf32, #tpu.memory_space<vmem>>, vector<128x384xf32>
    %cst_83 = arith.constant dense<0.000000e+00> : vector<8x384xf32>
    %174 = tpu.matmul %135, %173, %cst_83 {dimension_numbers = #tpu.dot_dimension_numbers<[1], [0], [0], [1], [0, 0, 1, 1], [], []>} : vector<8x128xf32>, vector<128x384xf32>, vector<8x384xf32> -> vector<8x384xf32>
    %175 = vector.extract_strided_slice %172 {offsets = [0, 0], sizes = [8, 256], strides = [1, 1]} : vector<8x384xf32> to vector<8x256xf32>
    %176 = vector.extract_strided_slice %174 {offsets = [0, 0], sizes = [8, 256], strides = [1, 1]} : vector<8x384xf32> to vector<8x256xf32>
    %177 = arith.addf %175, %176 : vector<8x256xf32>
    %178 = vector.broadcast %168 : vector<1x256xf32> to vector<8x256xf32>
    %179 = arith.addf %177, %178 : vector<8x256xf32>
    %180 = arith.negf %179 : vector<8x256xf32>
    %181 = math.exp %180 : vector<8x256xf32>
    %cst_84 = arith.constant 1.000000e+00 : f32
    %182 = vector.broadcast %cst_84 : f32 to vector<8x256xf32>
    %183 = arith.addf %182, %181 : vector<8x256xf32>
    %184 = arith.divf %182, %183 : vector<8x256xf32>
    %185 = vector.extract_strided_slice %184 {offsets = [0, 0], sizes = [8, 128], strides = [1, 1]} : vector<8x256xf32> to vector<8x128xf32>
    %186 = vector.extract_strided_slice %184 {offsets = [0, 128], sizes = [8, 128], strides = [1, 1]} : vector<8x256xf32> to vector<8x128xf32>
    %187 = vector.extract_strided_slice %172 {offsets = [0, 256], sizes = [8, 128], strides = [1, 1]} : vector<8x384xf32> to vector<8x128xf32>
    %188 = vector.broadcast %169 : vector<1x128xf32> to vector<8x128xf32>
    %189 = arith.addf %187, %188 : vector<8x128xf32>
    %190 = vector.extract_strided_slice %174 {offsets = [0, 256], sizes = [8, 128], strides = [1, 1]} : vector<8x384xf32> to vector<8x128xf32>
    %191 = vector.broadcast %170 : vector<1x128xf32> to vector<8x128xf32>
    %192 = arith.addf %190, %191 : vector<8x128xf32>
    %193 = arith.mulf %185, %192 : vector<8x128xf32>
    %194 = arith.addf %189, %193 : vector<8x128xf32>
    %195 = math.tanh %194 : vector<8x128xf32>
    %cst_85 = arith.constant 1.000000e+00 : f32
    %196 = vector.broadcast %cst_85 : f32 to vector<8x128xf32>
    %197 = arith.subf %196, %186 : vector<8x128xf32>
    %198 = arith.mulf %197, %195 : vector<8x128xf32>
    %199 = arith.mulf %186, %135 : vector<8x128xf32>
    %200 = arith.addf %198, %199 : vector<8x128xf32>
    %c0_86 = arith.constant 0 : index
    %c0_87 = arith.constant 0 : index
    %201 = vector.load %arg4[%c0_86, %c0_87] : memref<1x256xf32, #tpu.memory_space<vmem>>, vector<1x256xf32>
    %c0_88 = arith.constant 0 : index
    %c0_89 = arith.constant 0 : index
    %202 = vector.load %arg5[%c0_88, %c0_89] : memref<1x128xf32, #tpu.memory_space<vmem>>, vector<1x128xf32>
    %c0_90 = arith.constant 0 : index
    %c0_91 = arith.constant 0 : index
    %203 = vector.load %arg6[%c0_90, %c0_91] : memref<1x128xf32, #tpu.memory_space<vmem>>, vector<1x128xf32>
    %c24 = arith.constant 24 : index
    %c0_92 = arith.constant 0 : index
    %204 = vector.load %arg15[%c24, %c0_92] : memref<64x384xf32, #tpu.memory_space<vmem>>, vector<8x384xf32>
    %c0_93 = arith.constant 0 : index
    %c0_94 = arith.constant 0 : index
    %205 = vector.load %arg3[%c0_93, %c0_94] : memref<128x384xf32, #tpu.memory_space<vmem>>, vector<128x384xf32>
    %cst_95 = arith.constant dense<0.000000e+00> : vector<8x384xf32>
    %206 = tpu.matmul %167, %205, %cst_95 {dimension_numbers = #tpu.dot_dimension_numbers<[1], [0], [0], [1], [0, 0, 1, 1], [], []>} : vector<8x128xf32>, vector<128x384xf32>, vector<8x384xf32> -> vector<8x384xf32>
    %207 = vector.extract_strided_slice %204 {offsets = [0, 0], sizes = [8, 256], strides = [1, 1]} : vector<8x384xf32> to vector<8x256xf32>
    %208 = vector.extract_strided_slice %206 {offsets = [0, 0], sizes = [8, 256], strides = [1, 1]} : vector<8x384xf32> to vector<8x256xf32>
    %209 = arith.addf %207, %208 : vector<8x256xf32>
    %210 = vector.broadcast %201 : vector<1x256xf32> to vector<8x256xf32>
    %211 = arith.addf %209, %210 : vector<8x256xf32>
    %212 = arith.negf %211 : vector<8x256xf32>
    %213 = math.exp %212 : vector<8x256xf32>
    %cst_96 = arith.constant 1.000000e+00 : f32
    %214 = vector.broadcast %cst_96 : f32 to vector<8x256xf32>
    %215 = arith.addf %214, %213 : vector<8x256xf32>
    %216 = arith.divf %214, %215 : vector<8x256xf32>
    %217 = vector.extract_strided_slice %216 {offsets = [0, 0], sizes = [8, 128], strides = [1, 1]} : vector<8x256xf32> to vector<8x128xf32>
    %218 = vector.extract_strided_slice %216 {offsets = [0, 128], sizes = [8, 128], strides = [1, 1]} : vector<8x256xf32> to vector<8x128xf32>
    %219 = vector.extract_strided_slice %204 {offsets = [0, 256], sizes = [8, 128], strides = [1, 1]} : vector<8x384xf32> to vector<8x128xf32>
    %220 = vector.broadcast %202 : vector<1x128xf32> to vector<8x128xf32>
    %221 = arith.addf %219, %220 : vector<8x128xf32>
    %222 = vector.extract_strided_slice %206 {offsets = [0, 256], sizes = [8, 128], strides = [1, 1]} : vector<8x384xf32> to vector<8x128xf32>
    %223 = vector.broadcast %203 : vector<1x128xf32> to vector<8x128xf32>
    %224 = arith.addf %222, %223 : vector<8x128xf32>
    %225 = arith.mulf %217, %224 : vector<8x128xf32>
    %226 = arith.addf %221, %225 : vector<8x128xf32>
    %227 = math.tanh %226 : vector<8x128xf32>
    %cst_97 = arith.constant 1.000000e+00 : f32
    %228 = vector.broadcast %cst_97 : f32 to vector<8x128xf32>
    %229 = arith.subf %228, %218 : vector<8x128xf32>
    %230 = arith.mulf %229, %227 : vector<8x128xf32>
    %231 = arith.mulf %218, %167 : vector<8x128xf32>
    %232 = arith.addf %230, %231 : vector<8x128xf32>
    %c0_98 = arith.constant 0 : index
    %c0_99 = arith.constant 0 : index
    %233 = vector.load %arg9[%c0_98, %c0_99] : memref<1x256xf32, #tpu.memory_space<vmem>>, vector<1x256xf32>
    %c0_100 = arith.constant 0 : index
    %c0_101 = arith.constant 0 : index
    %234 = vector.load %arg10[%c0_100, %c0_101] : memref<1x128xf32, #tpu.memory_space<vmem>>, vector<1x128xf32>
    %c0_102 = arith.constant 0 : index
    %c0_103 = arith.constant 0 : index
    %235 = vector.load %arg11[%c0_102, %c0_103] : memref<1x128xf32, #tpu.memory_space<vmem>>, vector<1x128xf32>
    %c0_104 = arith.constant 0 : index
    %c0_105 = arith.constant 0 : index
    %236 = vector.load %arg7[%c0_104, %c0_105] : memref<128x384xf32, #tpu.memory_space<vmem>>, vector<128x384xf32>
    %cst_106 = arith.constant dense<0.000000e+00> : vector<8x384xf32>
    %237 = tpu.matmul %232, %236, %cst_106 {dimension_numbers = #tpu.dot_dimension_numbers<[1], [0], [0], [1], [0, 0, 1, 1], [], []>} : vector<8x128xf32>, vector<128x384xf32>, vector<8x384xf32> -> vector<8x384xf32>
    %c0_107 = arith.constant 0 : index
    %c0_108 = arith.constant 0 : index
    %238 = vector.load %arg8[%c0_107, %c0_108] : memref<128x384xf32, #tpu.memory_space<vmem>>, vector<128x384xf32>
    %cst_109 = arith.constant dense<0.000000e+00> : vector<8x384xf32>
    %239 = tpu.matmul %200, %238, %cst_109 {dimension_numbers = #tpu.dot_dimension_numbers<[1], [0], [0], [1], [0, 0, 1, 1], [], []>} : vector<8x128xf32>, vector<128x384xf32>, vector<8x384xf32> -> vector<8x384xf32>
    %240 = vector.extract_strided_slice %237 {offsets = [0, 0], sizes = [8, 256], strides = [1, 1]} : vector<8x384xf32> to vector<8x256xf32>
    %241 = vector.extract_strided_slice %239 {offsets = [0, 0], sizes = [8, 256], strides = [1, 1]} : vector<8x384xf32> to vector<8x256xf32>
    %242 = arith.addf %240, %241 : vector<8x256xf32>
    %243 = vector.broadcast %233 : vector<1x256xf32> to vector<8x256xf32>
    %244 = arith.addf %242, %243 : vector<8x256xf32>
    %245 = arith.negf %244 : vector<8x256xf32>
    %246 = math.exp %245 : vector<8x256xf32>
    %cst_110 = arith.constant 1.000000e+00 : f32
    %247 = vector.broadcast %cst_110 : f32 to vector<8x256xf32>
    %248 = arith.addf %247, %246 : vector<8x256xf32>
    %249 = arith.divf %247, %248 : vector<8x256xf32>
    %250 = vector.extract_strided_slice %249 {offsets = [0, 0], sizes = [8, 128], strides = [1, 1]} : vector<8x256xf32> to vector<8x128xf32>
    %251 = vector.extract_strided_slice %249 {offsets = [0, 128], sizes = [8, 128], strides = [1, 1]} : vector<8x256xf32> to vector<8x128xf32>
    %252 = vector.extract_strided_slice %237 {offsets = [0, 256], sizes = [8, 128], strides = [1, 1]} : vector<8x384xf32> to vector<8x128xf32>
    %253 = vector.broadcast %234 : vector<1x128xf32> to vector<8x128xf32>
    %254 = arith.addf %252, %253 : vector<8x128xf32>
    %255 = vector.extract_strided_slice %239 {offsets = [0, 256], sizes = [8, 128], strides = [1, 1]} : vector<8x384xf32> to vector<8x128xf32>
    %256 = vector.broadcast %235 : vector<1x128xf32> to vector<8x128xf32>
    %257 = arith.addf %255, %256 : vector<8x128xf32>
    %258 = arith.mulf %250, %257 : vector<8x128xf32>
    %259 = arith.addf %254, %258 : vector<8x128xf32>
    %260 = math.tanh %259 : vector<8x128xf32>
    %cst_111 = arith.constant 1.000000e+00 : f32
    %261 = vector.broadcast %cst_111 : f32 to vector<8x128xf32>
    %262 = arith.subf %261, %251 : vector<8x128xf32>
    %263 = arith.mulf %262, %260 : vector<8x128xf32>
    %264 = arith.mulf %251, %200 : vector<8x128xf32>
    %265 = arith.addf %263, %264 : vector<8x128xf32>
    %c0_112 = arith.constant 0 : index
    %c0_113 = arith.constant 0 : index
    %266 = vector.load %arg4[%c0_112, %c0_113] : memref<1x256xf32, #tpu.memory_space<vmem>>, vector<1x256xf32>
    %c0_114 = arith.constant 0 : index
    %c0_115 = arith.constant 0 : index
    %267 = vector.load %arg5[%c0_114, %c0_115] : memref<1x128xf32, #tpu.memory_space<vmem>>, vector<1x128xf32>
    %c0_116 = arith.constant 0 : index
    %c0_117 = arith.constant 0 : index
    %268 = vector.load %arg6[%c0_116, %c0_117] : memref<1x128xf32, #tpu.memory_space<vmem>>, vector<1x128xf32>
    %c32 = arith.constant 32 : index
    %c0_118 = arith.constant 0 : index
    %269 = vector.load %arg15[%c32, %c0_118] : memref<64x384xf32, #tpu.memory_space<vmem>>, vector<8x384xf32>
    %c0_119 = arith.constant 0 : index
    %c0_120 = arith.constant 0 : index
    %270 = vector.load %arg3[%c0_119, %c0_120] : memref<128x384xf32, #tpu.memory_space<vmem>>, vector<128x384xf32>
    %cst_121 = arith.constant dense<0.000000e+00> : vector<8x384xf32>
    %271 = tpu.matmul %232, %270, %cst_121 {dimension_numbers = #tpu.dot_dimension_numbers<[1], [0], [0], [1], [0, 0, 1, 1], [], []>} : vector<8x128xf32>, vector<128x384xf32>, vector<8x384xf32> -> vector<8x384xf32>
    %272 = vector.extract_strided_slice %269 {offsets = [0, 0], sizes = [8, 256], strides = [1, 1]} : vector<8x384xf32> to vector<8x256xf32>
    %273 = vector.extract_strided_slice %271 {offsets = [0, 0], sizes = [8, 256], strides = [1, 1]} : vector<8x384xf32> to vector<8x256xf32>
    %274 = arith.addf %272, %273 : vector<8x256xf32>
    %275 = vector.broadcast %266 : vector<1x256xf32> to vector<8x256xf32>
    %276 = arith.addf %274, %275 : vector<8x256xf32>
    %277 = arith.negf %276 : vector<8x256xf32>
    %278 = math.exp %277 : vector<8x256xf32>
    %cst_122 = arith.constant 1.000000e+00 : f32
    %279 = vector.broadcast %cst_122 : f32 to vector<8x256xf32>
    %280 = arith.addf %279, %278 : vector<8x256xf32>
    %281 = arith.divf %279, %280 : vector<8x256xf32>
    %282 = vector.extract_strided_slice %281 {offsets = [0, 0], sizes = [8, 128], strides = [1, 1]} : vector<8x256xf32> to vector<8x128xf32>
    %283 = vector.extract_strided_slice %281 {offsets = [0, 128], sizes = [8, 128], strides = [1, 1]} : vector<8x256xf32> to vector<8x128xf32>
    %284 = vector.extract_strided_slice %269 {offsets = [0, 256], sizes = [8, 128], strides = [1, 1]} : vector<8x384xf32> to vector<8x128xf32>
    %285 = vector.broadcast %267 : vector<1x128xf32> to vector<8x128xf32>
    %286 = arith.addf %284, %285 : vector<8x128xf32>
    %287 = vector.extract_strided_slice %271 {offsets = [0, 256], sizes = [8, 128], strides = [1, 1]} : vector<8x384xf32> to vector<8x128xf32>
    %288 = vector.broadcast %268 : vector<1x128xf32> to vector<8x128xf32>
    %289 = arith.addf %287, %288 : vector<8x128xf32>
    %290 = arith.mulf %282, %289 : vector<8x128xf32>
    %291 = arith.addf %286, %290 : vector<8x128xf32>
    %292 = math.tanh %291 : vector<8x128xf32>
    %cst_123 = arith.constant 1.000000e+00 : f32
    %293 = vector.broadcast %cst_123 : f32 to vector<8x128xf32>
    %294 = arith.subf %293, %283 : vector<8x128xf32>
    %295 = arith.mulf %294, %292 : vector<8x128xf32>
    %296 = arith.mulf %283, %232 : vector<8x128xf32>
    %297 = arith.addf %295, %296 : vector<8x128xf32>
    %c0_124 = arith.constant 0 : index
    %c0_125 = arith.constant 0 : index
    %298 = vector.load %arg9[%c0_124, %c0_125] : memref<1x256xf32, #tpu.memory_space<vmem>>, vector<1x256xf32>
    %c0_126 = arith.constant 0 : index
    %c0_127 = arith.constant 0 : index
    %299 = vector.load %arg10[%c0_126, %c0_127] : memref<1x128xf32, #tpu.memory_space<vmem>>, vector<1x128xf32>
    %c0_128 = arith.constant 0 : index
    %c0_129 = arith.constant 0 : index
    %300 = vector.load %arg11[%c0_128, %c0_129] : memref<1x128xf32, #tpu.memory_space<vmem>>, vector<1x128xf32>
    %c0_130 = arith.constant 0 : index
    %c0_131 = arith.constant 0 : index
    %301 = vector.load %arg7[%c0_130, %c0_131] : memref<128x384xf32, #tpu.memory_space<vmem>>, vector<128x384xf32>
    %cst_132 = arith.constant dense<0.000000e+00> : vector<8x384xf32>
    %302 = tpu.matmul %297, %301, %cst_132 {dimension_numbers = #tpu.dot_dimension_numbers<[1], [0], [0], [1], [0, 0, 1, 1], [], []>} : vector<8x128xf32>, vector<128x384xf32>, vector<8x384xf32> -> vector<8x384xf32>
    %c0_133 = arith.constant 0 : index
    %c0_134 = arith.constant 0 : index
    %303 = vector.load %arg8[%c0_133, %c0_134] : memref<128x384xf32, #tpu.memory_space<vmem>>, vector<128x384xf32>
    %cst_135 = arith.constant dense<0.000000e+00> : vector<8x384xf32>
    %304 = tpu.matmul %265, %303, %cst_135 {dimension_numbers = #tpu.dot_dimension_numbers<[1], [0], [0], [1], [0, 0, 1, 1], [], []>} : vector<8x128xf32>, vector<128x384xf32>, vector<8x384xf32> -> vector<8x384xf32>
    %305 = vector.extract_strided_slice %302 {offsets = [0, 0], sizes = [8, 256], strides = [1, 1]} : vector<8x384xf32> to vector<8x256xf32>
    %306 = vector.extract_strided_slice %304 {offsets = [0, 0], sizes = [8, 256], strides = [1, 1]} : vector<8x384xf32> to vector<8x256xf32>
    %307 = arith.addf %305, %306 : vector<8x256xf32>
    %308 = vector.broadcast %298 : vector<1x256xf32> to vector<8x256xf32>
    %309 = arith.addf %307, %308 : vector<8x256xf32>
    %310 = arith.negf %309 : vector<8x256xf32>
    %311 = math.exp %310 : vector<8x256xf32>
    %cst_136 = arith.constant 1.000000e+00 : f32
    %312 = vector.broadcast %cst_136 : f32 to vector<8x256xf32>
    %313 = arith.addf %312, %311 : vector<8x256xf32>
    %314 = arith.divf %312, %313 : vector<8x256xf32>
    %315 = vector.extract_strided_slice %314 {offsets = [0, 0], sizes = [8, 128], strides = [1, 1]} : vector<8x256xf32> to vector<8x128xf32>
    %316 = vector.extract_strided_slice %314 {offsets = [0, 128], sizes = [8, 128], strides = [1, 1]} : vector<8x256xf32> to vector<8x128xf32>
    %317 = vector.extract_strided_slice %302 {offsets = [0, 256], sizes = [8, 128], strides = [1, 1]} : vector<8x384xf32> to vector<8x128xf32>
    %318 = vector.broadcast %299 : vector<1x128xf32> to vector<8x128xf32>
    %319 = arith.addf %317, %318 : vector<8x128xf32>
    %320 = vector.extract_strided_slice %304 {offsets = [0, 256], sizes = [8, 128], strides = [1, 1]} : vector<8x384xf32> to vector<8x128xf32>
    %321 = vector.broadcast %300 : vector<1x128xf32> to vector<8x128xf32>
    %322 = arith.addf %320, %321 : vector<8x128xf32>
    %323 = arith.mulf %315, %322 : vector<8x128xf32>
    %324 = arith.addf %319, %323 : vector<8x128xf32>
    %325 = math.tanh %324 : vector<8x128xf32>
    %cst_137 = arith.constant 1.000000e+00 : f32
    %326 = vector.broadcast %cst_137 : f32 to vector<8x128xf32>
    %327 = arith.subf %326, %316 : vector<8x128xf32>
    %328 = arith.mulf %327, %325 : vector<8x128xf32>
    %329 = arith.mulf %316, %265 : vector<8x128xf32>
    %330 = arith.addf %328, %329 : vector<8x128xf32>
    %c0_138 = arith.constant 0 : index
    %c0_139 = arith.constant 0 : index
    %331 = vector.load %arg4[%c0_138, %c0_139] : memref<1x256xf32, #tpu.memory_space<vmem>>, vector<1x256xf32>
    %c0_140 = arith.constant 0 : index
    %c0_141 = arith.constant 0 : index
    %332 = vector.load %arg5[%c0_140, %c0_141] : memref<1x128xf32, #tpu.memory_space<vmem>>, vector<1x128xf32>
    %c0_142 = arith.constant 0 : index
    %c0_143 = arith.constant 0 : index
    %333 = vector.load %arg6[%c0_142, %c0_143] : memref<1x128xf32, #tpu.memory_space<vmem>>, vector<1x128xf32>
    %c40 = arith.constant 40 : index
    %c0_144 = arith.constant 0 : index
    %334 = vector.load %arg15[%c40, %c0_144] : memref<64x384xf32, #tpu.memory_space<vmem>>, vector<8x384xf32>
    %c0_145 = arith.constant 0 : index
    %c0_146 = arith.constant 0 : index
    %335 = vector.load %arg3[%c0_145, %c0_146] : memref<128x384xf32, #tpu.memory_space<vmem>>, vector<128x384xf32>
    %cst_147 = arith.constant dense<0.000000e+00> : vector<8x384xf32>
    %336 = tpu.matmul %297, %335, %cst_147 {dimension_numbers = #tpu.dot_dimension_numbers<[1], [0], [0], [1], [0, 0, 1, 1], [], []>} : vector<8x128xf32>, vector<128x384xf32>, vector<8x384xf32> -> vector<8x384xf32>
    %337 = vector.extract_strided_slice %334 {offsets = [0, 0], sizes = [8, 256], strides = [1, 1]} : vector<8x384xf32> to vector<8x256xf32>
    %338 = vector.extract_strided_slice %336 {offsets = [0, 0], sizes = [8, 256], strides = [1, 1]} : vector<8x384xf32> to vector<8x256xf32>
    %339 = arith.addf %337, %338 : vector<8x256xf32>
    %340 = vector.broadcast %331 : vector<1x256xf32> to vector<8x256xf32>
    %341 = arith.addf %339, %340 : vector<8x256xf32>
    %342 = arith.negf %341 : vector<8x256xf32>
    %343 = math.exp %342 : vector<8x256xf32>
    %cst_148 = arith.constant 1.000000e+00 : f32
    %344 = vector.broadcast %cst_148 : f32 to vector<8x256xf32>
    %345 = arith.addf %344, %343 : vector<8x256xf32>
    %346 = arith.divf %344, %345 : vector<8x256xf32>
    %347 = vector.extract_strided_slice %346 {offsets = [0, 0], sizes = [8, 128], strides = [1, 1]} : vector<8x256xf32> to vector<8x128xf32>
    %348 = vector.extract_strided_slice %346 {offsets = [0, 128], sizes = [8, 128], strides = [1, 1]} : vector<8x256xf32> to vector<8x128xf32>
    %349 = vector.extract_strided_slice %334 {offsets = [0, 256], sizes = [8, 128], strides = [1, 1]} : vector<8x384xf32> to vector<8x128xf32>
    %350 = vector.broadcast %332 : vector<1x128xf32> to vector<8x128xf32>
    %351 = arith.addf %349, %350 : vector<8x128xf32>
    %352 = vector.extract_strided_slice %336 {offsets = [0, 256], sizes = [8, 128], strides = [1, 1]} : vector<8x384xf32> to vector<8x128xf32>
    %353 = vector.broadcast %333 : vector<1x128xf32> to vector<8x128xf32>
    %354 = arith.addf %352, %353 : vector<8x128xf32>
    %355 = arith.mulf %347, %354 : vector<8x128xf32>
    %356 = arith.addf %351, %355 : vector<8x128xf32>
    %357 = math.tanh %356 : vector<8x128xf32>
    %cst_149 = arith.constant 1.000000e+00 : f32
    %358 = vector.broadcast %cst_149 : f32 to vector<8x128xf32>
    %359 = arith.subf %358, %348 : vector<8x128xf32>
    %360 = arith.mulf %359, %357 : vector<8x128xf32>
    %361 = arith.mulf %348, %297 : vector<8x128xf32>
    %362 = arith.addf %360, %361 : vector<8x128xf32>
    %c0_150 = arith.constant 0 : index
    %c0_151 = arith.constant 0 : index
    %363 = vector.load %arg9[%c0_150, %c0_151] : memref<1x256xf32, #tpu.memory_space<vmem>>, vector<1x256xf32>
    %c0_152 = arith.constant 0 : index
    %c0_153 = arith.constant 0 : index
    %364 = vector.load %arg10[%c0_152, %c0_153] : memref<1x128xf32, #tpu.memory_space<vmem>>, vector<1x128xf32>
    %c0_154 = arith.constant 0 : index
    %c0_155 = arith.constant 0 : index
    %365 = vector.load %arg11[%c0_154, %c0_155] : memref<1x128xf32, #tpu.memory_space<vmem>>, vector<1x128xf32>
    %c0_156 = arith.constant 0 : index
    %c0_157 = arith.constant 0 : index
    %366 = vector.load %arg7[%c0_156, %c0_157] : memref<128x384xf32, #tpu.memory_space<vmem>>, vector<128x384xf32>
    %cst_158 = arith.constant dense<0.000000e+00> : vector<8x384xf32>
    %367 = tpu.matmul %362, %366, %cst_158 {dimension_numbers = #tpu.dot_dimension_numbers<[1], [0], [0], [1], [0, 0, 1, 1], [], []>} : vector<8x128xf32>, vector<128x384xf32>, vector<8x384xf32> -> vector<8x384xf32>
    %c0_159 = arith.constant 0 : index
    %c0_160 = arith.constant 0 : index
    %368 = vector.load %arg8[%c0_159, %c0_160] : memref<128x384xf32, #tpu.memory_space<vmem>>, vector<128x384xf32>
    %cst_161 = arith.constant dense<0.000000e+00> : vector<8x384xf32>
    %369 = tpu.matmul %330, %368, %cst_161 {dimension_numbers = #tpu.dot_dimension_numbers<[1], [0], [0], [1], [0, 0, 1, 1], [], []>} : vector<8x128xf32>, vector<128x384xf32>, vector<8x384xf32> -> vector<8x384xf32>
    %370 = vector.extract_strided_slice %367 {offsets = [0, 0], sizes = [8, 256], strides = [1, 1]} : vector<8x384xf32> to vector<8x256xf32>
    %371 = vector.extract_strided_slice %369 {offsets = [0, 0], sizes = [8, 256], strides = [1, 1]} : vector<8x384xf32> to vector<8x256xf32>
    %372 = arith.addf %370, %371 : vector<8x256xf32>
    %373 = vector.broadcast %363 : vector<1x256xf32> to vector<8x256xf32>
    %374 = arith.addf %372, %373 : vector<8x256xf32>
    %375 = arith.negf %374 : vector<8x256xf32>
    %376 = math.exp %375 : vector<8x256xf32>
    %cst_162 = arith.constant 1.000000e+00 : f32
    %377 = vector.broadcast %cst_162 : f32 to vector<8x256xf32>
    %378 = arith.addf %377, %376 : vector<8x256xf32>
    %379 = arith.divf %377, %378 : vector<8x256xf32>
    %380 = vector.extract_strided_slice %379 {offsets = [0, 0], sizes = [8, 128], strides = [1, 1]} : vector<8x256xf32> to vector<8x128xf32>
    %381 = vector.extract_strided_slice %379 {offsets = [0, 128], sizes = [8, 128], strides = [1, 1]} : vector<8x256xf32> to vector<8x128xf32>
    %382 = vector.extract_strided_slice %367 {offsets = [0, 256], sizes = [8, 128], strides = [1, 1]} : vector<8x384xf32> to vector<8x128xf32>
    %383 = vector.broadcast %364 : vector<1x128xf32> to vector<8x128xf32>
    %384 = arith.addf %382, %383 : vector<8x128xf32>
    %385 = vector.extract_strided_slice %369 {offsets = [0, 256], sizes = [8, 128], strides = [1, 1]} : vector<8x384xf32> to vector<8x128xf32>
    %386 = vector.broadcast %365 : vector<1x128xf32> to vector<8x128xf32>
    %387 = arith.addf %385, %386 : vector<8x128xf32>
    %388 = arith.mulf %380, %387 : vector<8x128xf32>
    %389 = arith.addf %384, %388 : vector<8x128xf32>
    %390 = math.tanh %389 : vector<8x128xf32>
    %cst_163 = arith.constant 1.000000e+00 : f32
    %391 = vector.broadcast %cst_163 : f32 to vector<8x128xf32>
    %392 = arith.subf %391, %381 : vector<8x128xf32>
    %393 = arith.mulf %392, %390 : vector<8x128xf32>
    %394 = arith.mulf %381, %330 : vector<8x128xf32>
    %395 = arith.addf %393, %394 : vector<8x128xf32>
    %c0_164 = arith.constant 0 : index
    %c0_165 = arith.constant 0 : index
    %396 = vector.load %arg4[%c0_164, %c0_165] : memref<1x256xf32, #tpu.memory_space<vmem>>, vector<1x256xf32>
    %c0_166 = arith.constant 0 : index
    %c0_167 = arith.constant 0 : index
    %397 = vector.load %arg5[%c0_166, %c0_167] : memref<1x128xf32, #tpu.memory_space<vmem>>, vector<1x128xf32>
    %c0_168 = arith.constant 0 : index
    %c0_169 = arith.constant 0 : index
    %398 = vector.load %arg6[%c0_168, %c0_169] : memref<1x128xf32, #tpu.memory_space<vmem>>, vector<1x128xf32>
    %c48 = arith.constant 48 : index
    %c0_170 = arith.constant 0 : index
    %399 = vector.load %arg15[%c48, %c0_170] : memref<64x384xf32, #tpu.memory_space<vmem>>, vector<8x384xf32>
    %c0_171 = arith.constant 0 : index
    %c0_172 = arith.constant 0 : index
    %400 = vector.load %arg3[%c0_171, %c0_172] : memref<128x384xf32, #tpu.memory_space<vmem>>, vector<128x384xf32>
    %cst_173 = arith.constant dense<0.000000e+00> : vector<8x384xf32>
    %401 = tpu.matmul %362, %400, %cst_173 {dimension_numbers = #tpu.dot_dimension_numbers<[1], [0], [0], [1], [0, 0, 1, 1], [], []>} : vector<8x128xf32>, vector<128x384xf32>, vector<8x384xf32> -> vector<8x384xf32>
    %402 = vector.extract_strided_slice %399 {offsets = [0, 0], sizes = [8, 256], strides = [1, 1]} : vector<8x384xf32> to vector<8x256xf32>
    %403 = vector.extract_strided_slice %401 {offsets = [0, 0], sizes = [8, 256], strides = [1, 1]} : vector<8x384xf32> to vector<8x256xf32>
    %404 = arith.addf %402, %403 : vector<8x256xf32>
    %405 = vector.broadcast %396 : vector<1x256xf32> to vector<8x256xf32>
    %406 = arith.addf %404, %405 : vector<8x256xf32>
    %407 = arith.negf %406 : vector<8x256xf32>
    %408 = math.exp %407 : vector<8x256xf32>
    %cst_174 = arith.constant 1.000000e+00 : f32
    %409 = vector.broadcast %cst_174 : f32 to vector<8x256xf32>
    %410 = arith.addf %409, %408 : vector<8x256xf32>
    %411 = arith.divf %409, %410 : vector<8x256xf32>
    %412 = vector.extract_strided_slice %411 {offsets = [0, 0], sizes = [8, 128], strides = [1, 1]} : vector<8x256xf32> to vector<8x128xf32>
    %413 = vector.extract_strided_slice %411 {offsets = [0, 128], sizes = [8, 128], strides = [1, 1]} : vector<8x256xf32> to vector<8x128xf32>
    %414 = vector.extract_strided_slice %399 {offsets = [0, 256], sizes = [8, 128], strides = [1, 1]} : vector<8x384xf32> to vector<8x128xf32>
    %415 = vector.broadcast %397 : vector<1x128xf32> to vector<8x128xf32>
    %416 = arith.addf %414, %415 : vector<8x128xf32>
    %417 = vector.extract_strided_slice %401 {offsets = [0, 256], sizes = [8, 128], strides = [1, 1]} : vector<8x384xf32> to vector<8x128xf32>
    %418 = vector.broadcast %398 : vector<1x128xf32> to vector<8x128xf32>
    %419 = arith.addf %417, %418 : vector<8x128xf32>
    %420 = arith.mulf %412, %419 : vector<8x128xf32>
    %421 = arith.addf %416, %420 : vector<8x128xf32>
    %422 = math.tanh %421 : vector<8x128xf32>
    %cst_175 = arith.constant 1.000000e+00 : f32
    %423 = vector.broadcast %cst_175 : f32 to vector<8x128xf32>
    %424 = arith.subf %423, %413 : vector<8x128xf32>
    %425 = arith.mulf %424, %422 : vector<8x128xf32>
    %426 = arith.mulf %413, %362 : vector<8x128xf32>
    %427 = arith.addf %425, %426 : vector<8x128xf32>
    %c0_176 = arith.constant 0 : index
    %c0_177 = arith.constant 0 : index
    %428 = vector.load %arg9[%c0_176, %c0_177] : memref<1x256xf32, #tpu.memory_space<vmem>>, vector<1x256xf32>
    %c0_178 = arith.constant 0 : index
    %c0_179 = arith.constant 0 : index
    %429 = vector.load %arg10[%c0_178, %c0_179] : memref<1x128xf32, #tpu.memory_space<vmem>>, vector<1x128xf32>
    %c0_180 = arith.constant 0 : index
    %c0_181 = arith.constant 0 : index
    %430 = vector.load %arg11[%c0_180, %c0_181] : memref<1x128xf32, #tpu.memory_space<vmem>>, vector<1x128xf32>
    %c0_182 = arith.constant 0 : index
    %c0_183 = arith.constant 0 : index
    %431 = vector.load %arg7[%c0_182, %c0_183] : memref<128x384xf32, #tpu.memory_space<vmem>>, vector<128x384xf32>
    %cst_184 = arith.constant dense<0.000000e+00> : vector<8x384xf32>
    %432 = tpu.matmul %427, %431, %cst_184 {dimension_numbers = #tpu.dot_dimension_numbers<[1], [0], [0], [1], [0, 0, 1, 1], [], []>} : vector<8x128xf32>, vector<128x384xf32>, vector<8x384xf32> -> vector<8x384xf32>
    %c0_185 = arith.constant 0 : index
    %c0_186 = arith.constant 0 : index
    %433 = vector.load %arg8[%c0_185, %c0_186] : memref<128x384xf32, #tpu.memory_space<vmem>>, vector<128x384xf32>
    %cst_187 = arith.constant dense<0.000000e+00> : vector<8x384xf32>
    %434 = tpu.matmul %395, %433, %cst_187 {dimension_numbers = #tpu.dot_dimension_numbers<[1], [0], [0], [1], [0, 0, 1, 1], [], []>} : vector<8x128xf32>, vector<128x384xf32>, vector<8x384xf32> -> vector<8x384xf32>
    %435 = vector.extract_strided_slice %432 {offsets = [0, 0], sizes = [8, 256], strides = [1, 1]} : vector<8x384xf32> to vector<8x256xf32>
    %436 = vector.extract_strided_slice %434 {offsets = [0, 0], sizes = [8, 256], strides = [1, 1]} : vector<8x384xf32> to vector<8x256xf32>
    %437 = arith.addf %435, %436 : vector<8x256xf32>
    %438 = vector.broadcast %428 : vector<1x256xf32> to vector<8x256xf32>
    %439 = arith.addf %437, %438 : vector<8x256xf32>
    %440 = arith.negf %439 : vector<8x256xf32>
    %441 = math.exp %440 : vector<8x256xf32>
    %cst_188 = arith.constant 1.000000e+00 : f32
    %442 = vector.broadcast %cst_188 : f32 to vector<8x256xf32>
    %443 = arith.addf %442, %441 : vector<8x256xf32>
    %444 = arith.divf %442, %443 : vector<8x256xf32>
    %445 = vector.extract_strided_slice %444 {offsets = [0, 0], sizes = [8, 128], strides = [1, 1]} : vector<8x256xf32> to vector<8x128xf32>
    %446 = vector.extract_strided_slice %444 {offsets = [0, 128], sizes = [8, 128], strides = [1, 1]} : vector<8x256xf32> to vector<8x128xf32>
    %447 = vector.extract_strided_slice %432 {offsets = [0, 256], sizes = [8, 128], strides = [1, 1]} : vector<8x384xf32> to vector<8x128xf32>
    %448 = vector.broadcast %429 : vector<1x128xf32> to vector<8x128xf32>
    %449 = arith.addf %447, %448 : vector<8x128xf32>
    %450 = vector.extract_strided_slice %434 {offsets = [0, 256], sizes = [8, 128], strides = [1, 1]} : vector<8x384xf32> to vector<8x128xf32>
    %451 = vector.broadcast %430 : vector<1x128xf32> to vector<8x128xf32>
    %452 = arith.addf %450, %451 : vector<8x128xf32>
    %453 = arith.mulf %445, %452 : vector<8x128xf32>
    %454 = arith.addf %449, %453 : vector<8x128xf32>
    %455 = math.tanh %454 : vector<8x128xf32>
    %cst_189 = arith.constant 1.000000e+00 : f32
    %456 = vector.broadcast %cst_189 : f32 to vector<8x128xf32>
    %457 = arith.subf %456, %446 : vector<8x128xf32>
    %458 = arith.mulf %457, %455 : vector<8x128xf32>
    %459 = arith.mulf %446, %395 : vector<8x128xf32>
    %460 = arith.addf %458, %459 : vector<8x128xf32>
    %c0_190 = arith.constant 0 : index
    %c0_191 = arith.constant 0 : index
    %461 = vector.load %arg4[%c0_190, %c0_191] : memref<1x256xf32, #tpu.memory_space<vmem>>, vector<1x256xf32>
    %c0_192 = arith.constant 0 : index
    %c0_193 = arith.constant 0 : index
    %462 = vector.load %arg5[%c0_192, %c0_193] : memref<1x128xf32, #tpu.memory_space<vmem>>, vector<1x128xf32>
    %c0_194 = arith.constant 0 : index
    %c0_195 = arith.constant 0 : index
    %463 = vector.load %arg6[%c0_194, %c0_195] : memref<1x128xf32, #tpu.memory_space<vmem>>, vector<1x128xf32>
    %c56 = arith.constant 56 : index
    %c0_196 = arith.constant 0 : index
    %464 = vector.load %arg15[%c56, %c0_196] : memref<64x384xf32, #tpu.memory_space<vmem>>, vector<8x384xf32>
    %c0_197 = arith.constant 0 : index
    %c0_198 = arith.constant 0 : index
    %465 = vector.load %arg3[%c0_197, %c0_198] : memref<128x384xf32, #tpu.memory_space<vmem>>, vector<128x384xf32>
    %cst_199 = arith.constant dense<0.000000e+00> : vector<8x384xf32>
    %466 = tpu.matmul %427, %465, %cst_199 {dimension_numbers = #tpu.dot_dimension_numbers<[1], [0], [0], [1], [0, 0, 1, 1], [], []>} : vector<8x128xf32>, vector<128x384xf32>, vector<8x384xf32> -> vector<8x384xf32>
    %467 = vector.extract_strided_slice %464 {offsets = [0, 0], sizes = [8, 256], strides = [1, 1]} : vector<8x384xf32> to vector<8x256xf32>
    %468 = vector.extract_strided_slice %466 {offsets = [0, 0], sizes = [8, 256], strides = [1, 1]} : vector<8x384xf32> to vector<8x256xf32>
    %469 = arith.addf %467, %468 : vector<8x256xf32>
    %470 = vector.broadcast %461 : vector<1x256xf32> to vector<8x256xf32>
    %471 = arith.addf %469, %470 : vector<8x256xf32>
    %472 = arith.negf %471 : vector<8x256xf32>
    %473 = math.exp %472 : vector<8x256xf32>
    %cst_200 = arith.constant 1.000000e+00 : f32
    %474 = vector.broadcast %cst_200 : f32 to vector<8x256xf32>
    %475 = arith.addf %474, %473 : vector<8x256xf32>
    %476 = arith.divf %474, %475 : vector<8x256xf32>
    %477 = vector.extract_strided_slice %476 {offsets = [0, 0], sizes = [8, 128], strides = [1, 1]} : vector<8x256xf32> to vector<8x128xf32>
    %478 = vector.extract_strided_slice %476 {offsets = [0, 128], sizes = [8, 128], strides = [1, 1]} : vector<8x256xf32> to vector<8x128xf32>
    %479 = vector.extract_strided_slice %464 {offsets = [0, 256], sizes = [8, 128], strides = [1, 1]} : vector<8x384xf32> to vector<8x128xf32>
    %480 = vector.broadcast %462 : vector<1x128xf32> to vector<8x128xf32>
    %481 = arith.addf %479, %480 : vector<8x128xf32>
    %482 = vector.extract_strided_slice %466 {offsets = [0, 256], sizes = [8, 128], strides = [1, 1]} : vector<8x384xf32> to vector<8x128xf32>
    %483 = vector.broadcast %463 : vector<1x128xf32> to vector<8x128xf32>
    %484 = arith.addf %482, %483 : vector<8x128xf32>
    %485 = arith.mulf %477, %484 : vector<8x128xf32>
    %486 = arith.addf %481, %485 : vector<8x128xf32>
    %487 = math.tanh %486 : vector<8x128xf32>
    %cst_201 = arith.constant 1.000000e+00 : f32
    %488 = vector.broadcast %cst_201 : f32 to vector<8x128xf32>
    %489 = arith.subf %488, %478 : vector<8x128xf32>
    %490 = arith.mulf %489, %487 : vector<8x128xf32>
    %491 = arith.mulf %478, %427 : vector<8x128xf32>
    %492 = arith.addf %490, %491 : vector<8x128xf32>
    %c0_202 = arith.constant 0 : index
    %c0_203 = arith.constant 0 : index
    %493 = vector.load %arg9[%c0_202, %c0_203] : memref<1x256xf32, #tpu.memory_space<vmem>>, vector<1x256xf32>
    %c0_204 = arith.constant 0 : index
    %c0_205 = arith.constant 0 : index
    %494 = vector.load %arg10[%c0_204, %c0_205] : memref<1x128xf32, #tpu.memory_space<vmem>>, vector<1x128xf32>
    %c0_206 = arith.constant 0 : index
    %c0_207 = arith.constant 0 : index
    %495 = vector.load %arg11[%c0_206, %c0_207] : memref<1x128xf32, #tpu.memory_space<vmem>>, vector<1x128xf32>
    %c0_208 = arith.constant 0 : index
    %c0_209 = arith.constant 0 : index
    %496 = vector.load %arg7[%c0_208, %c0_209] : memref<128x384xf32, #tpu.memory_space<vmem>>, vector<128x384xf32>
    %cst_210 = arith.constant dense<0.000000e+00> : vector<8x384xf32>
    %497 = tpu.matmul %492, %496, %cst_210 {dimension_numbers = #tpu.dot_dimension_numbers<[1], [0], [0], [1], [0, 0, 1, 1], [], []>} : vector<8x128xf32>, vector<128x384xf32>, vector<8x384xf32> -> vector<8x384xf32>
    %c0_211 = arith.constant 0 : index
    %c0_212 = arith.constant 0 : index
    %498 = vector.load %arg8[%c0_211, %c0_212] : memref<128x384xf32, #tpu.memory_space<vmem>>, vector<128x384xf32>
    %cst_213 = arith.constant dense<0.000000e+00> : vector<8x384xf32>
    %499 = tpu.matmul %460, %498, %cst_213 {dimension_numbers = #tpu.dot_dimension_numbers<[1], [0], [0], [1], [0, 0, 1, 1], [], []>} : vector<8x128xf32>, vector<128x384xf32>, vector<8x384xf32> -> vector<8x384xf32>
    %500 = vector.extract_strided_slice %497 {offsets = [0, 0], sizes = [8, 256], strides = [1, 1]} : vector<8x384xf32> to vector<8x256xf32>
    %501 = vector.extract_strided_slice %499 {offsets = [0, 0], sizes = [8, 256], strides = [1, 1]} : vector<8x384xf32> to vector<8x256xf32>
    %502 = arith.addf %500, %501 : vector<8x256xf32>
    %503 = vector.broadcast %493 : vector<1x256xf32> to vector<8x256xf32>
    %504 = arith.addf %502, %503 : vector<8x256xf32>
    %505 = arith.negf %504 : vector<8x256xf32>
    %506 = math.exp %505 : vector<8x256xf32>
    %cst_214 = arith.constant 1.000000e+00 : f32
    %507 = vector.broadcast %cst_214 : f32 to vector<8x256xf32>
    %508 = arith.addf %507, %506 : vector<8x256xf32>
    %509 = arith.divf %507, %508 : vector<8x256xf32>
    %510 = vector.extract_strided_slice %509 {offsets = [0, 0], sizes = [8, 128], strides = [1, 1]} : vector<8x256xf32> to vector<8x128xf32>
    %511 = vector.extract_strided_slice %509 {offsets = [0, 128], sizes = [8, 128], strides = [1, 1]} : vector<8x256xf32> to vector<8x128xf32>
    %512 = vector.extract_strided_slice %497 {offsets = [0, 256], sizes = [8, 128], strides = [1, 1]} : vector<8x384xf32> to vector<8x128xf32>
    %513 = vector.broadcast %494 : vector<1x128xf32> to vector<8x128xf32>
    %514 = arith.addf %512, %513 : vector<8x128xf32>
    %515 = vector.extract_strided_slice %499 {offsets = [0, 256], sizes = [8, 128], strides = [1, 1]} : vector<8x384xf32> to vector<8x128xf32>
    %516 = vector.broadcast %495 : vector<1x128xf32> to vector<8x128xf32>
    %517 = arith.addf %515, %516 : vector<8x128xf32>
    %518 = arith.mulf %510, %517 : vector<8x128xf32>
    %519 = arith.addf %514, %518 : vector<8x128xf32>
    %520 = math.tanh %519 : vector<8x128xf32>
    %cst_215 = arith.constant 1.000000e+00 : f32
    %521 = vector.broadcast %cst_215 : f32 to vector<8x128xf32>
    %522 = arith.subf %521, %511 : vector<8x128xf32>
    %523 = arith.mulf %522, %520 : vector<8x128xf32>
    %524 = arith.mulf %511, %460 : vector<8x128xf32>
    %525 = arith.addf %523, %524 : vector<8x128xf32>
    %c0_216 = arith.constant 0 : index
    %c0_217 = arith.constant 0 : index
    %526 = vector.load %arg12[%c0_216, %c0_217] : memref<128x16xf32, #tpu.memory_space<vmem>>, vector<128x16xf32>
    %cst_218 = arith.constant dense<0.000000e+00> : vector<8x16xf32>
    %527 = tpu.matmul %525, %526, %cst_218 {dimension_numbers = #tpu.dot_dimension_numbers<[1], [0], [0], [1], [0, 0, 1, 1], [], []>} : vector<8x128xf32>, vector<128x16xf32>, vector<8x16xf32> -> vector<8x16xf32>
    %c0_219 = arith.constant 0 : index
    %c0_220 = arith.constant 0 : index
    %528 = vector.load %arg13[%c0_219, %c0_220] : memref<1x16xf32, #tpu.memory_space<vmem>>, vector<1x16xf32>
    %529 = vector.broadcast %528 : vector<1x16xf32> to vector<8x16xf32>
    %530 = arith.addf %527, %529 : vector<8x16xf32>
    %c0_221 = arith.constant 0 : index
    %c0_222 = arith.constant 0 : index
    %531 = vector.load %arg14[%c0_221, %c0_222] : memref<8x16xf32, #tpu.memory_space<vmem>>, vector<8x16xf32>
    tpu.vector_store %arg14[%c0_221, %c0_222], %530 {strides = array<i32>} : memref<8x16xf32, #tpu.memory_space<vmem>>, vector<8x16xf32>,
    return
  }
  func.func @transform_0(%arg0: i32) -> (i32, i32) {
    %c0_i32 = arith.constant 0 : i32
    %c0_i32_0 = arith.constant 0 : i32
    %c0_i32_1 = arith.constant 0 : i32
    return %c0_i32, %c0_i32_0 : i32, i32
  }
  func.func @transform_1(%arg0: i32) -> (i32, i32) {
    %c0_i32 = arith.constant 0 : i32
    %c0_i32_0 = arith.constant 0 : i32
    %c0_i32_1 = arith.constant 0 : i32
    return %c0_i32, %c0_i32_0 : i32, i32
  }
  func.func @transform_2(%arg0: i32) -> (i32, i32) {
    %c0_i32 = arith.constant 0 : i32
    %c0_i32_0 = arith.constant 0 : i32
    %c0_i32_1 = arith.constant 0 : i32
    return %c0_i32, %c0_i32_0 : i32, i32
  }
  func.func @transform_3(%arg0: i32) -> (i32, i32) {
    %c0_i32 = arith.constant 0 : i32
    %c0_i32_0 = arith.constant 0 : i32
    %c0_i32_1 = arith.constant 0 : i32
    return %c0_i32, %c0_i32_0 : i32, i32
  }
  func.func @transform_4(%arg0: i32) -> (i32, i32) {
    %c0_i32 = arith.constant 0 : i32
    %c0_i32_0 = arith.constant 0 : i32
    %c0_i32_1 = arith.constant 0 : i32
    return %c0_i32, %c0_i32_0 : i32, i32
  }
  func.func @transform_5(%arg0: i32) -> (i32, i32) {
    %c0_i32 = arith.constant 0 : i32
    %c0_i32_0 = arith.constant 0 : i32
    %c0_i32_1 = arith.constant 0 : i32
    return %c0_i32, %c0_i32_0 : i32, i32
  }
  func.func @transform_6(%arg0: i32) -> (i32, i32) {
    %c0_i32 = arith.constant 0 : i32
    %c0_i32_0 = arith.constant 0 : i32
    %c0_i32_1 = arith.constant 0 : i32
    return %c0_i32, %c0_i32_0 : i32, i32
  }
  func.func @transform_7(%arg0: i32) -> (i32, i32) {
    %c0_i32 = arith.constant 0 : i32
    %c0_i32_0 = arith.constant 0 : i32
    %c0_i32_1 = arith.constant 0 : i32
    return %c0_i32, %c0_i32_0 : i32, i32
  }
  func.func @transform_8(%arg0: i32) -> (i32, i32) {
    %c0_i32 = arith.constant 0 : i32
    %c0_i32_0 = arith.constant 0 : i32
    %c0_i32_1 = arith.constant 0 : i32
    return %c0_i32, %c0_i32_0 : i32, i32
  }
  func.func @transform_9(%arg0: i32) -> (i32, i32) {
    %c0_i32 = arith.constant 0 : i32
    %c0_i32_0 = arith.constant 0 : i32
    %c0_i32_1 = arith.constant 0 : i32
    return %c0_i32, %c0_i32_0 : i32, i32
  }
  func.func @transform_10(%arg0: i32) -> (i32, i32) {
    %c0_i32 = arith.constant 0 : i32
    %c0_i32_0 = arith.constant 0 : i32
    %c0_i32_1 = arith.constant 0 : i32
    return %c0_i32, %c0_i32_0 : i32, i32
  }
  func.func @transform_11(%arg0: i32) -> (i32, i32) {
    %c0_i32 = arith.constant 0 : i32
    %c0_i32_0 = arith.constant 0 : i32
    %c0_i32_1 = arith.constant 0 : i32
    return %c0_i32, %c0_i32_0 : i32, i32
  }
  func.func @transform_12(%arg0: i32) -> (i32, i32) {
    %c0_i32 = arith.constant 0 : i32
    %c0_i32_0 = arith.constant 0 : i32
    %c0_i32_1 = arith.constant 0 : i32
    return %c0_i32, %c0_i32_0 : i32, i32
  }
  func.func @transform_13(%arg0: i32) -> (i32, i32) {
    %c0_i32 = arith.constant 0 : i32
    %c0_i32_0 = arith.constant 0 : i32
    %c0_i32_1 = arith.constant 0 : i32
    return %c0_i32, %c0_i32_0 : i32, i32
  }
}

</mosaic_0001>

<llo_original>
// kernel: tpu_custom_call.1
$region0: #{tpu_custom_call.1}
  #allocation0 [shape = 'u32[]', space=smem, size = 0x4, offset = 0x4, fixed_abs, tag = 'smem constant byte address 0x4 - core index']
  #allocation1 [shape = 'u32[144,128]{1,0:T(1,128)}', space=vmem, size = 0x12000, scoped, tag = 'internal scratch']
  #allocation2 [shape = 'f32[64,384]{1,0:T(8,128)}', space=vmem, size = 0x18000, scoped, tag = 'scratch operand']
  %s0 = inlined_call_operand.vmem [shape: f32[64,32], index: 0, kind: input, shape index: {}]
  %s1 = inlined_call_operand.vmem [shape: f32[32,384], index: 1, kind: input, shape index: {}]
  %s2 = inlined_call_operand.hbm [shape: f32[128,384], index: 2, kind: input, shape index: {}]
  %s3 = inlined_call_operand.vmem [shape: f32[1,256], index: 3, kind: input, shape index: {}]
  %s4 = inlined_call_operand.vmem [shape: f32[1,128], index: 4, kind: input, shape index: {}]
  %s5 = inlined_call_operand.vmem [shape: f32[1,128], index: 5, kind: input, shape index: {}]
  %s6 = inlined_call_operand.hbm [shape: f32[128,384], index: 6, kind: input, shape index: {}]
  %s7 = inlined_call_operand.hbm [shape: f32[128,384], index: 7, kind: input, shape index: {}]
  %s8 = inlined_call_operand.vmem [shape: f32[1,256], index: 8, kind: input, shape index: {}]
  %s9 = inlined_call_operand.vmem [shape: f32[1,128], index: 9, kind: input, shape index: {}]
  %s10 = inlined_call_operand.vmem [shape: f32[1,128], index: 10, kind: input, shape index: {}]
  %s11 = inlined_call_operand.vmem [shape: f32[128,16], index: 11, kind: input, shape index: {}]
  %s12 = inlined_call_operand.vmem [shape: f32[1,16], index: 12, kind: input, shape index: {}]
  %s13 = inlined_call_operand.hbm [shape: f32[8,16], index: 13, kind: output, shape index: {}]
  %s14 = sld [smem:[#allocation0]]
  $region74: #{tpu_custom_call.1} parent=0
    _
  %s16 = ssub.s32 1, %s14
  %s17 = scalar_select 0, %s16, %s14
  $region1: #{tpu_custom_call.1} parent=0
    #allocation3 [shape = 'u8[196608]{0}', space=vmem, size = 0x30000, scoped, tag = 'input window, operand 2, single buffered']
    #allocation4 [shape = 's32[1]{0}', space=sflag, size = 0x4, scoped, tag = 'scoped memory for tpu_custom_call.1']
    #allocation5 [shape = 's32[1]{0}', space=sflag, size = 0x4, scoped, tag = 'scoped memory for tpu_custom_call.1']
    #allocation6 [shape = 'u8[196608]{0}', space=vmem, size = 0x30000, scoped, tag = 'input window, operand 6, single buffered']
    #allocation7 [shape = 's32[1]{0}', space=sflag, size = 0x4, scoped, tag = 'scoped memory for tpu_custom_call.1']
    #allocation8 [shape = 'u8[196608]{0}', space=vmem, size = 0x30000, scoped, tag = 'input window, operand 7, single buffered']
    #allocation9 [shape = 'u8[4096]{0}', space=vmem, size = 0x1000, scoped, tag = 'output window, operand 0, single buffered']
    %18 = vsyncpa [#allocation4], 0
    %19 = vsyncpa [#allocation7], 0
    %20 = vsyncpa [#allocation5], 0
    // Predicated region
    $region2: #{tpu_custom_call.1} parent=1 // pred_check
      _
    $region3: #{tpu_custom_call.1} parent=1 // pred_check_branch
      %22 = sbr.rel (0) target = $region5
    $region4: #{tpu_custom_call.1} parent=1 // pred_region
      _
    $region5: #{tpu_custom_call.1} parent=1 // pred_fallthru
      _
    // Predicated region
    $region6: #{tpu_custom_call.1} parent=1 // pred_check
      _
    $region7: #{tpu_custom_call.1} parent=1 // pred_check_branch
      %24 = sbr.rel (0) target = $region9
    $region8: #{tpu_custom_call.1} parent=1 // pred_region
      _
    $region9: #{tpu_custom_call.1} parent=1 // pred_fallthru
      _
    // Predicated region
    $region10: #{tpu_custom_call.1} parent=1 // pred_check
      _
    $region11: #{tpu_custom_call.1} parent=1 // pred_check_branch
      %26 = sbr.rel (0) target = $region13
    $region12: #{tpu_custom_call.1} parent=1 // pred_region
      %s28 = ssub.s32 6144, 6144
      %29 = vsyncadd [#allocation4], %s28
      %s30 = sshll.u32 [#allocation3], 4
      %s31 = int_to_ptr.vmem [resolvable:$true] %s30
      %36 = dma.hbm_to_vmem [thread:$0]  %s2, 6144, %s31, [#allocation4], 384, 384, 24
    $region13: #{tpu_custom_call.1} parent=1 // pred_fallthru
      _
    // Predicated region
    $region14: #{tpu_custom_call.1} parent=1 // pred_check
      _
    $region15: #{tpu_custom_call.1} parent=1 // pred_check_branch
      %38 = sbr.rel (0) target = $region17
    $region16: #{tpu_custom_call.1} parent=1 // pred_region
      _
    $region17: #{tpu_custom_call.1} parent=1 // pred_fallthru
      _
    // Predicated region
    $region18: #{tpu_custom_call.1} parent=1 // pred_check
      _
    $region19: #{tpu_custom_call.1} parent=1 // pred_check_branch
      %40 = sbr.rel (0) target = $region21
    $region20: #{tpu_custom_call.1} parent=1 // pred_region
      _
    $region21: #{tpu_custom_call.1} parent=1 // pred_fallthru
      _
    // Predicated region
    $region22: #{tpu_custom_call.1} parent=1 // pred_check
      _
    $region23: #{tpu_custom_call.1} parent=1 // pred_check_branch
      %42 = sbr.rel (0) target = $region25
    $region24: #{tpu_custom_call.1} parent=1 // pred_region
      _
    $region25: #{tpu_custom_call.1} parent=1 // pred_fallthru
      _
    // Predicated region
    $region26: #{tpu_custom_call.1} parent=1 // pred_check
      _
    $region27: #{tpu_custom_call.1} parent=1 // pred_check_branch
      %44 = sbr.rel (0) target = $region29
    $region28: #{tpu_custom_call.1} parent=1 // pred_region
      %s46 = ssub.s32 6144, 6144
      %47 = vsyncadd [#allocation7], %s46
      %s48 = sshll.u32 [#allocation6], 4
      %s49 = int_to_ptr.vmem [resolvable:$true] %s48
      %54 = dma.hbm_to_vmem [thread:$0]  %s6, 6144, %s49, [#allocation7], 384, 384, 24
    $region29: #{tpu_custom_call.1} parent=1 // pred_fallthru
      _
    // Predicated region
    $region30: #{tpu_custom_call.1} parent=1 // pred_check
      _
    $region31: #{tpu_custom_call.1} parent=1 // pred_check_branch
      %56 = sbr.rel (0) target = $region33
    $region32: #{tpu_custom_call.1} parent=1 // pred_region
      %s58 = ssub.s32 6144, 6144
      %59 = vsyncadd [#allocation7], %s58
      %s60 = sshll.u32 [#allocation8], 4
      %s61 = int_to_ptr.vmem [resolvable:$true] %s60
      %66 = dma.hbm_to_vmem [thread:$0]  %s7, 6144, %s61, [#allocation7], 384, 384, 24
    $region33: #{tpu_custom_call.1} parent=1 // pred_fallthru
      _
    // Predicated region
    $region34: #{tpu_custom_call.1} parent=1 // pred_check
      _
    $region35: #{tpu_custom_call.1} parent=1 // pred_check_branch
      %68 = sbr.rel (0) target = $region37
    $region36: #{tpu_custom_call.1} parent=1 // pred_region
      _
    $region37: #{tpu_custom_call.1} parent=1 // pred_fallthru
      _
    // Predicated region
    $region38: #{tpu_custom_call.1} parent=1 // pred_check
      _
    $region39: #{tpu_custom_call.1} parent=1 // pred_check_branch
      %70 = sbr.rel (0) target = $region41
    $region40: #{tpu_custom_call.1} parent=1 // pred_region
      _
    $region41: #{tpu_custom_call.1} parent=1 // pred_fallthru
      _
    // Predicated region
    $region42: #{tpu_custom_call.1} parent=1 // pred_check
      _
    $region43: #{tpu_custom_call.1} parent=1 // pred_check_branch
      %72 = sbr.rel (0) target = $region45
    $region44: #{tpu_custom_call.1} parent=1 // pred_region
      _
    $region45: #{tpu_custom_call.1} parent=1 // pred_fallthru
      _
    // Predicated region
    $region46: #{tpu_custom_call.1} parent=1 // pred_check
      _
    $region47: #{tpu_custom_call.1} parent=1 // pred_check_branch
      %74 = sbr.rel (0) target = $region49
    $region48: #{tpu_custom_call.1} parent=1 // pred_region
      _
    $region49: #{tpu_custom_call.1} parent=1 // pred_fallthru
      _
    // Predicated region
    $region50: #{tpu_custom_call.1} parent=1 // pred_check
      _
    $region51: #{tpu_custom_call.1} parent=1 // pred_check_branch
      %76 = sbr.rel (0) target = $region53
    $region52: #{tpu_custom_call.1} parent=1 // pred_region
      _
    $region53: #{tpu_custom_call.1} parent=1 // pred_fallthru
      _
    // Predicated region
    $region54: #{tpu_custom_call.1} parent=1 // pred_check
      _
    $region55: #{tpu_custom_call.1} parent=1 // pred_check_branch
      %78 = sbr.rel (0) target = $region57
    $region56: #{tpu_custom_call.1} parent=1 // pred_region
      %79 = dma.done [#allocation4], 6144
    $region57: #{tpu_custom_call.1} parent=1 // pred_fallthru
      _
    // Predicated region
    $region58: #{tpu_custom_call.1} parent=1 // pred_check
      _
    $region59: #{tpu_custom_call.1} parent=1 // pred_check_branch
      %81 = sbr.rel (0) target = $region61
    $region60: #{tpu_custom_call.1} parent=1 // pred_region
      %82 = dma.done [#allocation7], 6144
    $region61: #{tpu_custom_call.1} parent=1 // pred_fallthru
      _
    // Predicated region
    $region62: #{tpu_custom_call.1} parent=1 // pred_check
      _
    $region63: #{tpu_custom_call.1} parent=1 // pred_check_branch
      %84 = sbr.rel (0) target = $region65
    $region64: #{tpu_custom_call.1} parent=1 // pred_region
      %85 = dma.done [#allocation7], 6144
    $region65: #{tpu_custom_call.1} parent=1 // pred_fallthru
      _
    %v86 = vld [vmem:[%s0] sm:$0xff]
    %v87 = vld [vmem:[%s0 + $0x8] sm:$0xff]
    %v88 = vld [vmem:[%s0 + $0x10] sm:$0xff]
    %v89 = vld [vmem:[%s0 + $0x18] sm:$0xff]
    %v90 = vld [vmem:[%s0 + $0x20] sm:$0xff]
    %v91 = vld [vmem:[%s0 + $0x28] sm:$0xff]
    %v92 = vld [vmem:[%s0 + $0x30] sm:$0xff]
    %v93 = vld [vmem:[%s0 + $0x38] sm:$0xff]
    %v94 = vld [vmem:[%s1] sm:$0xff]
    %v95 = vld [vmem:[%s1 + $0x8] sm:$0xff]
    %v96 = vld [vmem:[%s1 + $0x10] sm:$0xff]
    %v97 = vld [vmem:[%s1 + $0x18] sm:$0xff]
    %v98 = vld [vmem:[%s1 + $0x20] sm:$0xff]
    %v99 = vld [vmem:[%s1 + $0x28] sm:$0xff]
    %v100 = vld [vmem:[%s1 + $0x30] sm:$0xff]
    %v101 = vld [vmem:[%s1 + $0x38] sm:$0xff]
    %v102 = vld [vmem:[%s1 + $0x40] sm:$0xff]
    %v103 = vld [vmem:[%s1 + $0x48] sm:$0xff]
    %v104 = vld [vmem:[%s1 + $0x50] sm:$0xff]
    %v105 = vld [vmem:[%s1 + $0x58] sm:$0xff]
    %vm106 = vcmask 261120
    %v108 = vsel %vm106, %v86, 0
    %v111 = vsel %vm106, %v87, 0
    %v114 = vsel %vm106, %v88, 0
    %v117 = vsel %vm106, %v89, 0
    %v120 = vsel %vm106, %v90, 0
    %v123 = vsel %vm106, %v91, 0
    %v126 = vsel %vm106, %v92, 0
    %v129 = vsel %vm106, %v93, 0
    %131 = vmatprep.subr.mxu0 0.0
    %132 = vmatpush1.msra.mxu0 0.0
    %133 = vmatprep.subr.mxu0 0.0
    %134 = vmatpush1.msra.mxu0 0.0
    %135 = vmatprep.subr.mxu0 0.0
    %136 = vmatpush1.msra.mxu0 0.0
    %137 = vmatprep.subr.mxu0 0.0
    %138 = vmatpush1.msra.mxu0 0.0
    %139 = vmatprep.subr.mxu0 0.0
    %140 = vmatpush1.msra.mxu0 0.0
    %141 = vmatprep.subr.mxu0 0.0
    %142 = vmatpush1.msra.mxu0 0.0
    %143 = vmatprep.subr.mxu0 0.0
    %144 = vmatpush1.msra.mxu0 0.0
    %145 = vmatprep.subr.mxu0 0.0
    %146 = vmatpush1.msra.mxu0 0.0
    %147 = vmatprep.subr.mxu0 0.0
    %148 = vmatpush1.msra.mxu0 0.0
    %149 = vmatprep.subr.mxu0 0.0
    %150 = vmatpush1.msra.mxu0 0.0
    %151 = vmatprep.subr.mxu0 0.0
    %152 = vmatpush1.msra.mxu0 0.0
    %153 = vmatprep.subr.mxu0 0.0
    %154 = vmatpush1.msra.mxu0 0.0
    %155 = vmatprep.subr.mxu0 %v104
    %156 = vmatpush1.msra.mxu0 %v103
    %157 = vmatprep.subr.mxu0 %v101
    %158 = vmatpush1.msra.mxu0 %v100
    %159 = vmatprep.subr.mxu0 %v98
    %160 = vmatpush1.msra.mxu0 %v97
    %161 = vmatprep.subr.mxu0 %v95
    %162 = vmatpush1.msra.mxu0 %v94
    %163 = vmatprep.subr.mxu0 0.0
    %164 = vmatpush2.msra.mxu0 0.0
    %165 = vmatprep.subr.mxu0 0.0
    %166 = vmatpush2.msra.mxu0 0.0
    %167 = vmatprep.subr.mxu0 0.0
    %168 = vmatpush2.msra.mxu0 0.0
    %169 = vmatprep.subr.mxu0 0.0
    %170 = vmatpush2.msra.mxu0 0.0
    %171 = vmatprep.subr.mxu0 0.0
    %172 = vmatpush2.msra.mxu0 0.0
    %173 = vmatprep.subr.mxu0 0.0
    %174 = vmatpush2.msra.mxu0 0.0
    %175 = vmatprep.subr.mxu0 0.0
    %176 = vmatpush2.msra.mxu0 0.0
    %177 = vmatprep.subr.mxu0 0.0
    %178 = vmatpush2.msra.mxu0 0.0
    %179 = vmatprep.subr.mxu0 0.0
    %180 = vmatpush2.msra.mxu0 0.0
    %181 = vmatprep.subr.mxu0 0.0
    %182 = vmatpush2.msra.mxu0 0.0
    %183 = vmatprep.subr.mxu0 0.0
    %184 = vmatpush2.msra.mxu0 0.0
    %185 = vmatprep.subr.mxu0 0.0
    %186 = vmatpush2.msra.mxu0 0.0
    %187 = vmatprep.subr.mxu0 0.0
    %188 = vmatpush2.msra.mxu0 0.0
    %189 = vmatprep.subr.mxu0 0.0
    %190 = vmatpush2.msra.mxu0 0.0
    %191 = vmatprep.subr.mxu0 0.0
    %192 = vmatpush2.msra.mxu0 0.0
    %193 = vmatprep.subr.mxu0 0.0
    %194 = vmatpush2.msra.mxu0 0.0
    %195 = vmatprep.mubr.f32.mxu0 0.0
    %196 = vmatmul.mubr.f32.gmra.mxu0 %v108
    %v197 = vpop.f32.mrf.mxu0
    %v198 = vadd.f32 0.0, %v197
    %v199 = vpop.f32.mrf.mxu0
    %v200 = vadd.f32 0.0, %v199
    %201 = vmatprep.mubr.f32.mxu0 0.0
    %202 = vmatmul.mubr.f32.gmra.mxu0 %v111
    %v203 = vpop.f32.mrf.mxu0
    %v204 = vadd.f32 0.0, %v203
    %v205 = vpop.f32.mrf.mxu0
    %v206 = vadd.f32 0.0, %v205
    %207 = vmatprep.mubr.f32.mxu0 0.0
    %208 = vmatmul.mubr.f32.gmra.mxu0 %v114
    %v209 = vpop.f32.mrf.mxu0
    %v210 = vadd.f32 0.0, %v209
    %v211 = vpop.f32.mrf.mxu0
    %v212 = vadd.f32 0.0, %v211
    %213 = vmatprep.mubr.f32.mxu0 0.0
    %214 = vmatmul.mubr.f32.gmra.mxu0 %v117
    %v215 = vpop.f32.mrf.mxu0
    %v216 = vadd.f32 0.0, %v215
    %v217 = vpop.f32.mrf.mxu0
    %v218 = vadd.f32 0.0, %v217
    %219 = vmatprep.mubr.f32.mxu0 0.0
    %220 = vmatmul.mubr.f32.gmra.mxu0 %v120
    %v221 = vpop.f32.mrf.mxu0
    %v222 = vadd.f32 0.0, %v221
    %v223 = vpop.f32.mrf.mxu0
    %v224 = vadd.f32 0.0, %v223
    %225 = vmatprep.mubr.f32.mxu0 0.0
    %226 = vmatmul.mubr.f32.gmra.mxu0 %v123
    %v227 = vpop.f32.mrf.mxu0
    %v228 = vadd.f32 0.0, %v227
    %v229 = vpop.f32.mrf.mxu0
    %v230 = vadd.f32 0.0, %v229
    %231 = vmatprep.mubr.f32.mxu0 0.0
    %232 = vmatmul.mubr.f32.gmra.mxu0 %v126
    %v233 = vpop.f32.mrf.mxu0
    %v234 = vadd.f32 0.0, %v233
    %v235 = vpop.f32.mrf.mxu0
    %v236 = vadd.f32 0.0, %v235
    %237 = vmatprep.mubr.f32.mxu0 0.0
    %238 = vmatmul.mubr.f32.gmra.mxu0 %v129
    %v239 = vpop.f32.mrf.mxu0
    %v240 = vadd.f32 0.0, %v239
    %v241 = vpop.f32.mrf.mxu0
    %v242 = vadd.f32 0.0, %v241
    %243 = vdwg.mxu0
    %244 = vmatprep.subr.mxu0 0.0
    %245 = vmatpush1.msra.mxu0 0.0
    %246 = vmatprep.subr.mxu0 0.0
    %247 = vmatpush1.msra.mxu0 0.0
    %248 = vmatprep.subr.mxu0 0.0
    %249 = vmatpush1.msra.mxu0 0.0
    %250 = vmatprep.subr.mxu0 0.0
    %251 = vmatpush1.msra.mxu0 0.0
    %252 = vmatprep.subr.mxu0 0.0
    %253 = vmatpush1.msra.mxu0 0.0
    %254 = vmatprep.subr.mxu0 0.0
    %255 = vmatpush1.msra.mxu0 0.0
    %256 = vmatprep.subr.mxu0 0.0
    %257 = vmatpush1.msra.mxu0 0.0
    %258 = vmatprep.subr.mxu0 0.0
    %259 = vmatpush1.msra.mxu0 0.0
    %260 = vmatprep.subr.mxu0 0.0
    %261 = vmatpush1.msra.mxu0 0.0
    %262 = vmatprep.subr.mxu0 0.0
    %263 = vmatpush1.msra.mxu0 0.0
    %264 = vmatprep.subr.mxu0 0.0
    %265 = vmatpush1.msra.mxu0 0.0
    %266 = vmatprep.subr.mxu0 0.0
    %267 = vmatpush1.msra.mxu0 0.0
    %268 = vmatprep.subr.mxu0 0.0
    %269 = vmatpush1.msra.mxu0 %v105
    %270 = vmatprep.subr.mxu0 0.0
    %271 = vmatpush1.msra.mxu0 %v102
    %272 = vmatprep.subr.mxu0 0.0
    %273 = vmatpush1.msra.mxu0 %v99
    %274 = vmatprep.subr.mxu0 0.0
    %275 = vmatpush1.msra.mxu0 %v96
    %276 = vmatprep.subr.mxu0 0.0
    %277 = vmatpush2.msra.mxu0 0.0
    %278 = vmatprep.subr.mxu0 0.0
    %279 = vmatpush2.msra.mxu0 0.0
    %280 = vmatprep.subr.mxu0 0.0
    %281 = vmatpush2.msra.mxu0 0.0
    %282 = vmatprep.subr.mxu0 0.0
    %283 = vmatpush2.msra.mxu0 0.0
    %284 = vmatprep.subr.mxu0 0.0
    %285 = vmatpush2.msra.mxu0 0.0
    %286 = vmatprep.subr.mxu0 0.0
    %287 = vmatpush2.msra.mxu0 0.0
    %288 = vmatprep.subr.mxu0 0.0
    %289 = vmatpush2.msra.mxu0 0.0
    %290 = vmatprep.subr.mxu0 0.0
    %291 = vmatpush2.msra.mxu0 0.0
    %292 = vmatprep.subr.mxu0 0.0
    %293 = vmatpush2.msra.mxu0 0.0
    %294 = vmatprep.subr.mxu0 0.0
    %295 = vmatpush2.msra.mxu0 0.0
    %296 = vmatprep.subr.mxu0 0.0
    %297 = vmatpush2.msra.mxu0 0.0
    %298 = vmatprep.subr.mxu0 0.0
    %299 = vmatpush2.msra.mxu0 0.0
    %300 = vmatprep.subr.mxu0 0.0
    %301 = vmatpush2.msra.mxu0 0.0
    %302 = vmatprep.subr.mxu0 0.0
    %303 = vmatpush2.msra.mxu0 0.0
    %304 = vmatprep.subr.mxu0 0.0
    %305 = vmatpush2.msra.mxu0 0.0
    %306 = vmatprep.subr.mxu0 0.0
    %307 = vmatpush2.msra.mxu0 0.0
    %308 = vmatprep.mubr.f32.mxu0 0.0
    %309 = vmatmul.mubr.f32.gmra.mxu0 %v108
    %v310 = vpop.f32.mrf.mxu0
    %v311 = vadd.f32 0.0, %v310
    %v312 = vpop.f32.mrf.mxu0
    %313 = vmatprep.mubr.f32.mxu0 0.0
    %314 = vmatmul.mubr.f32.gmra.mxu0 %v111
    %v315 = vpop.f32.mrf.mxu0
    %v316 = vadd.f32 0.0, %v315
    %v317 = vpop.f32.mrf.mxu0
    %318 = vmatprep.mubr.f32.mxu0 0.0
    %319 = vmatmul.mubr.f32.gmra.mxu0 %v114
    %v320 = vpop.f32.mrf.mxu0
    %v321 = vadd.f32 0.0, %v320
    %v322 = vpop.f32.mrf.mxu0
    %323 = vmatprep.mubr.f32.mxu0 0.0
    %324 = vmatmul.mubr.f32.gmra.mxu0 %v117
    %v325 = vpop.f32.mrf.mxu0
    %v326 = vadd.f32 0.0, %v325
    %v327 = vpop.f32.mrf.mxu0
    %328 = vmatprep.mubr.f32.mxu0 0.0
    %329 = vmatmul.mubr.f32.gmra.mxu0 %v120
    %v330 = vpop.f32.mrf.mxu0
    %v331 = vadd.f32 0.0, %v330
    %v332 = vpop.f32.mrf.mxu0
    %333 = vmatprep.mubr.f32.mxu0 0.0
    %334 = vmatmul.mubr.f32.gmra.mxu0 %v123
    %v335 = vpop.f32.mrf.mxu0
    %v336 = vadd.f32 0.0, %v335
    %v337 = vpop.f32.mrf.mxu0
    %338 = vmatprep.mubr.f32.mxu0 0.0
    %339 = vmatmul.mubr.f32.gmra.mxu0 %v126
    %v340 = vpop.f32.mrf.mxu0
    %v341 = vadd.f32 0.0, %v340
    %v342 = vpop.f32.mrf.mxu0
    %343 = vmatprep.mubr.f32.mxu0 0.0
    %344 = vmatmul.mubr.f32.gmra.mxu0 %v129
    %v345 = vpop.f32.mrf.mxu0
    %v346 = vadd.f32 0.0, %v345
    %v347 = vpop.f32.mrf.mxu0
    %348 = vdwg.mxu0
    %349 = vst [vmem:[#allocation2] sm:$0xff] %v198
    %350 = vst [vmem:[#allocation2 + $0x8] sm:$0xff] %v200
    %351 = vst [vmem:[#allocation2 + $0x10] sm:$0xff] %v311
    %352 = vst [vmem:[#allocation2 + $0x18] sm:$0xff] %v204
    %353 = vst [vmem:[#allocation2 + $0x20] sm:$0xff] %v206
    %354 = vst [vmem:[#allocation2 + $0x28] sm:$0xff] %v316
    %355 = vst [vmem:[#allocation2 + $0x30] sm:$0xff] %v210
    %356 = vst [vmem:[#allocation2 + $0x38] sm:$0xff] %v212
    %357 = vst [vmem:[#allocation2 + $0x40] sm:$0xff] %v321
    %358 = vst [vmem:[#allocation2 + $0x48] sm:$0xff] %v216
    %359 = vst [vmem:[#allocation2 + $0x50] sm:$0xff] %v218
    %360 = vst [vmem:[#allocation2 + $0x58] sm:$0xff] %v326
    %361 = vst [vmem:[#allocation2 + $0x60] sm:$0xff] %v222
    %362 = vst [vmem:[#allocation2 + $0x68] sm:$0xff] %v224
    %363 = vst [vmem:[#allocation2 + $0x70] sm:$0xff] %v331
    %364 = vst [vmem:[#allocation2 + $0x78] sm:$0xff] %v228
    %365 = vst [vmem:[#allocation2 + $0x80] sm:$0xff] %v230
    %366 = vst [vmem:[#allocation2 + $0x88] sm:$0xff] %v336
    %367 = vst [vmem:[#allocation2 + $0x90] sm:$0xff] %v234
    %368 = vst [vmem:[#allocation2 + $0x98] sm:$0xff] %v236
    %369 = vst [vmem:[#allocation2 + $0xa0] sm:$0xff] %v341
    %370 = vst [vmem:[#allocation2 + $0xa8] sm:$0xff] %v240
    %371 = vst [vmem:[#allocation2 + $0xb0] sm:$0xff] %v242
    %372 = vst [vmem:[#allocation2 + $0xb8] sm:$0xff] %v346
    %v373 = vld [vmem:[%s3] sm:$0x3]
    %v374 = vld [vmem:[%s4] sm:$0x1]
    %v375 = vld [vmem:[%s5] sm:$0x1]
    %v376 = vld [vmem:[#allocation2] sm:$0xff]
    %v377 = vld [vmem:[#allocation2 + $0x8] sm:$0xff]
    %v378 = vld [vmem:[#allocation2 + $0x10] sm:$0xff]
    %v379 = vld [vmem:[#allocation3] sm:$0xff]
    %v380 = vld [vmem:[#allocation3 + $0x8] sm:$0xff]
    %v381 = vld [vmem:[#allocation3 + $0x10] sm:$0xff]
    %v382 = vld [vmem:[#allocation3 + $0x18] sm:$0xff]
    %v383 = vld [vmem:[#allocation3 + $0x20] sm:$0xff]
    %v384 = vld [vmem:[#allocation3 + $0x28] sm:$0xff]
    %v385 = vld [vmem:[#allocation3 + $0x30] sm:$0xff]
    %v386 = vld [vmem:[#allocation3 + $0x38] sm:$0xff]
    %v387 = vld [vmem:[#allocation3 + $0x40] sm:$0xff]
    %v388 = vld [vmem:[#allocation3 + $0x48] sm:$0xff]
    %v389 = vld [vmem:[#allocation3 + $0x50] sm:$0xff]
    %v390 = vld [vmem:[#allocation3 + $0x58] sm:$0xff]
    %v391 = vld [vmem:[#allocation3 + $0x60] sm:$0xff]
    %v392 = vld [vmem:[#allocation3 + $0x68] sm:$0xff]
    %v393 = vld [vmem:[#allocation3 + $0x70] sm:$0xff]
    %v394 = vld [vmem:[#allocation3 + $0x78] sm:$0xff]
    %v395 = vld [vmem:[#allocation3 + $0x80] sm:$0xff]
    %v396 = vld [vmem:[#allocation3 + $0x88] sm:$0xff]
    %v397 = vld [vmem:[#allocation3 + $0x90] sm:$0xff]
    %v398 = vld [vmem:[#allocation3 + $0x98] sm:$0xff]
    %v399 = vld [vmem:[#allocation3 + $0xa0] sm:$0xff]
    %v400 = vld [vmem:[#allocation3 + $0xa8] sm:$0xff]
    %v401 = vld [vmem:[#allocation3 + $0xb0] sm:$0xff]
    %v402 = vld [vmem:[#allocation3 + $0xb8] sm:$0xff]
    %v403 = vld [vmem:[#allocation3 + $0xc0] sm:$0xff]
    %v404 = vld [vmem:[#allocation3 + $0xc8] sm:$0xff]
    %v405 = vld [vmem:[#allocation3 + $0xd0] sm:$0xff]
    %v406 = vld [vmem:[#allocation3 + $0xd8] sm:$0xff]
    %v407 = vld [vmem:[#allocation3 + $0xe0] sm:$0xff]
    %v408 = vld [vmem:[#allocation3 + $0xe8] sm:$0xff]
    %v409 = vld [vmem:[#allocation3 + $0xf0] sm:$0xff]
    %v410 = vld [vmem:[#allocation3 + $0xf8] sm:$0xff]
    %v411 = vld [vmem:[#allocation3 + $0x100] sm:$0xff]
    %v412 = vld [vmem:[#allocation3 + $0x108] sm:$0xff]
    %v413 = vld [vmem:[#allocation3 + $0x110] sm:$0xff]
    %v414 = vld [vmem:[#allocation3 + $0x118] sm:$0xff]
    %v415 = vld [vmem:[#allocation3 + $0x120] sm:$0xff]
    %v416 = vld [vmem:[#allocation3 + $0x128] sm:$0xff]
    %v417 = vld [vmem:[#allocation3 + $0x130] sm:$0xff]
    %v418 = vld [vmem:[#allocation3 + $0x138] sm:$0xff]
    %v419 = vld [vmem:[#allocation3 + $0x140] sm:$0xff]
    %v420 = vld [vmem:[#allocation3 + $0x148] sm:$0xff]
    %v421 = vld [vmem:[#allocation3 + $0x150] sm:$0xff]
    %v422 = vld [vmem:[#allocation3 + $0x158] sm:$0xff]
    %v423 = vld [vmem:[#allocation3 + $0x160] sm:$0xff]
    %v424 = vld [vmem:[#allocation3 + $0x168] sm:$0xff]
    %v425 = vld [vmem:[#allocation3 + $0x170] sm:$0xff]
    %v426 = vld [vmem:[#allocation3 + $0x178] sm:$0xff]
    %427 = vmatprep.subr.mxu0 %v425
    %428 = vmatpush1.msra.mxu0 %v424
    %429 = vmatprep.subr.mxu0 %v422
    %430 = vmatpush1.msra.mxu0 %v421
    %431 = vmatprep.subr.mxu0 %v419
    %432 = vmatpush1.msra.mxu0 %v418
    %433 = vmatprep.subr.mxu0 %v416
    %434 = vmatpush1.msra.mxu0 %v415
    %435 = vmatprep.subr.mxu0 %v413
    %436 = vmatpush1.msra.mxu0 %v412
    %437 = vmatprep.subr.mxu0 %v410
    %438 = vmatpush1.msra.mxu0 %v409
    %439 = vmatprep.subr.mxu0 %v407
    %440 = vmatpush1.msra.mxu0 %v406
    %441 = vmatprep.subr.mxu0 %v404
    %442 = vmatpush1.msra.mxu0 %v403
    %443 = vmatprep.subr.mxu0 %v401
    %444 = vmatpush1.msra.mxu0 %v400
    %445 = vmatprep.subr.mxu0 %v398
    %446 = vmatpush1.msra.mxu0 %v397
    %447 = vmatprep.subr.mxu0 %v395
    %448 = vmatpush1.msra.mxu0 %v394
    %449 = vmatprep.subr.mxu0 %v392
    %450 = vmatpush1.msra.mxu0 %v391
    %451 = vmatprep.subr.mxu0 %v389
    %452 = vmatpush1.msra.mxu0 %v388
    %453 = vmatprep.subr.mxu0 %v386
    %454 = vmatpush1.msra.mxu0 %v385
    %455 = vmatprep.subr.mxu0 %v383
    %456 = vmatpush1.msra.mxu0 %v382
    %457 = vmatprep.subr.mxu0 %v380
    %458 = vmatpush1.msra.mxu0 %v379
    %459 = vmatprep.subr.mxu0 0.0
    %460 = vmatpush2.msra.mxu0 0.0
    %461 = vmatprep.subr.mxu0 0.0
    %462 = vmatpush2.msra.mxu0 0.0
    %463 = vmatprep.subr.mxu0 0.0
    %464 = vmatpush2.msra.mxu0 0.0
    %465 = vmatprep.subr.mxu0 0.0
    %466 = vmatpush2.msra.mxu0 0.0
    %467 = vmatprep.subr.mxu0 0.0
    %468 = vmatpush2.msra.mxu0 0.0
    %469 = vmatprep.subr.mxu0 0.0
    %470 = vmatpush2.msra.mxu0 0.0
    %471 = vmatprep.subr.mxu0 0.0
    %472 = vmatpush2.msra.mxu0 0.0
    %473 = vmatprep.subr.mxu0 0.0
    %474 = vmatpush2.msra.mxu0 0.0
    %475 = vmatprep.subr.mxu0 0.0
    %476 = vmatpush2.msra.mxu0 0.0
    %477 = vmatprep.subr.mxu0 0.0
    %478 = vmatpush2.msra.mxu0 0.0
    %479 = vmatprep.subr.mxu0 0.0
    %480 = vmatpush2.msra.mxu0 0.0
    %481 = vmatprep.subr.mxu0 0.0
    %482 = vmatpush2.msra.mxu0 0.0
    %483 = vmatprep.subr.mxu0 0.0
    %484 = vmatpush2.msra.mxu0 0.0
    %485 = vmatprep.subr.mxu0 0.0
    %486 = vmatpush2.msra.mxu0 0.0
    %487 = vmatprep.subr.mxu0 0.0
    %488 = vmatpush2.msra.mxu0 0.0
    %489 = vmatprep.subr.mxu0 0.0
    %490 = vmatpush2.msra.mxu0 0.0
    %491 = vmatprep.mubr.f32.mxu0 0.0
    %492 = vmatmul.mubr.f32.gmra.mxu0 0.0
    %v493 = vpop.f32.mrf.mxu0
    %v494 = vadd.f32 0.0, %v493
    %v495 = vpop.f32.mrf.mxu0
    %v496 = vadd.f32 0.0, %v495
    %497 = vdwg.mxu0
    %498 = vmatprep.subr.mxu0 0.0
    %499 = vmatpush1.msra.mxu0 %v426
    %500 = vmatprep.subr.mxu0 0.0
    %501 = vmatpush1.msra.mxu0 %v423
    %502 = vmatprep.subr.mxu0 0.0
    %503 = vmatpush1.msra.mxu0 %v420
    %504 = vmatprep.subr.mxu0 0.0
    %505 = vmatpush1.msra.mxu0 %v417
    %506 = vmatprep.subr.mxu0 0.0
    %507 = vmatpush1.msra.mxu0 %v414
    %508 = vmatprep.subr.mxu0 0.0
    %509 = vmatpush1.msra.mxu0 %v411
    %510 = vmatprep.subr.mxu0 0.0
    %511 = vmatpush1.msra.mxu0 %v408
    %512 = vmatprep.subr.mxu0 0.0
    %513 = vmatpush1.msra.mxu0 %v405
    %514 = vmatprep.subr.mxu0 0.0
    %515 = vmatpush1.msra.mxu0 %v402
    %516 = vmatprep.subr.mxu0 0.0
    %517 = vmatpush1.msra.mxu0 %v399
    %518 = vmatprep.subr.mxu0 0.0
    %519 = vmatpush1.msra.mxu0 %v396
    %520 = vmatprep.subr.mxu0 0.0
    %521 = vmatpush1.msra.mxu0 %v393
    %522 = vmatprep.subr.mxu0 0.0
    %523 = vmatpush1.msra.mxu0 %v390
    %524 = vmatprep.subr.mxu0 0.0
    %525 = vmatpush1.msra.mxu0 %v387
    %526 = vmatprep.subr.mxu0 0.0
    %527 = vmatpush1.msra.mxu0 %v384
    %528 = vmatprep.subr.mxu0 0.0
    %529 = vmatpush1.msra.mxu0 %v381
    %530 = vmatprep.subr.mxu0 0.0
    %531 = vmatpush2.msra.mxu0 0.0
    %532 = vmatprep.subr.mxu0 0.0
    %533 = vmatpush2.msra.mxu0 0.0
    %534 = vmatprep.subr.mxu0 0.0
    %535 = vmatpush2.msra.mxu0 0.0
    %536 = vmatprep.subr.mxu0 0.0
    %537 = vmatpush2.msra.mxu0 0.0
    %538 = vmatprep.subr.mxu0 0.0
    %539 = vmatpush2.msra.mxu0 0.0
    %540 = vmatprep.subr.mxu0 0.0
    %541 = vmatpush2.msra.mxu0 0.0
    %542 = vmatprep.subr.mxu0 0.0
    %543 = vmatpush2.msra.mxu0 0.0
    %544 = vmatprep.subr.mxu0 0.0
    %545 = vmatpush2.msra.mxu0 0.0
    %546 = vmatprep.subr.mxu0 0.0
    %547 = vmatpush2.msra.mxu0 0.0
    %548 = vmatprep.subr.mxu0 0.0
    %549 = vmatpush2.msra.mxu0 0.0
    %550 = vmatprep.subr.mxu0 0.0
    %551 = vmatpush2.msra.mxu0 0.0
    %552 = vmatprep.subr.mxu0 0.0
    %553 = vmatpush2.msra.mxu0 0.0
    %554 = vmatprep.subr.mxu0 0.0
    %555 = vmatpush2.msra.mxu0 0.0
    %556 = vmatprep.subr.mxu0 0.0
    %557 = vmatpush2.msra.mxu0 0.0
    %558 = vmatprep.subr.mxu0 0.0
    %559 = vmatpush2.msra.mxu0 0.0
    %560 = vmatprep.subr.mxu0 0.0
    %561 = vmatpush2.msra.mxu0 0.0
    %562 = vmatprep.mubr.f32.mxu0 0.0
    %563 = vmatmul.mubr.f32.gmra.mxu0 0.0
    %v564 = vpop.f32.mrf.mxu0
    %v565 = vadd.f32 0.0, %v564
    %v566 = vpop.f32.mrf.mxu0
    %567 = vdwg.mxu0
    %v568 = vadd.f32 %v376, %v494
    %v569 = vadd.f32 %v377, %v496
    %v571 = vlaneseq
    %v572 = vshrl.u32 %v571, 7
    %v573 = vsub.s32 0, %v572
    %v574 = vrot.slane %v373, %v573
    %v575 = vlaneseq
    %v576 = vshrl.u32 %v575, 7
    %v577 = vsub.s32 1, %v576
    %v578 = vrot.slane %v373, %v577
    %v581 = vadd.f32 %v568, %v574
    %v582 = vadd.f32 %v569, %v578
    %v583 = vxor.u32 %v581, 2147483648
    %v584 = vxor.u32 %v582, 2147483648
    %v585 = vmul.f32 %v583, 1.442695
    %v586 = vpow.pop %v585
    %v587 = vmul.f32 %v584, 1.442695
    %v588 = vpow.pop %v587
    %v589 = vadd.f32 %v586, 1.0
    %v590 = vadd.f32 %v588, 1.0
    %v591 = vrcp.pop %v589
    %v592 = vmul.f32 1.0, %v591
    %v593 = vrcp.pop %v590
    %v594 = vmul.f32 1.0, %v593
    %v596 = vlaneseq
    %v597 = vshrl.u32 %v596, 7
    %v598 = vsub.s32 0, %v597
    %v599 = vrot.slane %v374, %v598
    %v601 = vadd.f32 %v378, %v599
    %v603 = vlaneseq
    %v604 = vshrl.u32 %v603, 7
    %v605 = vsub.s32 0, %v604
    %v606 = vrot.slane %v375, %v605
    %v608 = vadd.f32 %v565, %v606
    %v609 = vmul.f32 %v592, %v608
    %v610 = vadd.f32 %v601, %v609
    %v611 = vtanh.pop %v610
    %v612 = vsub.f32 1.0, %v594
    %v613 = vmul.f32 %v612, %v611
    %v614 = vmul.f32 %v594, 0.0
    %v615 = vadd.f32 %v613, %v614
    %v616 = vld [vmem:[%s8] sm:$0x3]
    %v617 = vld [vmem:[%s9] sm:$0x1]
    %v618 = vld [vmem:[%s10] sm:$0x1]
    %v619 = vld [vmem:[#allocation6] sm:$0xff]
    %v620 = vld [vmem:[#allocation6 + $0x8] sm:$0xff]
    %v621 = vld [vmem:[#allocation6 + $0x10] sm:$0xff]
    %v622 = vld [vmem:[#allocation6 + $0x18] sm:$0xff]
    %v623 = vld [vmem:[#allocation6 + $0x20] sm:$0xff]
    %v624 = vld [vmem:[#allocation6 + $0x28] sm:$0xff]
    %v625 = vld [vmem:[#allocation6 + $0x30] sm:$0xff]
    %v626 = vld [vmem:[#allocation6 + $0x38] sm:$0xff]
    %v627 = vld [vmem:[#allocation6 + $0x40] sm:$0xff]
    %v628 = vld [vmem:[#allocation6 + $0x48] sm:$0xff]
    %v629 = vld [vmem:[#allocation6 + $0x50] sm:$0xff]
    %v630 = vld [vmem:[#allocation6 + $0x58] sm:$0xff]
    %v631 = vld [vmem:[#allocation6 + $0x60] sm:$0xff]
    %v632 = vld [vmem:[#allocation6 + $0x68] sm:$0xff]
    %v633 = vld [vmem:[#allocation6 + $0x70] sm:$0xff]
    %v634 = vld [vmem:[#allocation6 + $0x78] sm:$0xff]
    %v635 = vld [vmem:[#allocation6 + $0x80] sm:$0xff]
    %v636 = vld [vmem:[#allocation6 + $0x88] sm:$0xff]
    %v637 = vld [vmem:[#allocation6 + $0x90] sm:$0xff]
    %v638 = vld [vmem:[#allocation6 + $0x98] sm:$0xff]
    %v639 = vld [vmem:[#allocation6 + $0xa0] sm:$0xff]
    %v640 = vld [vmem:[#allocation6 + $0xa8] sm:$0xff]
    %v641 = vld [vmem:[#allocation6 + $0xb0] sm:$0xff]
    %v642 = vld [vmem:[#allocation6 + $0xb8] sm:$0xff]
    %v643 = vld [vmem:[#allocation6 + $0xc0] sm:$0xff]
    %v644 = vld [vmem:[#allocation6 + $0xc8] sm:$0xff]
    %v645 = vld [vmem:[#allocation6 + $0xd0] sm:$0xff]
    %v646 = vld [vmem:[#allocation6 + $0xd8] sm:$0xff]
    %v647 = vld [vmem:[#allocation6 + $0xe0] sm:$0xff]
    %v648 = vld [vmem:[#allocation6 + $0xe8] sm:$0xff]
    %v649 = vld [vmem:[#allocation6 + $0xf0] sm:$0xff]
    %v650 = vld [vmem:[#allocation6 + $0xf8] sm:$0xff]
    %v651 = vld [vmem:[#allocation6 + $0x100] sm:$0xff]
    %v652 = vld [vmem:[#allocation6 + $0x108] sm:$0xff]
    %v653 = vld [vmem:[#allocation6 + $0x110] sm:$0xff]
    %v654 = vld [vmem:[#allocation6 + $0x118] sm:$0xff]
    %v655 = vld [vmem:[#allocation6 + $0x120] sm:$0xff]
    %v656 = vld [vmem:[#allocation6 + $0x128] sm:$0xff]
    %v657 = vld [vmem:[#allocation6 + $0x130] sm:$0xff]
    %v658 = vld [vmem:[#allocation6 + $0x138] sm:$0xff]
    %v659 = vld [vmem:[#allocation6 + $0x140] sm:$0xff]
    %v660 = vld [vmem:[#allocation6 + $0x148] sm:$0xff]
    %v661 = vld [vmem:[#allocation6 + $0x150] sm:$0xff]
    %v662 = vld [vmem:[#allocation6 + $0x158] sm:$0xff]
    %v663 = vld [vmem:[#allocation6 + $0x160] sm:$0xff]
    %v664 = vld [vmem:[#allocation6 + $0x168] sm:$0xff]
    %v665 = vld [vmem:[#allocation6 + $0x170] sm:$0xff]
    %v666 = vld [vmem:[#allocation6 + $0x178] sm:$0xff]
    %667 = vmatprep.subr.mxu0 %v665
    %668 = vmatpush1.msra.mxu0 %v664
    %669 = vmatprep.subr.mxu0 %v662
    %670 = vmatpush1.msra.mxu0 %v661
    %671 = vmatprep.subr.mxu0 %v659
    %672 = vmatpush1.msra.mxu0 %v658
    %673 = vmatprep.subr.mxu0 %v656
    %674 = vmatpush1.msra.mxu0 %v655
    %675 = vmatprep.subr.mxu0 %v653
    %676 = vmatpush1.msra.mxu0 %v652
    %677 = vmatprep.subr.mxu0 %v650
    %678 = vmatpush1.msra.mxu0 %v649
    %679 = vmatprep.subr.mxu0 %v647
    %680 = vmatpush1.msra.mxu0 %v646
    %681 = vmatprep.subr.mxu0 %v644
    %682 = vmatpush1.msra.mxu0 %v643
    %683 = vmatprep.subr.mxu0 %v641
    %684 = vmatpush1.msra.mxu0 %v640
    %685 = vmatprep.subr.mxu0 %v638
    %686 = vmatpush1.msra.mxu0 %v637
    %687 = vmatprep.subr.mxu0 %v635
    %688 = vmatpush1.msra.mxu0 %v634
    %689 = vmatprep.subr.mxu0 %v632
    %690 = vmatpush1.msra.mxu0 %v631
    %691 = vmatprep.subr.mxu0 %v629
    %692 = vmatpush1.msra.mxu0 %v628
    %693 = vmatprep.subr.mxu0 %v626
    %694 = vmatpush1.msra.mxu0 %v625
    %695 = vmatprep.subr.mxu0 %v623
    %696 = vmatpush1.msra.mxu0 %v622
    %697 = vmatprep.subr.mxu0 %v620
    %698 = vmatpush1.msra.mxu0 %v619
    %699 = vmatprep.subr.mxu0 0.0
    %700 = vmatpush2.msra.mxu0 0.0
    %701 = vmatprep.subr.mxu0 0.0
    %702 = vmatpush2.msra.mxu0 0.0
    %703 = vmatprep.subr.mxu0 0.0
    %704 = vmatpush2.msra.mxu0 0.0
    %705 = vmatprep.subr.mxu0 0.0
    %706 = vmatpush2.msra.mxu0 0.0
    %707 = vmatprep.subr.mxu0 0.0
    %708 = vmatpush2.msra.mxu0 0.0
    %709 = vmatprep.subr.mxu0 0.0
    %710 = vmatpush2.msra.mxu0 0.0
    %711 = vmatprep.subr.mxu0 0.0
    %712 = vmatpush2.msra.mxu0 0.0
    %713 = vmatprep.subr.mxu0 0.0
    %714 = vmatpush2.msra.mxu0 0.0
    %715 = vmatprep.subr.mxu0 0.0
    %716 = vmatpush2.msra.mxu0 0.0
    %717 = vmatprep.subr.mxu0 0.0
    %718 = vmatpush2.msra.mxu0 0.0
    %719 = vmatprep.subr.mxu0 0.0
    %720 = vmatpush2.msra.mxu0 0.0
    %721 = vmatprep.subr.mxu0 0.0
    %722 = vmatpush2.msra.mxu0 0.0
    %723 = vmatprep.subr.mxu0 0.0
    %724 = vmatpush2.msra.mxu0 0.0
    %725 = vmatprep.subr.mxu0 0.0
    %726 = vmatpush2.msra.mxu0 0.0
    %727 = vmatprep.subr.mxu0 0.0
    %728 = vmatpush2.msra.mxu0 0.0
    %729 = vmatprep.subr.mxu0 0.0
    %730 = vmatpush2.msra.mxu0 0.0
    %731 = vmatprep.mubr.f32.mxu0 0.0
    %732 = vmatmul.mubr.f32.gmra.mxu0 %v615
    %v733 = vpop.f32.mrf.mxu0
    %v734 = vadd.f32 0.0, %v733
    %v735 = vpop.f32.mrf.mxu0
    %v736 = vadd.f32 0.0, %v735
    %737 = vdwg.mxu0
    %738 = vmatprep.subr.mxu0 0.0
    %739 = vmatpush1.msra.mxu0 %v666
    %740 = vmatprep.subr.mxu0 0.0
    %741 = vmatpush1.msra.mxu0 %v663
    %742 = vmatprep.subr.mxu0 0.0
    %743 = vmatpush1.msra.mxu0 %v660
    %744 = vmatprep.subr.mxu0 0.0
    %745 = vmatpush1.msra.mxu0 %v657
    %746 = vmatprep.subr.mxu0 0.0
    %747 = vmatpush1.msra.mxu0 %v654
    %748 = vmatprep.subr.mxu0 0.0
    %749 = vmatpush1.msra.mxu0 %v651
    %750 = vmatprep.subr.mxu0 0.0
    %751 = vmatpush1.msra.mxu0 %v648
    %752 = vmatprep.subr.mxu0 0.0
    %753 = vmatpush1.msra.mxu0 %v645
    %754 = vmatprep.subr.mxu0 0.0
    %755 = vmatpush1.msra.mxu0 %v642
    %756 = vmatprep.subr.mxu0 0.0
    %757 = vmatpush1.msra.mxu0 %v639
    %758 = vmatprep.subr.mxu0 0.0
    %759 = vmatpush1.msra.mxu0 %v636
    %760 = vmatprep.subr.mxu0 0.0
    %761 = vmatpush1.msra.mxu0 %v633
    %762 = vmatprep.subr.mxu0 0.0
    %763 = vmatpush1.msra.mxu0 %v630
    %764 = vmatprep.subr.mxu0 0.0
    %765 = vmatpush1.msra.mxu0 %v627
    %766 = vmatprep.subr.mxu0 0.0
    %767 = vmatpush1.msra.mxu0 %v624
    %768 = vmatprep.subr.mxu0 0.0
    %769 = vmatpush1.msra.mxu0 %v621
    %770 = vmatprep.subr.mxu0 0.0
    %771 = vmatpush2.msra.mxu0 0.0
    %772 = vmatprep.subr.mxu0 0.0
    %773 = vmatpush2.msra.mxu0 0.0
    %774 = vmatprep.subr.mxu0 0.0
    %775 = vmatpush2.msra.mxu0 0.0
    %776 = vmatprep.subr.mxu0 0.0
    %777 = vmatpush2.msra.mxu0 0.0
    %778 = vmatprep.subr.mxu0 0.0
    %779 = vmatpush2.msra.mxu0 0.0
    %780 = vmatprep.subr.mxu0 0.0
    %781 = vmatpush2.msra.mxu0 0.0
    %782 = vmatprep.subr.mxu0 0.0
    %783 = vmatpush2.msra.mxu0 0.0
    %784 = vmatprep.subr.mxu0 0.0
    %785 = vmatpush2.msra.mxu0 0.0
    %786 = vmatprep.subr.mxu0 0.0
    %787 = vmatpush2.msra.mxu0 0.0
    %788 = vmatprep.subr.mxu0 0.0
    %789 = vmatpush2.msra.mxu0 0.0
    %790 = vmatprep.subr.mxu0 0.0
    %791 = vmatpush2.msra.mxu0 0.0
    %792 = vmatprep.subr.mxu0 0.0
    %793 = vmatpush2.msra.mxu0 0.0
    %794 = vmatprep.subr.mxu0 0.0
    %795 = vmatpush2.msra.mxu0 0.0
    %796 = vmatprep.subr.mxu0 0.0
    %797 = vmatpush2.msra.mxu0 0.0
    %798 = vmatprep.subr.mxu0 0.0
    %799 = vmatpush2.msra.mxu0 0.0
    %800 = vmatprep.subr.mxu0 0.0
    %801 = vmatpush2.msra.mxu0 0.0
    %802 = vmatprep.mubr.f32.mxu0 0.0
    %803 = vmatmul.mubr.f32.gmra.mxu0 %v615
    %v804 = vpop.f32.mrf.mxu0
    %v805 = vadd.f32 0.0, %v804
    %v806 = vpop.f32.mrf.mxu0
    %807 = vdwg.mxu0
    %v808 = vld [vmem:[#allocation8] sm:$0xff]
    %v809 = vld [vmem:[#allocation8 + $0x8] sm:$0xff]
    %v810 = vld [vmem:[#allocation8 + $0x10] sm:$0xff]
    %v811 = vld [vmem:[#allocation8 + $0x18] sm:$0xff]
    %v812 = vld [vmem:[#allocation8 + $0x20] sm:$0xff]
    %v813 = vld [vmem:[#allocation8 + $0x28] sm:$0xff]
    %v814 = vld [vmem:[#allocation8 + $0x30] sm:$0xff]
    %v815 = vld [vmem:[#allocation8 + $0x38] sm:$0xff]
    %v816 = vld [vmem:[#allocation8 + $0x40] sm:$0xff]
    %v817 = vld [vmem:[#allocation8 + $0x48] sm:$0xff]
    %v818 = vld [vmem:[#allocation8 + $0x50] sm:$0xff]
    %v819 = vld [vmem:[#allocation8 + $0x58] sm:$0xff]
    %v820 = vld [vmem:[#allocation8 + $0x60] sm:$0xff]
    %v821 = vld [vmem:[#allocation8 + $0x68] sm:$0xff]
    %v822 = vld [vmem:[#allocation8 + $0x70] sm:$0xff]
    %v823 = vld [vmem:[#allocation8 + $0x78] sm:$0xff]
    %v824 = vld [vmem:[#allocation8 + $0x80] sm:$0xff]
    %v825 = vld [vmem:[#allocation8 + $0x88] sm:$0xff]
    %v826 = vld [vmem:[#allocation8 + $0x90] sm:$0xff]
    %v827 = vld [vmem:[#allocation8 + $0x98] sm:$0xff]
    %v828 = vld [vmem:[#allocation8 + $0xa0] sm:$0xff]
    %v829 = vld [vmem:[#allocation8 + $0xa8] sm:$0xff]
    %v830 = vld [vmem:[#allocation8 + $0xb0] sm:$0xff]
    %v831 = vld [vmem:[#allocation8 + $0xb8] sm:$0xff]
    %v832 = vld [vmem:[#allocation8 + $0xc0] sm:$0xff]
    %v833 = vld [vmem:[#allocation8 + $0xc8] sm:$0xff]
    %v834 = vld [vmem:[#allocation8 + $0xd0] sm:$0xff]
    %v835 = vld [vmem:[#allocation8 + $0xd8] sm:$0xff]
    %v836 = vld [vmem:[#allocation8 + $0xe0] sm:$0xff]
    %v837 = vld [vmem:[#allocation8 + $0xe8] sm:$0xff]
    %v838 = vld [vmem:[#allocation8 + $0xf0] sm:$0xff]
    %v839 = vld [vmem:[#allocation8 + $0xf8] sm:$0xff]
    %v840 = vld [vmem:[#allocation8 + $0x100] sm:$0xff]
    %v841 = vld [vmem:[#allocation8 + $0x108] sm:$0xff]
    %v842 = vld [vmem:[#allocation8 + $0x110] sm:$0xff]
    %v843 = vld [vmem:[#allocation8 + $0x118] sm:$0xff]
    %v844 = vld [vmem:[#allocation8 + $0x120] sm:$0xff]
    %v845 = vld [vmem:[#allocation8 + $0x128] sm:$0xff]
    %v846 = vld [vmem:[#allocation8 + $0x130] sm:$0xff]
    %v847 = vld [vmem:[#allocation8 + $0x138] sm:$0xff]
    %v848 = vld [vmem:[#allocation8 + $0x140] sm:$0xff]
    %v849 = vld [vmem:[#allocation8 + $0x148] sm:$0xff]
    %v850 = vld [vmem:[#allocation8 + $0x150] sm:$0xff]
    %v851 = vld [vmem:[#allocation8 + $0x158] sm:$0xff]
    %v852 = vld [vmem:[#allocation8 + $0x160] sm:$0xff]
    %v853 = vld [vmem:[#allocation8 + $0x168] sm:$0xff]
    %v854 = vld [vmem:[#allocation8 + $0x170] sm:$0xff]
    %v855 = vld [vmem:[#allocation8 + $0x178] sm:$0xff]
    %856 = vmatprep.subr.mxu0 %v854
    %857 = vmatpush1.msra.mxu0 %v853
    %858 = vmatprep.subr.mxu0 %v851
    %859 = vmatpush1.msra.mxu0 %v850
    %860 = vmatprep.subr.mxu0 %v848
    %861 = vmatpush1.msra.mxu0 %v847
    %862 = vmatprep.subr.mxu0 %v845
    %863 = vmatpush1.msra.mxu0 %v844
    %864 = vmatprep.subr.mxu0 %v842
    %865 = vmatpush1.msra.mxu0 %v841
    %866 = vmatprep.subr.mxu0 %v839
    %867 = vmatpush1.msra.mxu0 %v838
    %868 = vmatprep.subr.mxu0 %v836
    %869 = vmatpush1.msra.mxu0 %v835
    %870 = vmatprep.subr.mxu0 %v833
    %871 = vmatpush1.msra.mxu0 %v832
    %872 = vmatprep.subr.mxu0 %v830
    %873 = vmatpush1.msra.mxu0 %v829
    %874 = vmatprep.subr.mxu0 %v827
    %875 = vmatpush1.msra.mxu0 %v826
    %876 = vmatprep.subr.mxu0 %v824
    %877 = vmatpush1.msra.mxu0 %v823
    %878 = vmatprep.subr.mxu0 %v821
    %879 = vmatpush1.msra.mxu0 %v820
    %880 = vmatprep.subr.mxu0 %v818
    %881 = vmatpush1.msra.mxu0 %v817
    %882 = vmatprep.subr.mxu0 %v815
    %883 = vmatpush1.msra.mxu0 %v814
    %884 = vmatprep.subr.mxu0 %v812
    %885 = vmatpush1.msra.mxu0 %v811
    %886 = vmatprep.subr.mxu0 %v809
    %887 = vmatpush1.msra.mxu0 %v808
    %888 = vmatprep.subr.mxu0 0.0
    %889 = vmatpush2.msra.mxu0 0.0
    %890 = vmatprep.subr.mxu0 0.0
    %891 = vmatpush2.msra.mxu0 0.0
    %892 = vmatprep.subr.mxu0 0.0
    %893 = vmatpush2.msra.mxu0 0.0
    %894 = vmatprep.subr.mxu0 0.0
    %895 = vmatpush2.msra.mxu0 0.0
    %896 = vmatprep.subr.mxu0 0.0
    %897 = vmatpush2.msra.mxu0 0.0
    %898 = vmatprep.subr.mxu0 0.0
    %899 = vmatpush2.msra.mxu0 0.0
    %900 = vmatprep.subr.mxu0 0.0
    %901 = vmatpush2.msra.mxu0 0.0
    %902 = vmatprep.subr.mxu0 0.0
    %903 = vmatpush2.msra.mxu0 0.0
    %904 = vmatprep.subr.mxu0 0.0
    %905 = vmatpush2.msra.mxu0 0.0
    %906 = vmatprep.subr.mxu0 0.0
    %907 = vmatpush2.msra.mxu0 0.0
    %908 = vmatprep.subr.mxu0 0.0
    %909 = vmatpush2.msra.mxu0 0.0
    %910 = vmatprep.subr.mxu0 0.0
    %911 = vmatpush2.msra.mxu0 0.0
    %912 = vmatprep.subr.mxu0 0.0
    %913 = vmatpush2.msra.mxu0 0.0
    %914 = vmatprep.subr.mxu0 0.0
    %915 = vmatpush2.msra.mxu0 0.0
    %916 = vmatprep.subr.mxu0 0.0
    %917 = vmatpush2.msra.mxu0 0.0
    %918 = vmatprep.subr.mxu0 0.0
    %919 = vmatpush2.msra.mxu0 0.0
    %920 = vmatprep.mubr.f32.mxu0 0.0
    %921 = vmatmul.mubr.f32.gmra.mxu0 0.0
    %v922 = vpop.f32.mrf.mxu0
    %v923 = vadd.f32 0.0, %v922
    %v924 = vpop.f32.mrf.mxu0
    %v925 = vadd.f32 0.0, %v924
    %926 = vdwg.mxu0
    %927 = vmatprep.subr.mxu0 0.0
    %928 = vmatpush1.msra.mxu0 %v855
    %929 = vmatprep.subr.mxu0 0.0
    %930 = vmatpush1.msra.mxu0 %v852
    %931 = vmatprep.subr.mxu0 0.0
    %932 = vmatpush1.msra.mxu0 %v849
    %933 = vmatprep.subr.mxu0 0.0
    %934 = vmatpush1.msra.mxu0 %v846
    %935 = vmatprep.subr.mxu0 0.0
    %936 = vmatpush1.msra.mxu0 %v843
    %937 = vmatprep.subr.mxu0 0.0
    %938 = vmatpush1.msra.mxu0 %v840
    %939 = vmatprep.subr.mxu0 0.0
    %940 = vmatpush1.msra.mxu0 %v837
    %941 = vmatprep.subr.mxu0 0.0
    %942 = vmatpush1.msra.mxu0 %v834
    %943 = vmatprep.subr.mxu0 0.0
    %944 = vmatpush1.msra.mxu0 %v831
    %945 = vmatprep.subr.mxu0 0.0
    %946 = vmatpush1.msra.mxu0 %v828
    %947 = vmatprep.subr.mxu0 0.0
    %948 = vmatpush1.msra.mxu0 %v825
    %949 = vmatprep.subr.mxu0 0.0
    %950 = vmatpush1.msra.mxu0 %v822
    %951 = vmatprep.subr.mxu0 0.0
    %952 = vmatpush1.msra.mxu0 %v819
    %953 = vmatprep.subr.mxu0 0.0
    %954 = vmatpush1.msra.mxu0 %v816
    %955 = vmatprep.subr.mxu0 0.0
    %956 = vmatpush1.msra.mxu0 %v813
    %957 = vmatprep.subr.mxu0 0.0
    %958 = vmatpush1.msra.mxu0 %v810
    %959 = vmatprep.subr.mxu0 0.0
    %960 = vmatpush2.msra.mxu0 0.0
    %961 = vmatprep.subr.mxu0 0.0
    %962 = vmatpush2.msra.mxu0 0.0
    %963 = vmatprep.subr.mxu0 0.0
    %964 = vmatpush2.msra.mxu0 0.0
    %965 = vmatprep.subr.mxu0 0.0
    %966 = vmatpush2.msra.mxu0 0.0
    %967 = vmatprep.subr.mxu0 0.0
    %968 = vmatpush2.msra.mxu0 0.0
    %969 = vmatprep.subr.mxu0 0.0
    %970 = vmatpush2.msra.mxu0 0.0
    %971 = vmatprep.subr.mxu0 0.0
    %972 = vmatpush2.msra.mxu0 0.0
    %973 = vmatprep.subr.mxu0 0.0
    %974 = vmatpush2.msra.mxu0 0.0
    %975 = vmatprep.subr.mxu0 0.0
    %976 = vmatpush2.msra.mxu0 0.0
    %977 = vmatprep.subr.mxu0 0.0
    %978 = vmatpush2.msra.mxu0 0.0
    %979 = vmatprep.subr.mxu0 0.0
    %980 = vmatpush2.msra.mxu0 0.0
    %981 = vmatprep.subr.mxu0 0.0
    %982 = vmatpush2.msra.mxu0 0.0
    %983 = vmatprep.subr.mxu0 0.0
    %984 = vmatpush2.msra.mxu0 0.0
    %985 = vmatprep.subr.mxu0 0.0
    %986 = vmatpush2.msra.mxu0 0.0
    %987 = vmatprep.subr.mxu0 0.0
    %988 = vmatpush2.msra.mxu0 0.0
    %989 = vmatprep.subr.mxu0 0.0
    %990 = vmatpush2.msra.mxu0 0.0
    %991 = vmatprep.mubr.f32.mxu0 0.0
    %992 = vmatmul.mubr.f32.gmra.mxu0 0.0
    %v993 = vpop.f32.mrf.mxu0
    %v994 = vadd.f32 0.0, %v993
    %v995 = vpop.f32.mrf.mxu0
    %996 = vdwg.mxu0
    %v997 = vadd.f32 %v734, %v923
    %v998 = vadd.f32 %v736, %v925
    %v1000 = vlaneseq
    %v1001 = vshrl.u32 %v1000, 7
    %v1002 = vsub.s32 0, %v1001
    %v1003 = vrot.slane %v616, %v1002
    %v1004 = vlaneseq
    %v1005 = vshrl.u32 %v1004, 7
    %v1006 = vsub.s32 1, %v1005
    %v1007 = vrot.slane %v616, %v1006
    %v1010 = vadd.f32 %v997, %v1003
    %v1011 = vadd.f32 %v998, %v1007
    %v1012 = vxor.u32 %v1010, 2147483648
    %v1013 = vxor.u32 %v1011, 2147483648
    %v1014 = vmul.f32 %v1012, 1.442695
    %v1015 = vpow.pop %v1014
    %v1016 = vmul.f32 %v1013, 1.442695
    %v1017 = vpow.pop %v1016
    %v1018 = vadd.f32 %v1015, 1.0
    %v1019 = vadd.f32 %v1017, 1.0
    %v1020 = vrcp.pop %v1018
    %v1021 = vmul.f32 1.0, %v1020
    %v1022 = vrcp.pop %v1019
    %v1023 = vmul.f32 1.0, %v1022
    %v1025 = vlaneseq
    %v1026 = vshrl.u32 %v1025, 7
    %v1027 = vsub.s32 0, %v1026
    %v1028 = vrot.slane %v617, %v1027
    %v1030 = vadd.f32 %v805, %v1028
    %v1032 = vlaneseq
    %v1033 = vshrl.u32 %v1032, 7
    %v1034 = vsub.s32 0, %v1033
    %v1035 = vrot.slane %v618, %v1034
    %v1037 = vadd.f32 %v994, %v1035
    %v1038 = vmul.f32 %v1021, %v1037
    %v1039 = vadd.f32 %v1030, %v1038
    %v1040 = vtanh.pop %v1039
    %v1041 = vsub.f32 1.0, %v1023
    %v1042 = vmul.f32 %v1041, %v1040
    %v1043 = vmul.f32 %v1023, 0.0
    %v1044 = vadd.f32 %v1042, %v1043
    %v1045 = vld [vmem:[#allocation2 + $0x18] sm:$0xff]
    %v1046 = vld [vmem:[#allocation2 + $0x20] sm:$0xff]
    %v1047 = vld [vmem:[#allocation2 + $0x28] sm:$0xff]
    %1048 = vmatprep.subr.mxu0 %v425
    %1049 = vmatpush1.msra.mxu0 %v424
    %1050 = vmatprep.subr.mxu0 %v422
    %1051 = vmatpush1.msra.mxu0 %v421
    %1052 = vmatprep.subr.mxu0 %v419
    %1053 = vmatpush1.msra.mxu0 %v418
    %1054 = vmatprep.subr.mxu0 %v416
    %1055 = vmatpush1.msra.mxu0 %v415
    %1056 = vmatprep.subr.mxu0 %v413
    %1057 = vmatpush1.msra.mxu0 %v412
    %1058 = vmatprep.subr.mxu0 %v410
    %1059 = vmatpush1.msra.mxu0 %v409
    %1060 = vmatprep.subr.mxu0 %v407
    %1061 = vmatpush1.msra.mxu0 %v406
    %1062 = vmatprep.subr.mxu0 %v404
    %1063 = vmatpush1.msra.mxu0 %v403
    %1064 = vmatprep.subr.mxu0 %v401
    %1065 = vmatpush1.msra.mxu0 %v400
    %1066 = vmatprep.subr.mxu0 %v398
    %1067 = vmatpush1.msra.mxu0 %v397
    %1068 = vmatprep.subr.mxu0 %v395
    %1069 = vmatpush1.msra.mxu0 %v394
    %1070 = vmatprep.subr.mxu0 %v392
    %1071 = vmatpush1.msra.mxu0 %v391
    %1072 = vmatprep.subr.mxu0 %v389
    %1073 = vmatpush1.msra.mxu0 %v388
    %1074 = vmatprep.subr.mxu0 %v386
    %1075 = vmatpush1.msra.mxu0 %v385
    %1076 = vmatprep.subr.mxu0 %v383
    %1077 = vmatpush1.msra.mxu0 %v382
    %1078 = vmatprep.subr.mxu0 %v380
    %1079 = vmatpush1.msra.mxu0 %v379
    %1080 = vmatprep.subr.mxu0 0.0
    %1081 = vmatpush2.msra.mxu0 0.0
    %1082 = vmatprep.subr.mxu0 0.0
    %1083 = vmatpush2.msra.mxu0 0.0
    %1084 = vmatprep.subr.mxu0 0.0
    %1085 = vmatpush2.msra.mxu0 0.0
    %1086 = vmatprep.subr.mxu0 0.0
    %1087 = vmatpush2.msra.mxu0 0.0
    %1088 = vmatprep.subr.mxu0 0.0
    %1089 = vmatpush2.msra.mxu0 0.0
    %1090 = vmatprep.subr.mxu0 0.0
    %1091 = vmatpush2.msra.mxu0 0.0
    %1092 = vmatprep.subr.mxu0 0.0
    %1093 = vmatpush2.msra.mxu0 0.0
    %1094 = vmatprep.subr.mxu0 0.0
    %1095 = vmatpush2.msra.mxu0 0.0
    %1096 = vmatprep.subr.mxu0 0.0
    %1097 = vmatpush2.msra.mxu0 0.0
    %1098 = vmatprep.subr.mxu0 0.0
    %1099 = vmatpush2.msra.mxu0 0.0
    %1100 = vmatprep.subr.mxu0 0.0
    %1101 = vmatpush2.msra.mxu0 0.0
    %1102 = vmatprep.subr.mxu0 0.0
    %1103 = vmatpush2.msra.mxu0 0.0
    %1104 = vmatprep.subr.mxu0 0.0
    %1105 = vmatpush2.msra.mxu0 0.0
    %1106 = vmatprep.subr.mxu0 0.0
    %1107 = vmatpush2.msra.mxu0 0.0
    %1108 = vmatprep.subr.mxu0 0.0
    %1109 = vmatpush2.msra.mxu0 0.0
    %1110 = vmatprep.subr.mxu0 0.0
    %1111 = vmatpush2.msra.mxu0 0.0
    %1112 = vmatprep.mubr.f32.mxu0 0.0
    %1113 = vmatmul.mubr.f32.gmra.mxu0 %v615
    %v1114 = vpop.f32.mrf.mxu0
    %v1115 = vadd.f32 0.0, %v1114
    %v1116 = vpop.f32.mrf.mxu0
    %v1117 = vadd.f32 0.0, %v1116
    %1118 = vdwg.mxu0
    %1119 = vmatprep.subr.mxu0 0.0
    %1120 = vmatpush1.msra.mxu0 %v426
    %1121 = vmatprep.subr.mxu0 0.0
    %1122 = vmatpush1.msra.mxu0 %v423
    %1123 = vmatprep.subr.mxu0 0.0
    %1124 = vmatpush1.msra.mxu0 %v420
    %1125 = vmatprep.subr.mxu0 0.0
    %1126 = vmatpush1.msra.mxu0 %v417
    %1127 = vmatprep.subr.mxu0 0.0
    %1128 = vmatpush1.msra.mxu0 %v414
    %1129 = vmatprep.subr.mxu0 0.0
    %1130 = vmatpush1.msra.mxu0 %v411
    %1131 = vmatprep.subr.mxu0 0.0
    %1132 = vmatpush1.msra.mxu0 %v408
    %1133 = vmatprep.subr.mxu0 0.0
    %1134 = vmatpush1.msra.mxu0 %v405
    %1135 = vmatprep.subr.mxu0 0.0
    %1136 = vmatpush1.msra.mxu0 %v402
    %1137 = vmatprep.subr.mxu0 0.0
    %1138 = vmatpush1.msra.mxu0 %v399
    %1139 = vmatprep.subr.mxu0 0.0
    %1140 = vmatpush1.msra.mxu0 %v396
    %1141 = vmatprep.subr.mxu0 0.0
    %1142 = vmatpush1.msra.mxu0 %v393
    %1143 = vmatprep.subr.mxu0 0.0
    %1144 = vmatpush1.msra.mxu0 %v390
    %1145 = vmatprep.subr.mxu0 0.0
    %1146 = vmatpush1.msra.mxu0 %v387
    %1147 = vmatprep.subr.mxu0 0.0
    %1148 = vmatpush1.msra.mxu0 %v384
    %1149 = vmatprep.subr.mxu0 0.0
    %1150 = vmatpush1.msra.mxu0 %v381
    %1151 = vmatprep.subr.mxu0 0.0
    %1152 = vmatpush2.msra.mxu0 0.0
    %1153 = vmatprep.subr.mxu0 0.0
    %1154 = vmatpush2.msra.mxu0 0.0
    %1155 = vmatprep.subr.mxu0 0.0
    %1156 = vmatpush2.msra.mxu0 0.0
    %1157 = vmatprep.subr.mxu0 0.0
    %1158 = vmatpush2.msra.mxu0 0.0
    %1159 = vmatprep.subr.mxu0 0.0
    %1160 = vmatpush2.msra.mxu0 0.0
    %1161 = vmatprep.subr.mxu0 0.0
    %1162 = vmatpush2.msra.mxu0 0.0
    %1163 = vmatprep.subr.mxu0 0.0
    %1164 = vmatpush2.msra.mxu0 0.0
    %1165 = vmatprep.subr.mxu0 0.0
    %1166 = vmatpush2.msra.mxu0 0.0
    %1167 = vmatprep.subr.mxu0 0.0
    %1168 = vmatpush2.msra.mxu0 0.0
    %1169 = vmatprep.subr.mxu0 0.0
    %1170 = vmatpush2.msra.mxu0 0.0
    %1171 = vmatprep.subr.mxu0 0.0
    %1172 = vmatpush2.msra.mxu0 0.0
    %1173 = vmatprep.subr.mxu0 0.0
    %1174 = vmatpush2.msra.mxu0 0.0
    %1175 = vmatprep.subr.mxu0 0.0
    %1176 = vmatpush2.msra.mxu0 0.0
    %1177 = vmatprep.subr.mxu0 0.0
    %1178 = vmatpush2.msra.mxu0 0.0
    %1179 = vmatprep.subr.mxu0 0.0
    %1180 = vmatpush2.msra.mxu0 0.0
    %1181 = vmatprep.subr.mxu0 0.0
    %1182 = vmatpush2.msra.mxu0 0.0
    %1183 = vmatprep.mubr.f32.mxu0 0.0
    %1184 = vmatmul.mubr.f32.gmra.mxu0 %v615
    %v1185 = vpop.f32.mrf.mxu0
    %v1186 = vadd.f32 0.0, %v1185
    %v1187 = vpop.f32.mrf.mxu0
    %1188 = vdwg.mxu0
    %v1189 = vadd.f32 %v1045, %v1115
    %v1190 = vadd.f32 %v1046, %v1117
    %v1191 = vadd.f32 %v1189, %v574
    %v1192 = vadd.f32 %v1190, %v578
    %v1193 = vxor.u32 %v1191, 2147483648
    %v1194 = vxor.u32 %v1192, 2147483648
    %v1195 = vmul.f32 %v1193, 1.442695
    %v1196 = vpow.pop %v1195
    %v1197 = vmul.f32 %v1194, 1.442695
    %v1198 = vpow.pop %v1197
    %v1199 = vadd.f32 %v1196, 1.0
    %v1200 = vadd.f32 %v1198, 1.0
    %v1201 = vrcp.pop %v1199
    %v1202 = vmul.f32 1.0, %v1201
    %v1203 = vrcp.pop %v1200
    %v1204 = vmul.f32 1.0, %v1203
    %v1205 = vadd.f32 %v1047, %v599
    %v1206 = vadd.f32 %v1186, %v606
    %v1207 = vmul.f32 %v1202, %v1206
    %v1208 = vadd.f32 %v1205, %v1207
    %v1209 = vtanh.pop %v1208
    %v1210 = vsub.f32 1.0, %v1204
    %v1211 = vmul.f32 %v1210, %v1209
    %v1212 = vmul.f32 %v1204, %v615
    %v1213 = vadd.f32 %v1211, %v1212
    %1214 = vmatprep.subr.mxu0 %v665
    %1215 = vmatpush1.msra.mxu0 %v664
    %1216 = vmatprep.subr.mxu0 %v662
    %1217 = vmatpush1.msra.mxu0 %v661
    %1218 = vmatprep.subr.mxu0 %v659
    %1219 = vmatpush1.msra.mxu0 %v658
    %1220 = vmatprep.subr.mxu0 %v656
    %1221 = vmatpush1.msra.mxu0 %v655
    %1222 = vmatprep.subr.mxu0 %v653
    %1223 = vmatpush1.msra.mxu0 %v652
    %1224 = vmatprep.subr.mxu0 %v650
    %1225 = vmatpush1.msra.mxu0 %v649
    %1226 = vmatprep.subr.mxu0 %v647
    %1227 = vmatpush1.msra.mxu0 %v646
    %1228 = vmatprep.subr.mxu0 %v644
    %1229 = vmatpush1.msra.mxu0 %v643
    %1230 = vmatprep.subr.mxu0 %v641
    %1231 = vmatpush1.msra.mxu0 %v640
    %1232 = vmatprep.subr.mxu0 %v638
    %1233 = vmatpush1.msra.mxu0 %v637
    %1234 = vmatprep.subr.mxu0 %v635
    %1235 = vmatpush1.msra.mxu0 %v634
    %1236 = vmatprep.subr.mxu0 %v632
    %1237 = vmatpush1.msra.mxu0 %v631
    %1238 = vmatprep.subr.mxu0 %v629
    %1239 = vmatpush1.msra.mxu0 %v628
    %1240 = vmatprep.subr.mxu0 %v626
    %1241 = vmatpush1.msra.mxu0 %v625
    %1242 = vmatprep.subr.mxu0 %v623
    %1243 = vmatpush1.msra.mxu0 %v622
    %1244 = vmatprep.subr.mxu0 %v620
    %1245 = vmatpush1.msra.mxu0 %v619
    %1246 = vmatprep.subr.mxu0 0.0
    %1247 = vmatpush2.msra.mxu0 0.0
    %1248 = vmatprep.subr.mxu0 0.0
    %1249 = vmatpush2.msra.mxu0 0.0
    %1250 = vmatprep.subr.mxu0 0.0
    %1251 = vmatpush2.msra.mxu0 0.0
    %1252 = vmatprep.subr.mxu0 0.0
    %1253 = vmatpush2.msra.mxu0 0.0
    %1254 = vmatprep.subr.mxu0 0.0
    %1255 = vmatpush2.msra.mxu0 0.0
    %1256 = vmatprep.subr.mxu0 0.0
    %1257 = vmatpush2.msra.mxu0 0.0
    %1258 = vmatprep.subr.mxu0 0.0
    %1259 = vmatpush2.msra.mxu0 0.0
    %1260 = vmatprep.subr.mxu0 0.0
    %1261 = vmatpush2.msra.mxu0 0.0
    %1262 = vmatprep.subr.mxu0 0.0
    %1263 = vmatpush2.msra.mxu0 0.0
    %1264 = vmatprep.subr.mxu0 0.0
    %1265 = vmatpush2.msra.mxu0 0.0
    %1266 = vmatprep.subr.mxu0 0.0
    %1267 = vmatpush2.msra.mxu0 0.0
    %1268 = vmatprep.subr.mxu0 0.0
    %1269 = vmatpush2.msra.mxu0 0.0
    %1270 = vmatprep.subr.mxu0 0.0
    %1271 = vmatpush2.msra.mxu0 0.0
    %1272 = vmatprep.subr.mxu0 0.0
    %1273 = vmatpush2.msra.mxu0 0.0
    %1274 = vmatprep.subr.mxu0 0.0
    %1275 = vmatpush2.msra.mxu0 0.0
    %1276 = vmatprep.subr.mxu0 0.0
    %1277 = vmatpush2.msra.mxu0 0.0
    %1278 = vmatprep.mubr.f32.mxu0 0.0
    %1279 = vmatmul.mubr.f32.gmra.mxu0 %v1213
    %v1280 = vpop.f32.mrf.mxu0
    %v1281 = vadd.f32 0.0, %v1280
    %v1282 = vpop.f32.mrf.mxu0
    %v1283 = vadd.f32 0.0, %v1282
    %1284 = vdwg.mxu0
    %1285 = vmatprep.subr.mxu0 0.0
    %1286 = vmatpush1.msra.mxu0 %v666
    %1287 = vmatprep.subr.mxu0 0.0
    %1288 = vmatpush1.msra.mxu0 %v663
    %1289 = vmatprep.subr.mxu0 0.0
    %1290 = vmatpush1.msra.mxu0 %v660
    %1291 = vmatprep.subr.mxu0 0.0
    %1292 = vmatpush1.msra.mxu0 %v657
    %1293 = vmatprep.subr.mxu0 0.0
    %1294 = vmatpush1.msra.mxu0 %v654
    %1295 = vmatprep.subr.mxu0 0.0
    %1296 = vmatpush1.msra.mxu0 %v651
    %1297 = vmatprep.subr.mxu0 0.0
    %1298 = vmatpush1.msra.mxu0 %v648
    %1299 = vmatprep.subr.mxu0 0.0
    %1300 = vmatpush1.msra.mxu0 %v645
    %1301 = vmatprep.subr.mxu0 0.0
    %1302 = vmatpush1.msra.mxu0 %v642
    %1303 = vmatprep.subr.mxu0 0.0
    %1304 = vmatpush1.msra.mxu0 %v639
    %1305 = vmatprep.subr.mxu0 0.0
    %1306 = vmatpush1.msra.mxu0 %v636
    %1307 = vmatprep.subr.mxu0 0.0
    %1308 = vmatpush1.msra.mxu0 %v633
    %1309 = vmatprep.subr.mxu0 0.0
    %1310 = vmatpush1.msra.mxu0 %v630
    %1311 = vmatprep.subr.mxu0 0.0
    %1312 = vmatpush1.msra.mxu0 %v627
    %1313 = vmatprep.subr.mxu0 0.0
    %1314 = vmatpush1.msra.mxu0 %v624
    %1315 = vmatprep.subr.mxu0 0.0
    %1316 = vmatpush1.msra.mxu0 %v621
    %1317 = vmatprep.subr.mxu0 0.0
    %1318 = vmatpush2.msra.mxu0 0.0
    %1319 = vmatprep.subr.mxu0 0.0
    %1320 = vmatpush2.msra.mxu0 0.0
    %1321 = vmatprep.subr.mxu0 0.0
    %1322 = vmatpush2.msra.mxu0 0.0
    %1323 = vmatprep.subr.mxu0 0.0
    %1324 = vmatpush2.msra.mxu0 0.0
    %1325 = vmatprep.subr.mxu0 0.0
    %1326 = vmatpush2.msra.mxu0 0.0
    %1327 = vmatprep.subr.mxu0 0.0
    %1328 = vmatpush2.msra.mxu0 0.0
    %1329 = vmatprep.subr.mxu0 0.0
    %1330 = vmatpush2.msra.mxu0 0.0
    %1331 = vmatprep.subr.mxu0 0.0
    %1332 = vmatpush2.msra.mxu0 0.0
    %1333 = vmatprep.subr.mxu0 0.0
    %1334 = vmatpush2.msra.mxu0 0.0
    %1335 = vmatprep.subr.mxu0 0.0
    %1336 = vmatpush2.msra.mxu0 0.0
    %1337 = vmatprep.subr.mxu0 0.0
    %1338 = vmatpush2.msra.mxu0 0.0
    %1339 = vmatprep.subr.mxu0 0.0
    %1340 = vmatpush2.msra.mxu0 0.0
    %1341 = vmatprep.subr.mxu0 0.0
    %1342 = vmatpush2.msra.mxu0 0.0
    %1343 = vmatprep.subr.mxu0 0.0
    %1344 = vmatpush2.msra.mxu0 0.0
    %1345 = vmatprep.subr.mxu0 0.0
    %1346 = vmatpush2.msra.mxu0 0.0
    %1347 = vmatprep.subr.mxu0 0.0
    %1348 = vmatpush2.msra.mxu0 0.0
    %1349 = vmatprep.mubr.f32.mxu0 0.0
    %1350 = vmatmul.mubr.f32.gmra.mxu0 %v1213
    %v1351 = vpop.f32.mrf.mxu0
    %v1352 = vadd.f32 0.0, %v1351
    %v1353 = vpop.f32.mrf.mxu0
    %1354 = vdwg.mxu0
    %1355 = vmatprep.subr.mxu0 %v854
    %1356 = vmatpush1.msra.mxu0 %v853
    %1357 = vmatprep.subr.mxu0 %v851
    %1358 = vmatpush1.msra.mxu0 %v850
    %1359 = vmatprep.subr.mxu0 %v848
    %1360 = vmatpush1.msra.mxu0 %v847
    %1361 = vmatprep.subr.mxu0 %v845
    %1362 = vmatpush1.msra.mxu0 %v844
    %1363 = vmatprep.subr.mxu0 %v842
    %1364 = vmatpush1.msra.mxu0 %v841
    %1365 = vmatprep.subr.mxu0 %v839
    %1366 = vmatpush1.msra.mxu0 %v838
    %1367 = vmatprep.subr.mxu0 %v836
    %1368 = vmatpush1.msra.mxu0 %v835
    %1369 = vmatprep.subr.mxu0 %v833
    %1370 = vmatpush1.msra.mxu0 %v832
    %1371 = vmatprep.subr.mxu0 %v830
    %1372 = vmatpush1.msra.mxu0 %v829
    %1373 = vmatprep.subr.mxu0 %v827
    %1374 = vmatpush1.msra.mxu0 %v826
    %1375 = vmatprep.subr.mxu0 %v824
    %1376 = vmatpush1.msra.mxu0 %v823
    %1377 = vmatprep.subr.mxu0 %v821
    %1378 = vmatpush1.msra.mxu0 %v820
    %1379 = vmatprep.subr.mxu0 %v818
    %1380 = vmatpush1.msra.mxu0 %v817
    %1381 = vmatprep.subr.mxu0 %v815
    %1382 = vmatpush1.msra.mxu0 %v814
    %1383 = vmatprep.subr.mxu0 %v812
    %1384 = vmatpush1.msra.mxu0 %v811
    %1385 = vmatprep.subr.mxu0 %v809
    %1386 = vmatpush1.msra.mxu0 %v808
    %1387 = vmatprep.subr.mxu0 0.0
    %1388 = vmatpush2.msra.mxu0 0.0
    %1389 = vmatprep.subr.mxu0 0.0
    %1390 = vmatpush2.msra.mxu0 0.0
    %1391 = vmatprep.subr.mxu0 0.0
    %1392 = vmatpush2.msra.mxu0 0.0
    %1393 = vmatprep.subr.mxu0 0.0
    %1394 = vmatpush2.msra.mxu0 0.0
    %1395 = vmatprep.subr.mxu0 0.0
    %1396 = vmatpush2.msra.mxu0 0.0
    %1397 = vmatprep.subr.mxu0 0.0
    %1398 = vmatpush2.msra.mxu0 0.0
    %1399 = vmatprep.subr.mxu0 0.0
    %1400 = vmatpush2.msra.mxu0 0.0
    %1401 = vmatprep.subr.mxu0 0.0
    %1402 = vmatpush2.msra.mxu0 0.0
    %1403 = vmatprep.subr.mxu0 0.0
    %1404 = vmatpush2.msra.mxu0 0.0
    %1405 = vmatprep.subr.mxu0 0.0
    %1406 = vmatpush2.msra.mxu0 0.0
    %1407 = vmatprep.subr.mxu0 0.0
    %1408 = vmatpush2.msra.mxu0 0.0
    %1409 = vmatprep.subr.mxu0 0.0
    %1410 = vmatpush2.msra.mxu0 0.0
    %1411 = vmatprep.subr.mxu0 0.0
    %1412 = vmatpush2.msra.mxu0 0.0
    %1413 = vmatprep.subr.mxu0 0.0
    %1414 = vmatpush2.msra.mxu0 0.0
    %1415 = vmatprep.subr.mxu0 0.0
    %1416 = vmatpush2.msra.mxu0 0.0
    %1417 = vmatprep.subr.mxu0 0.0
    %1418 = vmatpush2.msra.mxu0 0.0
    %1419 = vmatprep.mubr.f32.mxu0 0.0
    %1420 = vmatmul.mubr.f32.gmra.mxu0 %v1044
    %v1421 = vpop.f32.mrf.mxu0
    %v1422 = vadd.f32 0.0, %v1421
    %v1423 = vpop.f32.mrf.mxu0
    %v1424 = vadd.f32 0.0, %v1423
    %1425 = vdwg.mxu0
    %1426 = vmatprep.subr.mxu0 0.0
    %1427 = vmatpush1.msra.mxu0 %v855
    %1428 = vmatprep.subr.mxu0 0.0
    %1429 = vmatpush1.msra.mxu0 %v852
    %1430 = vmatprep.subr.mxu0 0.0
    %1431 = vmatpush1.msra.mxu0 %v849
    %1432 = vmatprep.subr.mxu0 0.0
    %1433 = vmatpush1.msra.mxu0 %v846
    %1434 = vmatprep.subr.mxu0 0.0
    %1435 = vmatpush1.msra.mxu0 %v843
    %1436 = vmatprep.subr.mxu0 0.0
    %1437 = vmatpush1.msra.mxu0 %v840
    %1438 = vmatprep.subr.mxu0 0.0
    %1439 = vmatpush1.msra.mxu0 %v837
    %1440 = vmatprep.subr.mxu0 0.0
    %1441 = vmatpush1.msra.mxu0 %v834
    %1442 = vmatprep.subr.mxu0 0.0
    %1443 = vmatpush1.msra.mxu0 %v831
    %1444 = vmatprep.subr.mxu0 0.0
    %1445 = vmatpush1.msra.mxu0 %v828
    %1446 = vmatprep.subr.mxu0 0.0
    %1447 = vmatpush1.msra.mxu0 %v825
    %1448 = vmatprep.subr.mxu0 0.0
    %1449 = vmatpush1.msra.mxu0 %v822
    %1450 = vmatprep.subr.mxu0 0.0
    %1451 = vmatpush1.msra.mxu0 %v819
    %1452 = vmatprep.subr.mxu0 0.0
    %1453 = vmatpush1.msra.mxu0 %v816
    %1454 = vmatprep.subr.mxu0 0.0
    %1455 = vmatpush1.msra.mxu0 %v813
    %1456 = vmatprep.subr.mxu0 0.0
    %1457 = vmatpush1.msra.mxu0 %v810
    %1458 = vmatprep.subr.mxu0 0.0
    %1459 = vmatpush2.msra.mxu0 0.0
    %1460 = vmatprep.subr.mxu0 0.0
    %1461 = vmatpush2.msra.mxu0 0.0
    %1462 = vmatprep.subr.mxu0 0.0
    %1463 = vmatpush2.msra.mxu0 0.0
    %1464 = vmatprep.subr.mxu0 0.0
    %1465 = vmatpush2.msra.mxu0 0.0
    %1466 = vmatprep.subr.mxu0 0.0
    %1467 = vmatpush2.msra.mxu0 0.0
    %1468 = vmatprep.subr.mxu0 0.0
    %1469 = vmatpush2.msra.mxu0 0.0
    %1470 = vmatprep.subr.mxu0 0.0
    %1471 = vmatpush2.msra.mxu0 0.0
    %1472 = vmatprep.subr.mxu0 0.0
    %1473 = vmatpush2.msra.mxu0 0.0
    %1474 = vmatprep.subr.mxu0 0.0
    %1475 = vmatpush2.msra.mxu0 0.0
    %1476 = vmatprep.subr.mxu0 0.0
    %1477 = vmatpush2.msra.mxu0 0.0
    %1478 = vmatprep.subr.mxu0 0.0
    %1479 = vmatpush2.msra.mxu0 0.0
    %1480 = vmatprep.subr.mxu0 0.0
    %1481 = vmatpush2.msra.mxu0 0.0
    %1482 = vmatprep.subr.mxu0 0.0
    %1483 = vmatpush2.msra.mxu0 0.0
    %1484 = vmatprep.subr.mxu0 0.0
    %1485 = vmatpush2.msra.mxu0 0.0
    %1486 = vmatprep.subr.mxu0 0.0
    %1487 = vmatpush2.msra.mxu0 0.0
    %1488 = vmatprep.subr.mxu0 0.0
    %1489 = vmatpush2.msra.mxu0 0.0
    %1490 = vmatprep.mubr.f32.mxu0 0.0
    %1491 = vmatmul.mubr.f32.gmra.mxu0 %v1044
    %v1492 = vpop.f32.mrf.mxu0
    %v1493 = vadd.f32 0.0, %v1492
    %v1494 = vpop.f32.mrf.mxu0
    %1495 = vdwg.mxu0
    %v1496 = vadd.f32 %v1281, %v1422
    %v1497 = vadd.f32 %v1283, %v1424
    %v1498 = vadd.f32 %v1496, %v1003
    %v1499 = vadd.f32 %v1497, %v1007
    %v1500 = vxor.u32 %v1498, 2147483648
    %v1501 = vxor.u32 %v1499, 2147483648
    %v1502 = vmul.f32 %v1500, 1.442695
    %v1503 = vpow.pop %v1502
    %v1504 = vmul.f32 %v1501, 1.442695
    %v1505 = vpow.pop %v1504
    %v1506 = vadd.f32 %v1503, 1.0
    %v1507 = vadd.f32 %v1505, 1.0
    %v1508 = vrcp.pop %v1506
    %v1509 = vmul.f32 1.0, %v1508
    %v1510 = vrcp.pop %v1507
    %v1511 = vmul.f32 1.0, %v1510
    %v1512 = vadd.f32 %v1352, %v1028
    %v1513 = vadd.f32 %v1493, %v1035
    %v1514 = vmul.f32 %v1509, %v1513
    %v1515 = vadd.f32 %v1512, %v1514
    %v1516 = vtanh.pop %v1515
    %v1517 = vsub.f32 1.0, %v1511
    %v1518 = vmul.f32 %v1517, %v1516
    %v1519 = vmul.f32 %v1511, %v1044
    %v1520 = vadd.f32 %v1518, %v1519
    %v1521 = vld [vmem:[#allocation2 + $0x30] sm:$0xff]
    %v1522 = vld [vmem:[#allocation2 + $0x38] sm:$0xff]
    %v1523 = vld [vmem:[#allocation2 + $0x40] sm:$0xff]
    %1524 = vmatprep.subr.mxu0 %v425
    %1525 = vmatpush1.msra.mxu0 %v424
    %1526 = vmatprep.subr.mxu0 %v422
    %1527 = vmatpush1.msra.mxu0 %v421
    %1528 = vmatprep.subr.mxu0 %v419
    %1529 = vmatpush1.msra.mxu0 %v418
    %1530 = vmatprep.subr.mxu0 %v416
    %1531 = vmatpush1.msra.mxu0 %v415
    %1532 = vmatprep.subr.mxu0 %v413
    %1533 = vmatpush1.msra.mxu0 %v412
    %1534 = vmatprep.subr.mxu0 %v410
    %1535 = vmatpush1.msra.mxu0 %v409
    %1536 = vmatprep.subr.mxu0 %v407
    %1537 = vmatpush1.msra.mxu0 %v406
    %1538 = vmatprep.subr.mxu0 %v404
    %1539 = vmatpush1.msra.mxu0 %v403
    %1540 = vmatprep.subr.mxu0 %v401
    %1541 = vmatpush1.msra.mxu0 %v400
    %1542 = vmatprep.subr.mxu0 %v398
    %1543 = vmatpush1.msra.mxu0 %v397
    %1544 = vmatprep.subr.mxu0 %v395
    %1545 = vmatpush1.msra.mxu0 %v394
    %1546 = vmatprep.subr.mxu0 %v392
    %1547 = vmatpush1.msra.mxu0 %v391
    %1548 = vmatprep.subr.mxu0 %v389
    %1549 = vmatpush1.msra.mxu0 %v388
    %1550 = vmatprep.subr.mxu0 %v386
    %1551 = vmatpush1.msra.mxu0 %v385
    %1552 = vmatprep.subr.mxu0 %v383
    %1553 = vmatpush1.msra.mxu0 %v382
    %1554 = vmatprep.subr.mxu0 %v380
    %1555 = vmatpush1.msra.mxu0 %v379
    %1556 = vmatprep.subr.mxu0 0.0
    %1557 = vmatpush2.msra.mxu0 0.0
    %1558 = vmatprep.subr.mxu0 0.0
    %1559 = vmatpush2.msra.mxu0 0.0
    %1560 = vmatprep.subr.mxu0 0.0
    %1561 = vmatpush2.msra.mxu0 0.0
    %1562 = vmatprep.subr.mxu0 0.0
    %1563 = vmatpush2.msra.mxu0 0.0
    %1564 = vmatprep.subr.mxu0 0.0
    %1565 = vmatpush2.msra.mxu0 0.0
    %1566 = vmatprep.subr.mxu0 0.0
    %1567 = vmatpush2.msra.mxu0 0.0
    %1568 = vmatprep.subr.mxu0 0.0
    %1569 = vmatpush2.msra.mxu0 0.0
    %1570 = vmatprep.subr.mxu0 0.0
    %1571 = vmatpush2.msra.mxu0 0.0
    %1572 = vmatprep.subr.mxu0 0.0
    %1573 = vmatpush2.msra.mxu0 0.0
    %1574 = vmatprep.subr.mxu0 0.0
    %1575 = vmatpush2.msra.mxu0 0.0
    %1576 = vmatprep.subr.mxu0 0.0
    %1577 = vmatpush2.msra.mxu0 0.0
    %1578 = vmatprep.subr.mxu0 0.0
    %1579 = vmatpush2.msra.mxu0 0.0
    %1580 = vmatprep.subr.mxu0 0.0
    %1581 = vmatpush2.msra.mxu0 0.0
    %1582 = vmatprep.subr.mxu0 0.0
    %1583 = vmatpush2.msra.mxu0 0.0
    %1584 = vmatprep.subr.mxu0 0.0
    %1585 = vmatpush2.msra.mxu0 0.0
    %1586 = vmatprep.subr.mxu0 0.0
    %1587 = vmatpush2.msra.mxu0 0.0
    %1588 = vmatprep.mubr.f32.mxu0 0.0
    %1589 = vmatmul.mubr.f32.gmra.mxu0 %v1213
    %v1590 = vpop.f32.mrf.mxu0
    %v1591 = vadd.f32 0.0, %v1590
    %v1592 = vpop.f32.mrf.mxu0
    %v1593 = vadd.f32 0.0, %v1592
    %1594 = vdwg.mxu0
    %1595 = vmatprep.subr.mxu0 0.0
    %1596 = vmatpush1.msra.mxu0 %v426
    %1597 = vmatprep.subr.mxu0 0.0
    %1598 = vmatpush1.msra.mxu0 %v423
    %1599 = vmatprep.subr.mxu0 0.0
    %1600 = vmatpush1.msra.mxu0 %v420
    %1601 = vmatprep.subr.mxu0 0.0
    %1602 = vmatpush1.msra.mxu0 %v417
    %1603 = vmatprep.subr.mxu0 0.0
    %1604 = vmatpush1.msra.mxu0 %v414
    %1605 = vmatprep.subr.mxu0 0.0
    %1606 = vmatpush1.msra.mxu0 %v411
    %1607 = vmatprep.subr.mxu0 0.0
    %1608 = vmatpush1.msra.mxu0 %v408
    %1609 = vmatprep.subr.mxu0 0.0
    %1610 = vmatpush1.msra.mxu0 %v405
    %1611 = vmatprep.subr.mxu0 0.0
    %1612 = vmatpush1.msra.mxu0 %v402
    %1613 = vmatprep.subr.mxu0 0.0
    %1614 = vmatpush1.msra.mxu0 %v399
    %1615 = vmatprep.subr.mxu0 0.0
    %1616 = vmatpush1.msra.mxu0 %v396
    %1617 = vmatprep.subr.mxu0 0.0
    %1618 = vmatpush1.msra.mxu0 %v393
    %1619 = vmatprep.subr.mxu0 0.0
    %1620 = vmatpush1.msra.mxu0 %v390
    %1621 = vmatprep.subr.mxu0 0.0
    %1622 = vmatpush1.msra.mxu0 %v387
    %1623 = vmatprep.subr.mxu0 0.0
    %1624 = vmatpush1.msra.mxu0 %v384
    %1625 = vmatprep.subr.mxu0 0.0
    %1626 = vmatpush1.msra.mxu0 %v381
    %1627 = vmatprep.subr.mxu0 0.0
    %1628 = vmatpush2.msra.mxu0 0.0
    %1629 = vmatprep.subr.mxu0 0.0
    %1630 = vmatpush2.msra.mxu0 0.0
    %1631 = vmatprep.subr.mxu0 0.0
    %1632 = vmatpush2.msra.mxu0 0.0
    %1633 = vmatprep.subr.mxu0 0.0
    %1634 = vmatpush2.msra.mxu0 0.0
    %1635 = vmatprep.subr.mxu0 0.0
    %1636 = vmatpush2.msra.mxu0 0.0
    %1637 = vmatprep.subr.mxu0 0.0
    %1638 = vmatpush2.msra.mxu0 0.0
    %1639 = vmatprep.subr.mxu0 0.0
    %1640 = vmatpush2.msra.mxu0 0.0
    %1641 = vmatprep.subr.mxu0 0.0
    %1642 = vmatpush2.msra.mxu0 0.0
    %1643 = vmatprep.subr.mxu0 0.0
    %1644 = vmatpush2.msra.mxu0 0.0
    %1645 = vmatprep.subr.mxu0 0.0
    %1646 = vmatpush2.msra.mxu0 0.0
    %1647 = vmatprep.subr.mxu0 0.0
    %1648 = vmatpush2.msra.mxu0 0.0
    %1649 = vmatprep.subr.mxu0 0.0
    %1650 = vmatpush2.msra.mxu0 0.0
    %1651 = vmatprep.subr.mxu0 0.0
    %1652 = vmatpush2.msra.mxu0 0.0
    %1653 = vmatprep.subr.mxu0 0.0
    %1654 = vmatpush2.msra.mxu0 0.0
    %1655 = vmatprep.subr.mxu0 0.0
    %1656 = vmatpush2.msra.mxu0 0.0
    %1657 = vmatprep.subr.mxu0 0.0
    %1658 = vmatpush2.msra.mxu0 0.0
    %1659 = vmatprep.mubr.f32.mxu0 0.0
    %1660 = vmatmul.mubr.f32.gmra.mxu0 %v1213
    %v1661 = vpop.f32.mrf.mxu0
    %v1662 = vadd.f32 0.0, %v1661
    %v1663 = vpop.f32.mrf.mxu0
    %1664 = vdwg.mxu0
    %v1665 = vadd.f32 %v1521, %v1591
    %v1666 = vadd.f32 %v1522, %v1593
    %v1667 = vadd.f32 %v1665, %v574
    %v1668 = vadd.f32 %v1666, %v578
    %v1669 = vxor.u32 %v1667, 2147483648
    %v1670 = vxor.u32 %v1668, 2147483648
    %v1671 = vmul.f32 %v1669, 1.442695
    %v1672 = vpow.pop %v1671
    %v1673 = vmul.f32 %v1670, 1.442695
    %v1674 = vpow.pop %v1673
    %v1675 = vadd.f32 %v1672, 1.0
    %v1676 = vadd.f32 %v1674, 1.0
    %v1677 = vrcp.pop %v1675
    %v1678 = vmul.f32 1.0, %v1677
    %v1679 = vrcp.pop %v1676
    %v1680 = vmul.f32 1.0, %v1679
    %v1681 = vadd.f32 %v1523, %v599
    %v1682 = vadd.f32 %v1662, %v606
    %v1683 = vmul.f32 %v1678, %v1682
    %v1684 = vadd.f32 %v1681, %v1683
    %v1685 = vtanh.pop %v1684
    %v1686 = vsub.f32 1.0, %v1680
    %v1687 = vmul.f32 %v1686, %v1685
    %v1688 = vmul.f32 %v1680, %v1213
    %v1689 = vadd.f32 %v1687, %v1688
    %1690 = vmatprep.subr.mxu0 %v665
    %1691 = vmatpush1.msra.mxu0 %v664
    %1692 = vmatprep.subr.mxu0 %v662
    %1693 = vmatpush1.msra.mxu0 %v661
    %1694 = vmatprep.subr.mxu0 %v659
    %1695 = vmatpush1.msra.mxu0 %v658
    %1696 = vmatprep.subr.mxu0 %v656
    %1697 = vmatpush1.msra.mxu0 %v655
    %1698 = vmatprep.subr.mxu0 %v653
    %1699 = vmatpush1.msra.mxu0 %v652
    %1700 = vmatprep.subr.mxu0 %v650
    %1701 = vmatpush1.msra.mxu0 %v649
    %1702 = vmatprep.subr.mxu0 %v647
    %1703 = vmatpush1.msra.mxu0 %v646
    %1704 = vmatprep.subr.mxu0 %v644
    %1705 = vmatpush1.msra.mxu0 %v643
    %1706 = vmatprep.subr.mxu0 %v641
    %1707 = vmatpush1.msra.mxu0 %v640
    %1708 = vmatprep.subr.mxu0 %v638
    %1709 = vmatpush1.msra.mxu0 %v637
    %1710 = vmatprep.subr.mxu0 %v635
    %1711 = vmatpush1.msra.mxu0 %v634
    %1712 = vmatprep.subr.mxu0 %v632
    %1713 = vmatpush1.msra.mxu0 %v631
    %1714 = vmatprep.subr.mxu0 %v629
    %1715 = vmatpush1.msra.mxu0 %v628
    %1716 = vmatprep.subr.mxu0 %v626
    %1717 = vmatpush1.msra.mxu0 %v625
    %1718 = vmatprep.subr.mxu0 %v623
    %1719 = vmatpush1.msra.mxu0 %v622
    %1720 = vmatprep.subr.mxu0 %v620
    %1721 = vmatpush1.msra.mxu0 %v619
    %1722 = vmatprep.subr.mxu0 0.0
    %1723 = vmatpush2.msra.mxu0 0.0
    %1724 = vmatprep.subr.mxu0 0.0
    %1725 = vmatpush2.msra.mxu0 0.0
    %1726 = vmatprep.subr.mxu0 0.0
    %1727 = vmatpush2.msra.mxu0 0.0
    %1728 = vmatprep.subr.mxu0 0.0
    %1729 = vmatpush2.msra.mxu0 0.0
    %1730 = vmatprep.subr.mxu0 0.0
    %1731 = vmatpush2.msra.mxu0 0.0
    %1732 = vmatprep.subr.mxu0 0.0
    %1733 = vmatpush2.msra.mxu0 0.0
    %1734 = vmatprep.subr.mxu0 0.0
    %1735 = vmatpush2.msra.mxu0 0.0
    %1736 = vmatprep.subr.mxu0 0.0
    %1737 = vmatpush2.msra.mxu0 0.0
    %1738 = vmatprep.subr.mxu0 0.0
    %1739 = vmatpush2.msra.mxu0 0.0
    %1740 = vmatprep.subr.mxu0 0.0
    %1741 = vmatpush2.msra.mxu0 0.0
    %1742 = vmatprep.subr.mxu0 0.0
    %1743 = vmatpush2.msra.mxu0 0.0
    %1744 = vmatprep.subr.mxu0 0.0
    %1745 = vmatpush2.msra.mxu0 0.0
    %1746 = vmatprep.subr.mxu0 0.0
    %1747 = vmatpush2.msra.mxu0 0.0
    %1748 = vmatprep.subr.mxu0 0.0
    %1749 = vmatpush2.msra.mxu0 0.0
    %1750 = vmatprep.subr.mxu0 0.0
    %1751 = vmatpush2.msra.mxu0 0.0
    %1752 = vmatprep.subr.mxu0 0.0
    %1753 = vmatpush2.msra.mxu0 0.0
    %1754 = vmatprep.mubr.f32.mxu0 0.0
    %1755 = vmatmul.mubr.f32.gmra.mxu0 %v1689
    %v1756 = vpop.f32.mrf.mxu0
    %v1757 = vadd.f32 0.0, %v1756
    %v1758 = vpop.f32.mrf.mxu0
    %v1759 = vadd.f32 0.0, %v1758
    %1760 = vdwg.mxu0
    %1761 = vmatprep.subr.mxu0 0.0
    %1762 = vmatpush1.msra.mxu0 %v666
    %1763 = vmatprep.subr.mxu0 0.0
    %1764 = vmatpush1.msra.mxu0 %v663
    %1765 = vmatprep.subr.mxu0 0.0
    %1766 = vmatpush1.msra.mxu0 %v660
    %1767 = vmatprep.subr.mxu0 0.0
    %1768 = vmatpush1.msra.mxu0 %v657
    %1769 = vmatprep.subr.mxu0 0.0
    %1770 = vmatpush1.msra.mxu0 %v654
    %1771 = vmatprep.subr.mxu0 0.0
    %1772 = vmatpush1.msra.mxu0 %v651
    %1773 = vmatprep.subr.mxu0 0.0
    %1774 = vmatpush1.msra.mxu0 %v648
    %1775 = vmatprep.subr.mxu0 0.0
    %1776 = vmatpush1.msra.mxu0 %v645
    %1777 = vmatprep.subr.mxu0 0.0
    %1778 = vmatpush1.msra.mxu0 %v642
    %1779 = vmatprep.subr.mxu0 0.0
    %1780 = vmatpush1.msra.mxu0 %v639
    %1781 = vmatprep.subr.mxu0 0.0
    %1782 = vmatpush1.msra.mxu0 %v636
    %1783 = vmatprep.subr.mxu0 0.0
    %1784 = vmatpush1.msra.mxu0 %v633
    %1785 = vmatprep.subr.mxu0 0.0
    %1786 = vmatpush1.msra.mxu0 %v630
    %1787 = vmatprep.subr.mxu0 0.0
    %1788 = vmatpush1.msra.mxu0 %v627
    %1789 = vmatprep.subr.mxu0 0.0
    %1790 = vmatpush1.msra.mxu0 %v624
    %1791 = vmatprep.subr.mxu0 0.0
    %1792 = vmatpush1.msra.mxu0 %v621
    %1793 = vmatprep.subr.mxu0 0.0
    %1794 = vmatpush2.msra.mxu0 0.0
    %1795 = vmatprep.subr.mxu0 0.0
    %1796 = vmatpush2.msra.mxu0 0.0
    %1797 = vmatprep.subr.mxu0 0.0
    %1798 = vmatpush2.msra.mxu0 0.0
    %1799 = vmatprep.subr.mxu0 0.0
    %1800 = vmatpush2.msra.mxu0 0.0
    %1801 = vmatprep.subr.mxu0 0.0
    %1802 = vmatpush2.msra.mxu0 0.0
    %1803 = vmatprep.subr.mxu0 0.0
    %1804 = vmatpush2.msra.mxu0 0.0
    %1805 = vmatprep.subr.mxu0 0.0
    %1806 = vmatpush2.msra.mxu0 0.0
    %1807 = vmatprep.subr.mxu0 0.0
    %1808 = vmatpush2.msra.mxu0 0.0
    %1809 = vmatprep.subr.mxu0 0.0
    %1810 = vmatpush2.msra.mxu0 0.0
    %1811 = vmatprep.subr.mxu0 0.0
    %1812 = vmatpush2.msra.mxu0 0.0
    %1813 = vmatprep.subr.mxu0 0.0
    %1814 = vmatpush2.msra.mxu0 0.0
    %1815 = vmatprep.subr.mxu0 0.0
    %1816 = vmatpush2.msra.mxu0 0.0
    %1817 = vmatprep.subr.mxu0 0.0
    %1818 = vmatpush2.msra.mxu0 0.0
    %1819 = vmatprep.subr.mxu0 0.0
    %1820 = vmatpush2.msra.mxu0 0.0
    %1821 = vmatprep.subr.mxu0 0.0
    %1822 = vmatpush2.msra.mxu0 0.0
    %1823 = vmatprep.subr.mxu0 0.0
    %1824 = vmatpush2.msra.mxu0 0.0
    %1825 = vmatprep.mubr.f32.mxu0 0.0
    %1826 = vmatmul.mubr.f32.gmra.mxu0 %v1689
    %v1827 = vpop.f32.mrf.mxu0
    %v1828 = vadd.f32 0.0, %v1827
    %v1829 = vpop.f32.mrf.mxu0
    %1830 = vdwg.mxu0
    %1831 = vmatprep.subr.mxu0 %v854
    %1832 = vmatpush1.msra.mxu0 %v853
    %1833 = vmatprep.subr.mxu0 %v851
    %1834 = vmatpush1.msra.mxu0 %v850
    %1835 = vmatprep.subr.mxu0 %v848
    %1836 = vmatpush1.msra.mxu0 %v847
    %1837 = vmatprep.subr.mxu0 %v845
    %1838 = vmatpush1.msra.mxu0 %v844
    %1839 = vmatprep.subr.mxu0 %v842
    %1840 = vmatpush1.msra.mxu0 %v841
    %1841 = vmatprep.subr.mxu0 %v839
    %1842 = vmatpush1.msra.mxu0 %v838
    %1843 = vmatprep.subr.mxu0 %v836
    %1844 = vmatpush1.msra.mxu0 %v835
    %1845 = vmatprep.subr.mxu0 %v833
    %1846 = vmatpush1.msra.mxu0 %v832
    %1847 = vmatprep.subr.mxu0 %v830
    %1848 = vmatpush1.msra.mxu0 %v829
    %1849 = vmatprep.subr.mxu0 %v827
    %1850 = vmatpush1.msra.mxu0 %v826
    %1851 = vmatprep.subr.mxu0 %v824
    %1852 = vmatpush1.msra.mxu0 %v823
    %1853 = vmatprep.subr.mxu0 %v821
    %1854 = vmatpush1.msra.mxu0 %v820
    %1855 = vmatprep.subr.mxu0 %v818
    %1856 = vmatpush1.msra.mxu0 %v817
    %1857 = vmatprep.subr.mxu0 %v815
    %1858 = vmatpush1.msra.mxu0 %v814
    %1859 = vmatprep.subr.mxu0 %v812
    %1860 = vmatpush1.msra.mxu0 %v811
    %1861 = vmatprep.subr.mxu0 %v809
    %1862 = vmatpush1.msra.mxu0 %v808
    %1863 = vmatprep.subr.mxu0 0.0
    %1864 = vmatpush2.msra.mxu0 0.0
    %1865 = vmatprep.subr.mxu0 0.0
    %1866 = vmatpush2.msra.mxu0 0.0
    %1867 = vmatprep.subr.mxu0 0.0
    %1868 = vmatpush2.msra.mxu0 0.0
    %1869 = vmatprep.subr.mxu0 0.0
    %1870 = vmatpush2.msra.mxu0 0.0
    %1871 = vmatprep.subr.mxu0 0.0
    %1872 = vmatpush2.msra.mxu0 0.0
    %1873 = vmatprep.subr.mxu0 0.0
    %1874 = vmatpush2.msra.mxu0 0.0
    %1875 = vmatprep.subr.mxu0 0.0
    %1876 = vmatpush2.msra.mxu0 0.0
    %1877 = vmatprep.subr.mxu0 0.0
    %1878 = vmatpush2.msra.mxu0 0.0
    %1879 = vmatprep.subr.mxu0 0.0
    %1880 = vmatpush2.msra.mxu0 0.0
    %1881 = vmatprep.subr.mxu0 0.0
    %1882 = vmatpush2.msra.mxu0 0.0
    %1883 = vmatprep.subr.mxu0 0.0
    %1884 = vmatpush2.msra.mxu0 0.0
    %1885 = vmatprep.subr.mxu0 0.0
    %1886 = vmatpush2.msra.mxu0 0.0
    %1887 = vmatprep.subr.mxu0 0.0
    %1888 = vmatpush2.msra.mxu0 0.0
    %1889 = vmatprep.subr.mxu0 0.0
    %1890 = vmatpush2.msra.mxu0 0.0
    %1891 = vmatprep.subr.mxu0 0.0
    %1892 = vmatpush2.msra.mxu0 0.0
    %1893 = vmatprep.subr.mxu0 0.0
    %1894 = vmatpush2.msra.mxu0 0.0
    %1895 = vmatprep.mubr.f32.mxu0 0.0
    %1896 = vmatmul.mubr.f32.gmra.mxu0 %v1520
    %v1897 = vpop.f32.mrf.mxu0
    %v1898 = vadd.f32 0.0, %v1897
    %v1899 = vpop.f32.mrf.mxu0
    %v1900 = vadd.f32 0.0, %v1899
    %1901 = vdwg.mxu0
    %1902 = vmatprep.subr.mxu0 0.0
    %1903 = vmatpush1.msra.mxu0 %v855
    %1904 = vmatprep.subr.mxu0 0.0
    %1905 = vmatpush1.msra.mxu0 %v852
    %1906 = vmatprep.subr.mxu0 0.0
    %1907 = vmatpush1.msra.mxu0 %v849
    %1908 = vmatprep.subr.mxu0 0.0
    %1909 = vmatpush1.msra.mxu0 %v846
    %1910 = vmatprep.subr.mxu0 0.0
    %1911 = vmatpush1.msra.mxu0 %v843
    %1912 = vmatprep.subr.mxu0 0.0
    %1913 = vmatpush1.msra.mxu0 %v840
    %1914 = vmatprep.subr.mxu0 0.0
    %1915 = vmatpush1.msra.mxu0 %v837
    %1916 = vmatprep.subr.mxu0 0.0
    %1917 = vmatpush1.msra.mxu0 %v834
    %1918 = vmatprep.subr.mxu0 0.0
    %1919 = vmatpush1.msra.mxu0 %v831
    %1920 = vmatprep.subr.mxu0 0.0
    %1921 = vmatpush1.msra.mxu0 %v828
    %1922 = vmatprep.subr.mxu0 0.0
    %1923 = vmatpush1.msra.mxu0 %v825
    %1924 = vmatprep.subr.mxu0 0.0
    %1925 = vmatpush1.msra.mxu0 %v822
    %1926 = vmatprep.subr.mxu0 0.0
    %1927 = vmatpush1.msra.mxu0 %v819
    %1928 = vmatprep.subr.mxu0 0.0
    %1929 = vmatpush1.msra.mxu0 %v816
    %1930 = vmatprep.subr.mxu0 0.0
    %1931 = vmatpush1.msra.mxu0 %v813
    %1932 = vmatprep.subr.mxu0 0.0
    %1933 = vmatpush1.msra.mxu0 %v810
    %1934 = vmatprep.subr.mxu0 0.0
    %1935 = vmatpush2.msra.mxu0 0.0
    %1936 = vmatprep.subr.mxu0 0.0
    %1937 = vmatpush2.msra.mxu0 0.0
    %1938 = vmatprep.subr.mxu0 0.0
    %1939 = vmatpush2.msra.mxu0 0.0
    %1940 = vmatprep.subr.mxu0 0.0
    %1941 = vmatpush2.msra.mxu0 0.0
    %1942 = vmatprep.subr.mxu0 0.0
    %1943 = vmatpush2.msra.mxu0 0.0
    %1944 = vmatprep.subr.mxu0 0.0
    %1945 = vmatpush2.msra.mxu0 0.0
    %1946 = vmatprep.subr.mxu0 0.0
    %1947 = vmatpush2.msra.mxu0 0.0
    %1948 = vmatprep.subr.mxu0 0.0
    %1949 = vmatpush2.msra.mxu0 0.0
    %1950 = vmatprep.subr.mxu0 0.0
    %1951 = vmatpush2.msra.mxu0 0.0
    %1952 = vmatprep.subr.mxu0 0.0
    %1953 = vmatpush2.msra.mxu0 0.0
    %1954 = vmatprep.subr.mxu0 0.0
    %1955 = vmatpush2.msra.mxu0 0.0
    %1956 = vmatprep.subr.mxu0 0.0
    %1957 = vmatpush2.msra.mxu0 0.0
    %1958 = vmatprep.subr.mxu0 0.0
    %1959 = vmatpush2.msra.mxu0 0.0
    %1960 = vmatprep.subr.mxu0 0.0
    %1961 = vmatpush2.msra.mxu0 0.0
    %1962 = vmatprep.subr.mxu0 0.0
    %1963 = vmatpush2.msra.mxu0 0.0
    %1964 = vmatprep.subr.mxu0 0.0
    %1965 = vmatpush2.msra.mxu0 0.0
    %1966 = vmatprep.mubr.f32.mxu0 0.0
    %1967 = vmatmul.mubr.f32.gmra.mxu0 %v1520
    %v1968 = vpop.f32.mrf.mxu0
    %v1969 = vadd.f32 0.0, %v1968
    %v1970 = vpop.f32.mrf.mxu0
    %1971 = vdwg.mxu0
    %v1972 = vadd.f32 %v1757, %v1898
    %v1973 = vadd.f32 %v1759, %v1900
    %v1974 = vadd.f32 %v1972, %v1003
    %v1975 = vadd.f32 %v1973, %v1007
    %v1976 = vxor.u32 %v1974, 2147483648
    %v1977 = vxor.u32 %v1975, 2147483648
    %v1978 = vmul.f32 %v1976, 1.442695
    %v1979 = vpow.pop %v1978
    %v1980 = vmul.f32 %v1977, 1.442695
    %v1981 = vpow.pop %v1980
    %v1982 = vadd.f32 %v1979, 1.0
    %v1983 = vadd.f32 %v1981, 1.0
    %v1984 = vrcp.pop %v1982
    %v1985 = vmul.f32 1.0, %v1984
    %v1986 = vrcp.pop %v1983
    %v1987 = vmul.f32 1.0, %v1986
    %v1988 = vadd.f32 %v1828, %v1028
    %v1989 = vadd.f32 %v1969, %v1035
    %v1990 = vmul.f32 %v1985, %v1989
    %v1991 = vadd.f32 %v1988, %v1990
    %v1992 = vtanh.pop %v1991
    %v1993 = vsub.f32 1.0, %v1987
    %v1994 = vmul.f32 %v1993, %v1992
    %v1995 = vmul.f32 %v1987, %v1520
    %v1996 = vadd.f32 %v1994, %v1995
    %v1997 = vld [vmem:[#allocation2 + $0x48] sm:$0xff]
    %v1998 = vld [vmem:[#allocation2 + $0x50] sm:$0xff]
    %v1999 = vld [vmem:[#allocation2 + $0x58] sm:$0xff]
    %2000 = vmatprep.subr.mxu0 %v425
    %2001 = vmatpush1.msra.mxu0 %v424
    %2002 = vmatprep.subr.mxu0 %v422
    %2003 = vmatpush1.msra.mxu0 %v421
    %2004 = vmatprep.subr.mxu0 %v419
    %2005 = vmatpush1.msra.mxu0 %v418
    %2006 = vmatprep.subr.mxu0 %v416
    %2007 = vmatpush1.msra.mxu0 %v415
    %2008 = vmatprep.subr.mxu0 %v413
    %2009 = vmatpush1.msra.mxu0 %v412
    %2010 = vmatprep.subr.mxu0 %v410
    %2011 = vmatpush1.msra.mxu0 %v409
    %2012 = vmatprep.subr.mxu0 %v407
    %2013 = vmatpush1.msra.mxu0 %v406
    %2014 = vmatprep.subr.mxu0 %v404
    %2015 = vmatpush1.msra.mxu0 %v403
    %2016 = vmatprep.subr.mxu0 %v401
    %2017 = vmatpush1.msra.mxu0 %v400
    %2018 = vmatprep.subr.mxu0 %v398
    %2019 = vmatpush1.msra.mxu0 %v397
    %2020 = vmatprep.subr.mxu0 %v395
    %2021 = vmatpush1.msra.mxu0 %v394
    %2022 = vmatprep.subr.mxu0 %v392
    %2023 = vmatpush1.msra.mxu0 %v391
    %2024 = vmatprep.subr.mxu0 %v389
    %2025 = vmatpush1.msra.mxu0 %v388
    %2026 = vmatprep.subr.mxu0 %v386
    %2027 = vmatpush1.msra.mxu0 %v385
    %2028 = vmatprep.subr.mxu0 %v383
    %2029 = vmatpush1.msra.mxu0 %v382
    %2030 = vmatprep.subr.mxu0 %v380
    %2031 = vmatpush1.msra.mxu0 %v379
    %2032 = vmatprep.subr.mxu0 0.0
    %2033 = vmatpush2.msra.mxu0 0.0
    %2034 = vmatprep.subr.mxu0 0.0
    %2035 = vmatpush2.msra.mxu0 0.0
    %2036 = vmatprep.subr.mxu0 0.0
    %2037 = vmatpush2.msra.mxu0 0.0
    %2038 = vmatprep.subr.mxu0 0.0
    %2039 = vmatpush2.msra.mxu0 0.0
    %2040 = vmatprep.subr.mxu0 0.0
    %2041 = vmatpush2.msra.mxu0 0.0
    %2042 = vmatprep.subr.mxu0 0.0
    %2043 = vmatpush2.msra.mxu0 0.0
    %2044 = vmatprep.subr.mxu0 0.0
    %2045 = vmatpush2.msra.mxu0 0.0
    %2046 = vmatprep.subr.mxu0 0.0
    %2047 = vmatpush2.msra.mxu0 0.0
    %2048 = vmatprep.subr.mxu0 0.0
    %2049 = vmatpush2.msra.mxu0 0.0
    %2050 = vmatprep.subr.mxu0 0.0
    %2051 = vmatpush2.msra.mxu0 0.0
    %2052 = vmatprep.subr.mxu0 0.0
    %2053 = vmatpush2.msra.mxu0 0.0
    %2054 = vmatprep.subr.mxu0 0.0
    %2055 = vmatpush2.msra.mxu0 0.0
    %2056 = vmatprep.subr.mxu0 0.0
    %2057 = vmatpush2.msra.mxu0 0.0
    %2058 = vmatprep.subr.mxu0 0.0
    %2059 = vmatpush2.msra.mxu0 0.0
    %2060 = vmatprep.subr.mxu0 0.0
    %2061 = vmatpush2.msra.mxu0 0.0
    %2062 = vmatprep.subr.mxu0 0.0
    %2063 = vmatpush2.msra.mxu0 0.0
    %2064 = vmatprep.mubr.f32.mxu0 0.0
    %2065 = vmatmul.mubr.f32.gmra.mxu0 %v1689
    %v2066 = vpop.f32.mrf.mxu0
    %v2067 = vadd.f32 0.0, %v2066
    %v2068 = vpop.f32.mrf.mxu0
    %v2069 = vadd.f32 0.0, %v2068
    %2070 = vdwg.mxu0
    %2071 = vmatprep.subr.mxu0 0.0
    %2072 = vmatpush1.msra.mxu0 %v426
    %2073 = vmatprep.subr.mxu0 0.0
    %2074 = vmatpush1.msra.mxu0 %v423
    %2075 = vmatprep.subr.mxu0 0.0
    %2076 = vmatpush1.msra.mxu0 %v420
    %2077 = vmatprep.subr.mxu0 0.0
    %2078 = vmatpush1.msra.mxu0 %v417
    %2079 = vmatprep.subr.mxu0 0.0
    %2080 = vmatpush1.msra.mxu0 %v414
    %2081 = vmatprep.subr.mxu0 0.0
    %2082 = vmatpush1.msra.mxu0 %v411
    %2083 = vmatprep.subr.mxu0 0.0
    %2084 = vmatpush1.msra.mxu0 %v408
    %2085 = vmatprep.subr.mxu0 0.0
    %2086 = vmatpush1.msra.mxu0 %v405
    %2087 = vmatprep.subr.mxu0 0.0
    %2088 = vmatpush1.msra.mxu0 %v402
    %2089 = vmatprep.subr.mxu0 0.0
    %2090 = vmatpush1.msra.mxu0 %v399
    %2091 = vmatprep.subr.mxu0 0.0
    %2092 = vmatpush1.msra.mxu0 %v396
    %2093 = vmatprep.subr.mxu0 0.0
    %2094 = vmatpush1.msra.mxu0 %v393
    %2095 = vmatprep.subr.mxu0 0.0
    %2096 = vmatpush1.msra.mxu0 %v390
    %2097 = vmatprep.subr.mxu0 0.0
    %2098 = vmatpush1.msra.mxu0 %v387
    %2099 = vmatprep.subr.mxu0 0.0
    %2100 = vmatpush1.msra.mxu0 %v384
    %2101 = vmatprep.subr.mxu0 0.0
    %2102 = vmatpush1.msra.mxu0 %v381
    %2103 = vmatprep.subr.mxu0 0.0
    %2104 = vmatpush2.msra.mxu0 0.0
    %2105 = vmatprep.subr.mxu0 0.0
    %2106 = vmatpush2.msra.mxu0 0.0
    %2107 = vmatprep.subr.mxu0 0.0
    %2108 = vmatpush2.msra.mxu0 0.0
    %2109 = vmatprep.subr.mxu0 0.0
    %2110 = vmatpush2.msra.mxu0 0.0
    %2111 = vmatprep.subr.mxu0 0.0
    %2112 = vmatpush2.msra.mxu0 0.0
    %2113 = vmatprep.subr.mxu0 0.0
    %2114 = vmatpush2.msra.mxu0 0.0
    %2115 = vmatprep.subr.mxu0 0.0
    %2116 = vmatpush2.msra.mxu0 0.0
    %2117 = vmatprep.subr.mxu0 0.0
    %2118 = vmatpush2.msra.mxu0 0.0
    %2119 = vmatprep.subr.mxu0 0.0
    %2120 = vmatpush2.msra.mxu0 0.0
    %2121 = vmatprep.subr.mxu0 0.0
    %2122 = vmatpush2.msra.mxu0 0.0
    %2123 = vmatprep.subr.mxu0 0.0
    %2124 = vmatpush2.msra.mxu0 0.0
    %2125 = vmatprep.subr.mxu0 0.0
    %2126 = vmatpush2.msra.mxu0 0.0
    %2127 = vmatprep.subr.mxu0 0.0
    %2128 = vmatpush2.msra.mxu0 0.0
    %2129 = vmatprep.subr.mxu0 0.0
    %2130 = vmatpush2.msra.mxu0 0.0
    %2131 = vmatprep.subr.mxu0 0.0
    %2132 = vmatpush2.msra.mxu0 0.0
    %2133 = vmatprep.subr.mxu0 0.0
    %2134 = vmatpush2.msra.mxu0 0.0
    %2135 = vmatprep.mubr.f32.mxu0 0.0
    %2136 = vmatmul.mubr.f32.gmra.mxu0 %v1689
    %v2137 = vpop.f32.mrf.mxu0
    %v2138 = vadd.f32 0.0, %v2137
    %v2139 = vpop.f32.mrf.mxu0
    %2140 = vdwg.mxu0
    %v2141 = vadd.f32 %v1997, %v2067
    %v2142 = vadd.f32 %v1998, %v2069
    %v2143 = vadd.f32 %v2141, %v574
    %v2144 = vadd.f32 %v2142, %v578
    %v2145 = vxor.u32 %v2143, 2147483648
    %v2146 = vxor.u32 %v2144, 2147483648
    %v2147 = vmul.f32 %v2145, 1.442695
    %v2148 = vpow.pop %v2147
    %v2149 = vmul.f32 %v2146, 1.442695
    %v2150 = vpow.pop %v2149
    %v2151 = vadd.f32 %v2148, 1.0
    %v2152 = vadd.f32 %v2150, 1.0
    %v2153 = vrcp.pop %v2151
    %v2154 = vmul.f32 1.0, %v2153
    %v2155 = vrcp.pop %v2152
    %v2156 = vmul.f32 1.0, %v2155
    %v2157 = vadd.f32 %v1999, %v599
    %v2158 = vadd.f32 %v2138, %v606
    %v2159 = vmul.f32 %v2154, %v2158
    %v2160 = vadd.f32 %v2157, %v2159
    %v2161 = vtanh.pop %v2160
    %v2162 = vsub.f32 1.0, %v2156
    %v2163 = vmul.f32 %v2162, %v2161
    %v2164 = vmul.f32 %v2156, %v1689
    %v2165 = vadd.f32 %v2163, %v2164
    %2166 = vmatprep.subr.mxu0 %v665
    %2167 = vmatpush1.msra.mxu0 %v664
    %2168 = vmatprep.subr.mxu0 %v662
    %2169 = vmatpush1.msra.mxu0 %v661
    %2170 = vmatprep.subr.mxu0 %v659
    %2171 = vmatpush1.msra.mxu0 %v658
    %2172 = vmatprep.subr.mxu0 %v656
    %2173 = vmatpush1.msra.mxu0 %v655
    %2174 = vmatprep.subr.mxu0 %v653
    %2175 = vmatpush1.msra.mxu0 %v652
    %2176 = vmatprep.subr.mxu0 %v650
    %2177 = vmatpush1.msra.mxu0 %v649
    %2178 = vmatprep.subr.mxu0 %v647
    %2179 = vmatpush1.msra.mxu0 %v646
    %2180 = vmatprep.subr.mxu0 %v644
    %2181 = vmatpush1.msra.mxu0 %v643
    %2182 = vmatprep.subr.mxu0 %v641
    %2183 = vmatpush1.msra.mxu0 %v640
    %2184 = vmatprep.subr.mxu0 %v638
    %2185 = vmatpush1.msra.mxu0 %v637
    %2186 = vmatprep.subr.mxu0 %v635
    %2187 = vmatpush1.msra.mxu0 %v634
    %2188 = vmatprep.subr.mxu0 %v632
    %2189 = vmatpush1.msra.mxu0 %v631
    %2190 = vmatprep.subr.mxu0 %v629
    %2191 = vmatpush1.msra.mxu0 %v628
    %2192 = vmatprep.subr.mxu0 %v626
    %2193 = vmatpush1.msra.mxu0 %v625
    %2194 = vmatprep.subr.mxu0 %v623
    %2195 = vmatpush1.msra.mxu0 %v622
    %2196 = vmatprep.subr.mxu0 %v620
    %2197 = vmatpush1.msra.mxu0 %v619
    %2198 = vmatprep.subr.mxu0 0.0
    %2199 = vmatpush2.msra.mxu0 0.0
    %2200 = vmatprep.subr.mxu0 0.0
    %2201 = vmatpush2.msra.mxu0 0.0
    %2202 = vmatprep.subr.mxu0 0.0
    %2203 = vmatpush2.msra.mxu0 0.0
    %2204 = vmatprep.subr.mxu0 0.0
    %2205 = vmatpush2.msra.mxu0 0.0
    %2206 = vmatprep.subr.mxu0 0.0
    %2207 = vmatpush2.msra.mxu0 0.0
    %2208 = vmatprep.subr.mxu0 0.0
    %2209 = vmatpush2.msra.mxu0 0.0
    %2210 = vmatprep.subr.mxu0 0.0
    %2211 = vmatpush2.msra.mxu0 0.0
    %2212 = vmatprep.subr.mxu0 0.0
    %2213 = vmatpush2.msra.mxu0 0.0
    %2214 = vmatprep.subr.mxu0 0.0
    %2215 = vmatpush2.msra.mxu0 0.0
    %2216 = vmatprep.subr.mxu0 0.0
    %2217 = vmatpush2.msra.mxu0 0.0
    %2218 = vmatprep.subr.mxu0 0.0
    %2219 = vmatpush2.msra.mxu0 0.0
    %2220 = vmatprep.subr.mxu0 0.0
    %2221 = vmatpush2.msra.mxu0 0.0
    %2222 = vmatprep.subr.mxu0 0.0
    %2223 = vmatpush2.msra.mxu0 0.0
    %2224 = vmatprep.subr.mxu0 0.0
    %2225 = vmatpush2.msra.mxu0 0.0
    %2226 = vmatprep.subr.mxu0 0.0
    %2227 = vmatpush2.msra.mxu0 0.0
    %2228 = vmatprep.subr.mxu0 0.0
    %2229 = vmatpush2.msra.mxu0 0.0
    %2230 = vmatprep.mubr.f32.mxu0 0.0
    %2231 = vmatmul.mubr.f32.gmra.mxu0 %v2165
    %v2232 = vpop.f32.mrf.mxu0
    %v2233 = vadd.f32 0.0, %v2232
    %v2234 = vpop.f32.mrf.mxu0
    %v2235 = vadd.f32 0.0, %v2234
    %2236 = vdwg.mxu0
    %2237 = vmatprep.subr.mxu0 0.0
    %2238 = vmatpush1.msra.mxu0 %v666
    %2239 = vmatprep.subr.mxu0 0.0
    %2240 = vmatpush1.msra.mxu0 %v663
    %2241 = vmatprep.subr.mxu0 0.0
    %2242 = vmatpush1.msra.mxu0 %v660
    %2243 = vmatprep.subr.mxu0 0.0
    %2244 = vmatpush1.msra.mxu0 %v657
    %2245 = vmatprep.subr.mxu0 0.0
    %2246 = vmatpush1.msra.mxu0 %v654
    %2247 = vmatprep.subr.mxu0 0.0
    %2248 = vmatpush1.msra.mxu0 %v651
    %2249 = vmatprep.subr.mxu0 0.0
    %2250 = vmatpush1.msra.mxu0 %v648
    %2251 = vmatprep.subr.mxu0 0.0
    %2252 = vmatpush1.msra.mxu0 %v645
    %2253 = vmatprep.subr.mxu0 0.0
    %2254 = vmatpush1.msra.mxu0 %v642
    %2255 = vmatprep.subr.mxu0 0.0
    %2256 = vmatpush1.msra.mxu0 %v639
    %2257 = vmatprep.subr.mxu0 0.0
    %2258 = vmatpush1.msra.mxu0 %v636
    %2259 = vmatprep.subr.mxu0 0.0
    %2260 = vmatpush1.msra.mxu0 %v633
    %2261 = vmatprep.subr.mxu0 0.0
    %2262 = vmatpush1.msra.mxu0 %v630
    %2263 = vmatprep.subr.mxu0 0.0
    %2264 = vmatpush1.msra.mxu0 %v627
    %2265 = vmatprep.subr.mxu0 0.0
    %2266 = vmatpush1.msra.mxu0 %v624
    %2267 = vmatprep.subr.mxu0 0.0
    %2268 = vmatpush1.msra.mxu0 %v621
    %2269 = vmatprep.subr.mxu0 0.0
    %2270 = vmatpush2.msra.mxu0 0.0
    %2271 = vmatprep.subr.mxu0 0.0
    %2272 = vmatpush2.msra.mxu0 0.0
    %2273 = vmatprep.subr.mxu0 0.0
    %2274 = vmatpush2.msra.mxu0 0.0
    %2275 = vmatprep.subr.mxu0 0.0
    %2276 = vmatpush2.msra.mxu0 0.0
    %2277 = vmatprep.subr.mxu0 0.0
    %2278 = vmatpush2.msra.mxu0 0.0
    %2279 = vmatprep.subr.mxu0 0.0
    %2280 = vmatpush2.msra.mxu0 0.0
    %2281 = vmatprep.subr.mxu0 0.0
    %2282 = vmatpush2.msra.mxu0 0.0
    %2283 = vmatprep.subr.mxu0 0.0
    %2284 = vmatpush2.msra.mxu0 0.0
    %2285 = vmatprep.subr.mxu0 0.0
    %2286 = vmatpush2.msra.mxu0 0.0
    %2287 = vmatprep.subr.mxu0 0.0
    %2288 = vmatpush2.msra.mxu0 0.0
    %2289 = vmatprep.subr.mxu0 0.0
    %2290 = vmatpush2.msra.mxu0 0.0
    %2291 = vmatprep.subr.mxu0 0.0
    %2292 = vmatpush2.msra.mxu0 0.0
    %2293 = vmatprep.subr.mxu0 0.0
    %2294 = vmatpush2.msra.mxu0 0.0
    %2295 = vmatprep.subr.mxu0 0.0
    %2296 = vmatpush2.msra.mxu0 0.0
    %2297 = vmatprep.subr.mxu0 0.0
    %2298 = vmatpush2.msra.mxu0 0.0
    %2299 = vmatprep.subr.mxu0 0.0
    %2300 = vmatpush2.msra.mxu0 0.0
    %2301 = vmatprep.mubr.f32.mxu0 0.0
    %2302 = vmatmul.mubr.f32.gmra.mxu0 %v2165
    %v2303 = vpop.f32.mrf.mxu0
    %v2304 = vadd.f32 0.0, %v2303
    %v2305 = vpop.f32.mrf.mxu0
    %2306 = vdwg.mxu0
    %2307 = vmatprep.subr.mxu0 %v854
    %2308 = vmatpush1.msra.mxu0 %v853
    %2309 = vmatprep.subr.mxu0 %v851
    %2310 = vmatpush1.msra.mxu0 %v850
    %2311 = vmatprep.subr.mxu0 %v848
    %2312 = vmatpush1.msra.mxu0 %v847
    %2313 = vmatprep.subr.mxu0 %v845
    %2314 = vmatpush1.msra.mxu0 %v844
    %2315 = vmatprep.subr.mxu0 %v842
    %2316 = vmatpush1.msra.mxu0 %v841
    %2317 = vmatprep.subr.mxu0 %v839
    %2318 = vmatpush1.msra.mxu0 %v838
    %2319 = vmatprep.subr.mxu0 %v836
    %2320 = vmatpush1.msra.mxu0 %v835
    %2321 = vmatprep.subr.mxu0 %v833
    %2322 = vmatpush1.msra.mxu0 %v832
    %2323 = vmatprep.subr.mxu0 %v830
    %2324 = vmatpush1.msra.mxu0 %v829
    %2325 = vmatprep.subr.mxu0 %v827
    %2326 = vmatpush1.msra.mxu0 %v826
    %2327 = vmatprep.subr.mxu0 %v824
    %2328 = vmatpush1.msra.mxu0 %v823
    %2329 = vmatprep.subr.mxu0 %v821
    %2330 = vmatpush1.msra.mxu0 %v820
    %2331 = vmatprep.subr.mxu0 %v818
    %2332 = vmatpush1.msra.mxu0 %v817
    %2333 = vmatprep.subr.mxu0 %v815
    %2334 = vmatpush1.msra.mxu0 %v814
    %2335 = vmatprep.subr.mxu0 %v812
    %2336 = vmatpush1.msra.mxu0 %v811
    %2337 = vmatprep.subr.mxu0 %v809
    %2338 = vmatpush1.msra.mxu0 %v808
    %2339 = vmatprep.subr.mxu0 0.0
    %2340 = vmatpush2.msra.mxu0 0.0
    %2341 = vmatprep.subr.mxu0 0.0
    %2342 = vmatpush2.msra.mxu0 0.0
    %2343 = vmatprep.subr.mxu0 0.0
    %2344 = vmatpush2.msra.mxu0 0.0
    %2345 = vmatprep.subr.mxu0 0.0
    %2346 = vmatpush2.msra.mxu0 0.0
    %2347 = vmatprep.subr.mxu0 0.0
    %2348 = vmatpush2.msra.mxu0 0.0
    %2349 = vmatprep.subr.mxu0 0.0
    %2350 = vmatpush2.msra.mxu0 0.0
    %2351 = vmatprep.subr.mxu0 0.0
    %2352 = vmatpush2.msra.mxu0 0.0
    %2353 = vmatprep.subr.mxu0 0.0
    %2354 = vmatpush2.msra.mxu0 0.0
    %2355 = vmatprep.subr.mxu0 0.0
    %2356 = vmatpush2.msra.mxu0 0.0
    %2357 = vmatprep.subr.mxu0 0.0
    %2358 = vmatpush2.msra.mxu0 0.0
    %2359 = vmatprep.subr.mxu0 0.0
    %2360 = vmatpush2.msra.mxu0 0.0
    %2361 = vmatprep.subr.mxu0 0.0
    %2362 = vmatpush2.msra.mxu0 0.0
    %2363 = vmatprep.subr.mxu0 0.0
    %2364 = vmatpush2.msra.mxu0 0.0
    %2365 = vmatprep.subr.mxu0 0.0
    %2366 = vmatpush2.msra.mxu0 0.0
    %2367 = vmatprep.subr.mxu0 0.0
    %2368 = vmatpush2.msra.mxu0 0.0
    %2369 = vmatprep.subr.mxu0 0.0
    %2370 = vmatpush2.msra.mxu0 0.0
    %2371 = vmatprep.mubr.f32.mxu0 0.0
    %2372 = vmatmul.mubr.f32.gmra.mxu0 %v1996
    %v2373 = vpop.f32.mrf.mxu0
    %v2374 = vadd.f32 0.0, %v2373
    %v2375 = vpop.f32.mrf.mxu0
    %v2376 = vadd.f32 0.0, %v2375
    %2377 = vdwg.mxu0
    %2378 = vmatprep.subr.mxu0 0.0
    %2379 = vmatpush1.msra.mxu0 %v855
    %2380 = vmatprep.subr.mxu0 0.0
    %2381 = vmatpush1.msra.mxu0 %v852
    %2382 = vmatprep.subr.mxu0 0.0
    %2383 = vmatpush1.msra.mxu0 %v849
    %2384 = vmatprep.subr.mxu0 0.0
    %2385 = vmatpush1.msra.mxu0 %v846
    %2386 = vmatprep.subr.mxu0 0.0
    %2387 = vmatpush1.msra.mxu0 %v843
    %2388 = vmatprep.subr.mxu0 0.0
    %2389 = vmatpush1.msra.mxu0 %v840
    %2390 = vmatprep.subr.mxu0 0.0
    %2391 = vmatpush1.msra.mxu0 %v837
    %2392 = vmatprep.subr.mxu0 0.0
    %2393 = vmatpush1.msra.mxu0 %v834
    %2394 = vmatprep.subr.mxu0 0.0
    %2395 = vmatpush1.msra.mxu0 %v831
    %2396 = vmatprep.subr.mxu0 0.0
    %2397 = vmatpush1.msra.mxu0 %v828
    %2398 = vmatprep.subr.mxu0 0.0
    %2399 = vmatpush1.msra.mxu0 %v825
    %2400 = vmatprep.subr.mxu0 0.0
    %2401 = vmatpush1.msra.mxu0 %v822
    %2402 = vmatprep.subr.mxu0 0.0
    %2403 = vmatpush1.msra.mxu0 %v819
    %2404 = vmatprep.subr.mxu0 0.0
    %2405 = vmatpush1.msra.mxu0 %v816
    %2406 = vmatprep.subr.mxu0 0.0
    %2407 = vmatpush1.msra.mxu0 %v813
    %2408 = vmatprep.subr.mxu0 0.0
    %2409 = vmatpush1.msra.mxu0 %v810
    %2410 = vmatprep.subr.mxu0 0.0
    %2411 = vmatpush2.msra.mxu0 0.0
    %2412 = vmatprep.subr.mxu0 0.0
    %2413 = vmatpush2.msra.mxu0 0.0
    %2414 = vmatprep.subr.mxu0 0.0
    %2415 = vmatpush2.msra.mxu0 0.0
    %2416 = vmatprep.subr.mxu0 0.0
    %2417 = vmatpush2.msra.mxu0 0.0
    %2418 = vmatprep.subr.mxu0 0.0
    %2419 = vmatpush2.msra.mxu0 0.0
    %2420 = vmatprep.subr.mxu0 0.0
    %2421 = vmatpush2.msra.mxu0 0.0
    %2422 = vmatprep.subr.mxu0 0.0
    %2423 = vmatpush2.msra.mxu0 0.0
    %2424 = vmatprep.subr.mxu0 0.0
    %2425 = vmatpush2.msra.mxu0 0.0
    %2426 = vmatprep.subr.mxu0 0.0
    %2427 = vmatpush2.msra.mxu0 0.0
    %2428 = vmatprep.subr.mxu0 0.0
    %2429 = vmatpush2.msra.mxu0 0.0
    %2430 = vmatprep.subr.mxu0 0.0
    %2431 = vmatpush2.msra.mxu0 0.0
    %2432 = vmatprep.subr.mxu0 0.0
    %2433 = vmatpush2.msra.mxu0 0.0
    %2434 = vmatprep.subr.mxu0 0.0
    %2435 = vmatpush2.msra.mxu0 0.0
    %2436 = vmatprep.subr.mxu0 0.0
    %2437 = vmatpush2.msra.mxu0 0.0
    %2438 = vmatprep.subr.mxu0 0.0
    %2439 = vmatpush2.msra.mxu0 0.0
    %2440 = vmatprep.subr.mxu0 0.0
    %2441 = vmatpush2.msra.mxu0 0.0
    %2442 = vmatprep.mubr.f32.mxu0 0.0
    %2443 = vmatmul.mubr.f32.gmra.mxu0 %v1996
    %v2444 = vpop.f32.mrf.mxu0
    %v2445 = vadd.f32 0.0, %v2444
    %v2446 = vpop.f32.mrf.mxu0
    %2447 = vdwg.mxu0
    %v2448 = vadd.f32 %v2233, %v2374
    %v2449 = vadd.f32 %v2235, %v2376
    %v2450 = vadd.f32 %v2448, %v1003
    %v2451 = vadd.f32 %v2449, %v1007
    %v2452 = vxor.u32 %v2450, 2147483648
    %v2453 = vxor.u32 %v2451, 2147483648
    %v2454 = vmul.f32 %v2452, 1.442695
    %v2455 = vpow.pop %v2454
    %v2456 = vmul.f32 %v2453, 1.442695
    %v2457 = vpow.pop %v2456
    %v2458 = vadd.f32 %v2455, 1.0
    %v2459 = vadd.f32 %v2457, 1.0
    %v2460 = vrcp.pop %v2458
    %v2461 = vmul.f32 1.0, %v2460
    %v2462 = vrcp.pop %v2459
    %v2463 = vmul.f32 1.0, %v2462
    %v2464 = vadd.f32 %v2304, %v1028
    %v2465 = vadd.f32 %v2445, %v1035
    %v2466 = vmul.f32 %v2461, %v2465
    %v2467 = vadd.f32 %v2464, %v2466
    %v2468 = vtanh.pop %v2467
    %v2469 = vsub.f32 1.0, %v2463
    %v2470 = vmul.f32 %v2469, %v2468
    %v2471 = vmul.f32 %v2463, %v1996
    %v2472 = vadd.f32 %v2470, %v2471
    %v2473 = vld [vmem:[#allocation2 + $0x60] sm:$0xff]
    %v2474 = vld [vmem:[#allocation2 + $0x68] sm:$0xff]
    %v2475 = vld [vmem:[#allocation2 + $0x70] sm:$0xff]
    %2476 = vmatprep.subr.mxu0 %v425
    %2477 = vmatpush1.msra.mxu0 %v424
    %2478 = vmatprep.subr.mxu0 %v422
    %2479 = vmatpush1.msra.mxu0 %v421
    %2480 = vmatprep.subr.mxu0 %v419
    %2481 = vmatpush1.msra.mxu0 %v418
    %2482 = vmatprep.subr.mxu0 %v416
    %2483 = vmatpush1.msra.mxu0 %v415
    %2484 = vmatprep.subr.mxu0 %v413
    %2485 = vmatpush1.msra.mxu0 %v412
    %2486 = vmatprep.subr.mxu0 %v410
    %2487 = vmatpush1.msra.mxu0 %v409
    %2488 = vmatprep.subr.mxu0 %v407
    %2489 = vmatpush1.msra.mxu0 %v406
    %2490 = vmatprep.subr.mxu0 %v404
    %2491 = vmatpush1.msra.mxu0 %v403
    %2492 = vmatprep.subr.mxu0 %v401
    %2493 = vmatpush1.msra.mxu0 %v400
    %2494 = vmatprep.subr.mxu0 %v398
    %2495 = vmatpush1.msra.mxu0 %v397
    %2496 = vmatprep.subr.mxu0 %v395
    %2497 = vmatpush1.msra.mxu0 %v394
    %2498 = vmatprep.subr.mxu0 %v392
    %2499 = vmatpush1.msra.mxu0 %v391
    %2500 = vmatprep.subr.mxu0 %v389
    %2501 = vmatpush1.msra.mxu0 %v388
    %2502 = vmatprep.subr.mxu0 %v386
    %2503 = vmatpush1.msra.mxu0 %v385
    %2504 = vmatprep.subr.mxu0 %v383
    %2505 = vmatpush1.msra.mxu0 %v382
    %2506 = vmatprep.subr.mxu0 %v380
    %2507 = vmatpush1.msra.mxu0 %v379
    %2508 = vmatprep.subr.mxu0 0.0
    %2509 = vmatpush2.msra.mxu0 0.0
    %2510 = vmatprep.subr.mxu0 0.0
    %2511 = vmatpush2.msra.mxu0 0.0
    %2512 = vmatprep.subr.mxu0 0.0
    %2513 = vmatpush2.msra.mxu0 0.0
    %2514 = vmatprep.subr.mxu0 0.0
    %2515 = vmatpush2.msra.mxu0 0.0
    %2516 = vmatprep.subr.mxu0 0.0
    %2517 = vmatpush2.msra.mxu0 0.0
    %2518 = vmatprep.subr.mxu0 0.0
    %2519 = vmatpush2.msra.mxu0 0.0
    %2520 = vmatprep.subr.mxu0 0.0
    %2521 = vmatpush2.msra.mxu0 0.0
    %2522 = vmatprep.subr.mxu0 0.0
    %2523 = vmatpush2.msra.mxu0 0.0
    %2524 = vmatprep.subr.mxu0 0.0
    %2525 = vmatpush2.msra.mxu0 0.0
    %2526 = vmatprep.subr.mxu0 0.0
    %2527 = vmatpush2.msra.mxu0 0.0
    %2528 = vmatprep.subr.mxu0 0.0
    %2529 = vmatpush2.msra.mxu0 0.0
    %2530 = vmatprep.subr.mxu0 0.0
    %2531 = vmatpush2.msra.mxu0 0.0
    %2532 = vmatprep.subr.mxu0 0.0
    %2533 = vmatpush2.msra.mxu0 0.0
    %2534 = vmatprep.subr.mxu0 0.0
    %2535 = vmatpush2.msra.mxu0 0.0
    %2536 = vmatprep.subr.mxu0 0.0
    %2537 = vmatpush2.msra.mxu0 0.0
    %2538 = vmatprep.subr.mxu0 0.0
    %2539 = vmatpush2.msra.mxu0 0.0
    %2540 = vmatprep.mubr.f32.mxu0 0.0
    %2541 = vmatmul.mubr.f32.gmra.mxu0 %v2165
    %v2542 = vpop.f32.mrf.mxu0
    %v2543 = vadd.f32 0.0, %v2542
    %v2544 = vpop.f32.mrf.mxu0
    %v2545 = vadd.f32 0.0, %v2544
    %2546 = vdwg.mxu0
    %2547 = vmatprep.subr.mxu0 0.0
    %2548 = vmatpush1.msra.mxu0 %v426
    %2549 = vmatprep.subr.mxu0 0.0
    %2550 = vmatpush1.msra.mxu0 %v423
    %2551 = vmatprep.subr.mxu0 0.0
    %2552 = vmatpush1.msra.mxu0 %v420
    %2553 = vmatprep.subr.mxu0 0.0
    %2554 = vmatpush1.msra.mxu0 %v417
    %2555 = vmatprep.subr.mxu0 0.0
    %2556 = vmatpush1.msra.mxu0 %v414
    %2557 = vmatprep.subr.mxu0 0.0
    %2558 = vmatpush1.msra.mxu0 %v411
    %2559 = vmatprep.subr.mxu0 0.0
    %2560 = vmatpush1.msra.mxu0 %v408
    %2561 = vmatprep.subr.mxu0 0.0
    %2562 = vmatpush1.msra.mxu0 %v405
    %2563 = vmatprep.subr.mxu0 0.0
    %2564 = vmatpush1.msra.mxu0 %v402
    %2565 = vmatprep.subr.mxu0 0.0
    %2566 = vmatpush1.msra.mxu0 %v399
    %2567 = vmatprep.subr.mxu0 0.0
    %2568 = vmatpush1.msra.mxu0 %v396
    %2569 = vmatprep.subr.mxu0 0.0
    %2570 = vmatpush1.msra.mxu0 %v393
    %2571 = vmatprep.subr.mxu0 0.0
    %2572 = vmatpush1.msra.mxu0 %v390
    %2573 = vmatprep.subr.mxu0 0.0
    %2574 = vmatpush1.msra.mxu0 %v387
    %2575 = vmatprep.subr.mxu0 0.0
    %2576 = vmatpush1.msra.mxu0 %v384
    %2577 = vmatprep.subr.mxu0 0.0
    %2578 = vmatpush1.msra.mxu0 %v381
    %2579 = vmatprep.subr.mxu0 0.0
    %2580 = vmatpush2.msra.mxu0 0.0
    %2581 = vmatprep.subr.mxu0 0.0
    %2582 = vmatpush2.msra.mxu0 0.0
    %2583 = vmatprep.subr.mxu0 0.0
    %2584 = vmatpush2.msra.mxu0 0.0
    %2585 = vmatprep.subr.mxu0 0.0
    %2586 = vmatpush2.msra.mxu0 0.0
    %2587 = vmatprep.subr.mxu0 0.0
    %2588 = vmatpush2.msra.mxu0 0.0
    %2589 = vmatprep.subr.mxu0 0.0
    %2590 = vmatpush2.msra.mxu0 0.0
    %2591 = vmatprep.subr.mxu0 0.0
    %2592 = vmatpush2.msra.mxu0 0.0
    %2593 = vmatprep.subr.mxu0 0.0
    %2594 = vmatpush2.msra.mxu0 0.0
    %2595 = vmatprep.subr.mxu0 0.0
    %2596 = vmatpush2.msra.mxu0 0.0
    %2597 = vmatprep.subr.mxu0 0.0
    %2598 = vmatpush2.msra.mxu0 0.0
    %2599 = vmatprep.subr.mxu0 0.0
    %2600 = vmatpush2.msra.mxu0 0.0
    %2601 = vmatprep.subr.mxu0 0.0
    %2602 = vmatpush2.msra.mxu0 0.0
    %2603 = vmatprep.subr.mxu0 0.0
    %2604 = vmatpush2.msra.mxu0 0.0
    %2605 = vmatprep.subr.mxu0 0.0
    %2606 = vmatpush2.msra.mxu0 0.0
    %2607 = vmatprep.subr.mxu0 0.0
    %2608 = vmatpush2.msra.mxu0 0.0
    %2609 = vmatprep.subr.mxu0 0.0
    %2610 = vmatpush2.msra.mxu0 0.0
    %2611 = vmatprep.mubr.f32.mxu0 0.0
    %2612 = vmatmul.mubr.f32.gmra.mxu0 %v2165
    %v2613 = vpop.f32.mrf.mxu0
    %v2614 = vadd.f32 0.0, %v2613
    %v2615 = vpop.f32.mrf.mxu0
    %2616 = vdwg.mxu0
    %v2617 = vadd.f32 %v2473, %v2543
    %v2618 = vadd.f32 %v2474, %v2545
    %v2619 = vadd.f32 %v2617, %v574
    %v2620 = vadd.f32 %v2618, %v578
    %v2621 = vxor.u32 %v2619, 2147483648
    %v2622 = vxor.u32 %v2620, 2147483648
    %v2623 = vmul.f32 %v2621, 1.442695
    %v2624 = vpow.pop %v2623
    %v2625 = vmul.f32 %v2622, 1.442695
    %v2626 = vpow.pop %v2625
    %v2627 = vadd.f32 %v2624, 1.0
    %v2628 = vadd.f32 %v2626, 1.0
    %v2629 = vrcp.pop %v2627
    %v2630 = vmul.f32 1.0, %v2629
    %v2631 = vrcp.pop %v2628
    %v2632 = vmul.f32 1.0, %v2631
    %v2633 = vadd.f32 %v2475, %v599
    %v2634 = vadd.f32 %v2614, %v606
    %v2635 = vmul.f32 %v2630, %v2634
    %v2636 = vadd.f32 %v2633, %v2635
    %v2637 = vtanh.pop %v2636
    %v2638 = vsub.f32 1.0, %v2632
    %v2639 = vmul.f32 %v2638, %v2637
    %v2640 = vmul.f32 %v2632, %v2165
    %v2641 = vadd.f32 %v2639, %v2640
    %2642 = vmatprep.subr.mxu0 %v665
    %2643 = vmatpush1.msra.mxu0 %v664
    %2644 = vmatprep.subr.mxu0 %v662
    %2645 = vmatpush1.msra.mxu0 %v661
    %2646 = vmatprep.subr.mxu0 %v659
    %2647 = vmatpush1.msra.mxu0 %v658
    %2648 = vmatprep.subr.mxu0 %v656
    %2649 = vmatpush1.msra.mxu0 %v655
    %2650 = vmatprep.subr.mxu0 %v653
    %2651 = vmatpush1.msra.mxu0 %v652
    %2652 = vmatprep.subr.mxu0 %v650
    %2653 = vmatpush1.msra.mxu0 %v649
    %2654 = vmatprep.subr.mxu0 %v647
    %2655 = vmatpush1.msra.mxu0 %v646
    %2656 = vmatprep.subr.mxu0 %v644
    %2657 = vmatpush1.msra.mxu0 %v643
    %2658 = vmatprep.subr.mxu0 %v641
    %2659 = vmatpush1.msra.mxu0 %v640
    %2660 = vmatprep.subr.mxu0 %v638
    %2661 = vmatpush1.msra.mxu0 %v637
    %2662 = vmatprep.subr.mxu0 %v635
    %2663 = vmatpush1.msra.mxu0 %v634
    %2664 = vmatprep.subr.mxu0 %v632
    %2665 = vmatpush1.msra.mxu0 %v631
    %2666 = vmatprep.subr.mxu0 %v629
    %2667 = vmatpush1.msra.mxu0 %v628
    %2668 = vmatprep.subr.mxu0 %v626
    %2669 = vmatpush1.msra.mxu0 %v625
    %2670 = vmatprep.subr.mxu0 %v623
    %2671 = vmatpush1.msra.mxu0 %v622
    %2672 = vmatprep.subr.mxu0 %v620
    %2673 = vmatpush1.msra.mxu0 %v619
    %2674 = vmatprep.subr.mxu0 0.0
    %2675 = vmatpush2.msra.mxu0 0.0
    %2676 = vmatprep.subr.mxu0 0.0
    %2677 = vmatpush2.msra.mxu0 0.0
    %2678 = vmatprep.subr.mxu0 0.0
    %2679 = vmatpush2.msra.mxu0 0.0
    %2680 = vmatprep.subr.mxu0 0.0
    %2681 = vmatpush2.msra.mxu0 0.0
    %2682 = vmatprep.subr.mxu0 0.0
    %2683 = vmatpush2.msra.mxu0 0.0
    %2684 = vmatprep.subr.mxu0 0.0
    %2685 = vmatpush2.msra.mxu0 0.0
    %2686 = vmatprep.subr.mxu0 0.0
    %2687 = vmatpush2.msra.mxu0 0.0
    %2688 = vmatprep.subr.mxu0 0.0
    %2689 = vmatpush2.msra.mxu0 0.0
    %2690 = vmatprep.subr.mxu0 0.0
    %2691 = vmatpush2.msra.mxu0 0.0
    %2692 = vmatprep.subr.mxu0 0.0
    %2693 = vmatpush2.msra.mxu0 0.0
    %2694 = vmatprep.subr.mxu0 0.0
    %2695 = vmatpush2.msra.mxu0 0.0
    %2696 = vmatprep.subr.mxu0 0.0
    %2697 = vmatpush2.msra.mxu0 0.0
    %2698 = vmatprep.subr.mxu0 0.0
    %2699 = vmatpush2.msra.mxu0 0.0
    %2700 = vmatprep.subr.mxu0 0.0
    %2701 = vmatpush2.msra.mxu0 0.0
    %2702 = vmatprep.subr.mxu0 0.0
    %2703 = vmatpush2.msra.mxu0 0.0
    %2704 = vmatprep.subr.mxu0 0.0
    %2705 = vmatpush2.msra.mxu0 0.0
    %2706 = vmatprep.mubr.f32.mxu0 0.0
    %2707 = vmatmul.mubr.f32.gmra.mxu0 %v2641
    %v2708 = vpop.f32.mrf.mxu0
    %v2709 = vadd.f32 0.0, %v2708
    %v2710 = vpop.f32.mrf.mxu0
    %v2711 = vadd.f32 0.0, %v2710
    %2712 = vdwg.mxu0
    %2713 = vmatprep.subr.mxu0 0.0
    %2714 = vmatpush1.msra.mxu0 %v666
    %2715 = vmatprep.subr.mxu0 0.0
    %2716 = vmatpush1.msra.mxu0 %v663
    %2717 = vmatprep.subr.mxu0 0.0
    %2718 = vmatpush1.msra.mxu0 %v660
    %2719 = vmatprep.subr.mxu0 0.0
    %2720 = vmatpush1.msra.mxu0 %v657
    %2721 = vmatprep.subr.mxu0 0.0
    %2722 = vmatpush1.msra.mxu0 %v654
    %2723 = vmatprep.subr.mxu0 0.0
    %2724 = vmatpush1.msra.mxu0 %v651
    %2725 = vmatprep.subr.mxu0 0.0
    %2726 = vmatpush1.msra.mxu0 %v648
    %2727 = vmatprep.subr.mxu0 0.0
    %2728 = vmatpush1.msra.mxu0 %v645
    %2729 = vmatprep.subr.mxu0 0.0
    %2730 = vmatpush1.msra.mxu0 %v642
    %2731 = vmatprep.subr.mxu0 0.0
    %2732 = vmatpush1.msra.mxu0 %v639
    %2733 = vmatprep.subr.mxu0 0.0
    %2734 = vmatpush1.msra.mxu0 %v636
    %2735 = vmatprep.subr.mxu0 0.0
    %2736 = vmatpush1.msra.mxu0 %v633
    %2737 = vmatprep.subr.mxu0 0.0
    %2738 = vmatpush1.msra.mxu0 %v630
    %2739 = vmatprep.subr.mxu0 0.0
    %2740 = vmatpush1.msra.mxu0 %v627
    %2741 = vmatprep.subr.mxu0 0.0
    %2742 = vmatpush1.msra.mxu0 %v624
    %2743 = vmatprep.subr.mxu0 0.0
    %2744 = vmatpush1.msra.mxu0 %v621
    %2745 = vmatprep.subr.mxu0 0.0
    %2746 = vmatpush2.msra.mxu0 0.0
    %2747 = vmatprep.subr.mxu0 0.0
    %2748 = vmatpush2.msra.mxu0 0.0
    %2749 = vmatprep.subr.mxu0 0.0
    %2750 = vmatpush2.msra.mxu0 0.0
    %2751 = vmatprep.subr.mxu0 0.0
    %2752 = vmatpush2.msra.mxu0 0.0
    %2753 = vmatprep.subr.mxu0 0.0
    %2754 = vmatpush2.msra.mxu0 0.0
    %2755 = vmatprep.subr.mxu0 0.0
    %2756 = vmatpush2.msra.mxu0 0.0
    %2757 = vmatprep.subr.mxu0 0.0
    %2758 = vmatpush2.msra.mxu0 0.0
    %2759 = vmatprep.subr.mxu0 0.0
    %2760 = vmatpush2.msra.mxu0 0.0
    %2761 = vmatprep.subr.mxu0 0.0
    %2762 = vmatpush2.msra.mxu0 0.0
    %2763 = vmatprep.subr.mxu0 0.0
    %2764 = vmatpush2.msra.mxu0 0.0
    %2765 = vmatprep.subr.mxu0 0.0
    %2766 = vmatpush2.msra.mxu0 0.0
    %2767 = vmatprep.subr.mxu0 0.0
    %2768 = vmatpush2.msra.mxu0 0.0
    %2769 = vmatprep.subr.mxu0 0.0
    %2770 = vmatpush2.msra.mxu0 0.0
    %2771 = vmatprep.subr.mxu0 0.0
    %2772 = vmatpush2.msra.mxu0 0.0
    %2773 = vmatprep.subr.mxu0 0.0
    %2774 = vmatpush2.msra.mxu0 0.0
    %2775 = vmatprep.subr.mxu0 0.0
    %2776 = vmatpush2.msra.mxu0 0.0
    %2777 = vmatprep.mubr.f32.mxu0 0.0
    %2778 = vmatmul.mubr.f32.gmra.mxu0 %v2641
    %v2779 = vpop.f32.mrf.mxu0
    %v2780 = vadd.f32 0.0, %v2779
    %v2781 = vpop.f32.mrf.mxu0
    %2782 = vdwg.mxu0
    %2783 = vmatprep.subr.mxu0 %v854
    %2784 = vmatpush1.msra.mxu0 %v853
    %2785 = vmatprep.subr.mxu0 %v851
    %2786 = vmatpush1.msra.mxu0 %v850
    %2787 = vmatprep.subr.mxu0 %v848
    %2788 = vmatpush1.msra.mxu0 %v847
    %2789 = vmatprep.subr.mxu0 %v845
    %2790 = vmatpush1.msra.mxu0 %v844
    %2791 = vmatprep.subr.mxu0 %v842
    %2792 = vmatpush1.msra.mxu0 %v841
    %2793 = vmatprep.subr.mxu0 %v839
    %2794 = vmatpush1.msra.mxu0 %v838
    %2795 = vmatprep.subr.mxu0 %v836
    %2796 = vmatpush1.msra.mxu0 %v835
    %2797 = vmatprep.subr.mxu0 %v833
    %2798 = vmatpush1.msra.mxu0 %v832
    %2799 = vmatprep.subr.mxu0 %v830
    %2800 = vmatpush1.msra.mxu0 %v829
    %2801 = vmatprep.subr.mxu0 %v827
    %2802 = vmatpush1.msra.mxu0 %v826
    %2803 = vmatprep.subr.mxu0 %v824
    %2804 = vmatpush1.msra.mxu0 %v823
    %2805 = vmatprep.subr.mxu0 %v821
    %2806 = vmatpush1.msra.mxu0 %v820
    %2807 = vmatprep.subr.mxu0 %v818
    %2808 = vmatpush1.msra.mxu0 %v817
    %2809 = vmatprep.subr.mxu0 %v815
    %2810 = vmatpush1.msra.mxu0 %v814
    %2811 = vmatprep.subr.mxu0 %v812
    %2812 = vmatpush1.msra.mxu0 %v811
    %2813 = vmatprep.subr.mxu0 %v809
    %2814 = vmatpush1.msra.mxu0 %v808
    %2815 = vmatprep.subr.mxu0 0.0
    %2816 = vmatpush2.msra.mxu0 0.0
    %2817 = vmatprep.subr.mxu0 0.0
    %2818 = vmatpush2.msra.mxu0 0.0
    %2819 = vmatprep.subr.mxu0 0.0
    %2820 = vmatpush2.msra.mxu0 0.0
    %2821 = vmatprep.subr.mxu0 0.0
    %2822 = vmatpush2.msra.mxu0 0.0
    %2823 = vmatprep.subr.mxu0 0.0
    %2824 = vmatpush2.msra.mxu0 0.0
    %2825 = vmatprep.subr.mxu0 0.0
    %2826 = vmatpush2.msra.mxu0 0.0
    %2827 = vmatprep.subr.mxu0 0.0
    %2828 = vmatpush2.msra.mxu0 0.0
    %2829 = vmatprep.subr.mxu0 0.0
    %2830 = vmatpush2.msra.mxu0 0.0
    %2831 = vmatprep.subr.mxu0 0.0
    %2832 = vmatpush2.msra.mxu0 0.0
    %2833 = vmatprep.subr.mxu0 0.0
    %2834 = vmatpush2.msra.mxu0 0.0
    %2835 = vmatprep.subr.mxu0 0.0
    %2836 = vmatpush2.msra.mxu0 0.0
    %2837 = vmatprep.subr.mxu0 0.0
    %2838 = vmatpush2.msra.mxu0 0.0
    %2839 = vmatprep.subr.mxu0 0.0
    %2840 = vmatpush2.msra.mxu0 0.0
    %2841 = vmatprep.subr.mxu0 0.0
    %2842 = vmatpush2.msra.mxu0 0.0
    %2843 = vmatprep.subr.mxu0 0.0
    %2844 = vmatpush2.msra.mxu0 0.0
    %2845 = vmatprep.subr.mxu0 0.0
    %2846 = vmatpush2.msra.mxu0 0.0
    %2847 = vmatprep.mubr.f32.mxu0 0.0
    %2848 = vmatmul.mubr.f32.gmra.mxu0 %v2472
    %v2849 = vpop.f32.mrf.mxu0
    %v2850 = vadd.f32 0.0, %v2849
    %v2851 = vpop.f32.mrf.mxu0
    %v2852 = vadd.f32 0.0, %v2851
    %2853 = vdwg.mxu0
    %2854 = vmatprep.subr.mxu0 0.0
    %2855 = vmatpush1.msra.mxu0 %v855
    %2856 = vmatprep.subr.mxu0 0.0
    %2857 = vmatpush1.msra.mxu0 %v852
    %2858 = vmatprep.subr.mxu0 0.0
    %2859 = vmatpush1.msra.mxu0 %v849
    %2860 = vmatprep.subr.mxu0 0.0
    %2861 = vmatpush1.msra.mxu0 %v846
    %2862 = vmatprep.subr.mxu0 0.0
    %2863 = vmatpush1.msra.mxu0 %v843
    %2864 = vmatprep.subr.mxu0 0.0
    %2865 = vmatpush1.msra.mxu0 %v840
    %2866 = vmatprep.subr.mxu0 0.0
    %2867 = vmatpush1.msra.mxu0 %v837
    %2868 = vmatprep.subr.mxu0 0.0
    %2869 = vmatpush1.msra.mxu0 %v834
    %2870 = vmatprep.subr.mxu0 0.0
    %2871 = vmatpush1.msra.mxu0 %v831
    %2872 = vmatprep.subr.mxu0 0.0
    %2873 = vmatpush1.msra.mxu0 %v828
    %2874 = vmatprep.subr.mxu0 0.0
    %2875 = vmatpush1.msra.mxu0 %v825
    %2876 = vmatprep.subr.mxu0 0.0
    %2877 = vmatpush1.msra.mxu0 %v822
    %2878 = vmatprep.subr.mxu0 0.0
    %2879 = vmatpush1.msra.mxu0 %v819
    %2880 = vmatprep.subr.mxu0 0.0
    %2881 = vmatpush1.msra.mxu0 %v816
    %2882 = vmatprep.subr.mxu0 0.0
    %2883 = vmatpush1.msra.mxu0 %v813
    %2884 = vmatprep.subr.mxu0 0.0
    %2885 = vmatpush1.msra.mxu0 %v810
    %2886 = vmatprep.subr.mxu0 0.0
    %2887 = vmatpush2.msra.mxu0 0.0
    %2888 = vmatprep.subr.mxu0 0.0
    %2889 = vmatpush2.msra.mxu0 0.0
    %2890 = vmatprep.subr.mxu0 0.0
    %2891 = vmatpush2.msra.mxu0 0.0
    %2892 = vmatprep.subr.mxu0 0.0
    %2893 = vmatpush2.msra.mxu0 0.0
    %2894 = vmatprep.subr.mxu0 0.0
    %2895 = vmatpush2.msra.mxu0 0.0
    %2896 = vmatprep.subr.mxu0 0.0
    %2897 = vmatpush2.msra.mxu0 0.0
    %2898 = vmatprep.subr.mxu0 0.0
    %2899 = vmatpush2.msra.mxu0 0.0
    %2900 = vmatprep.subr.mxu0 0.0
    %2901 = vmatpush2.msra.mxu0 0.0
    %2902 = vmatprep.subr.mxu0 0.0
    %2903 = vmatpush2.msra.mxu0 0.0
    %2904 = vmatprep.subr.mxu0 0.0
    %2905 = vmatpush2.msra.mxu0 0.0
    %2906 = vmatprep.subr.mxu0 0.0
    %2907 = vmatpush2.msra.mxu0 0.0
    %2908 = vmatprep.subr.mxu0 0.0
    %2909 = vmatpush2.msra.mxu0 0.0
    %2910 = vmatprep.subr.mxu0 0.0
    %2911 = vmatpush2.msra.mxu0 0.0
    %2912 = vmatprep.subr.mxu0 0.0
    %2913 = vmatpush2.msra.mxu0 0.0
    %2914 = vmatprep.subr.mxu0 0.0
    %2915 = vmatpush2.msra.mxu0 0.0
    %2916 = vmatprep.subr.mxu0 0.0
    %2917 = vmatpush2.msra.mxu0 0.0
    %2918 = vmatprep.mubr.f32.mxu0 0.0
    %2919 = vmatmul.mubr.f32.gmra.mxu0 %v2472
    %v2920 = vpop.f32.mrf.mxu0
    %v2921 = vadd.f32 0.0, %v2920
    %v2922 = vpop.f32.mrf.mxu0
    %2923 = vdwg.mxu0
    %v2924 = vadd.f32 %v2709, %v2850
    %v2925 = vadd.f32 %v2711, %v2852
    %v2926 = vadd.f32 %v2924, %v1003
    %v2927 = vadd.f32 %v2925, %v1007
    %v2928 = vxor.u32 %v2926, 2147483648
    %v2929 = vxor.u32 %v2927, 2147483648
    %v2930 = vmul.f32 %v2928, 1.442695
    %v2931 = vpow.pop %v2930
    %v2932 = vmul.f32 %v2929, 1.442695
    %v2933 = vpow.pop %v2932
    %v2934 = vadd.f32 %v2931, 1.0
    %v2935 = vadd.f32 %v2933, 1.0
    %v2936 = vrcp.pop %v2934
    %v2937 = vmul.f32 1.0, %v2936
    %v2938 = vrcp.pop %v2935
    %v2939 = vmul.f32 1.0, %v2938
    %v2940 = vadd.f32 %v2780, %v1028
    %v2941 = vadd.f32 %v2921, %v1035
    %v2942 = vmul.f32 %v2937, %v2941
    %v2943 = vadd.f32 %v2940, %v2942
    %v2944 = vtanh.pop %v2943
    %v2945 = vsub.f32 1.0, %v2939
    %v2946 = vmul.f32 %v2945, %v2944
    %v2947 = vmul.f32 %v2939, %v2472
    %v2948 = vadd.f32 %v2946, %v2947
    %v2949 = vld [vmem:[#allocation2 + $0x78] sm:$0xff]
    %v2950 = vld [vmem:[#allocation2 + $0x80] sm:$0xff]
    %v2951 = vld [vmem:[#allocation2 + $0x88] sm:$0xff]
    %2952 = vmatprep.subr.mxu0 %v425
    %2953 = vmatpush1.msra.mxu0 %v424
    %2954 = vmatprep.subr.mxu0 %v422
    %2955 = vmatpush1.msra.mxu0 %v421
    %2956 = vmatprep.subr.mxu0 %v419
    %2957 = vmatpush1.msra.mxu0 %v418
    %2958 = vmatprep.subr.mxu0 %v416
    %2959 = vmatpush1.msra.mxu0 %v415
    %2960 = vmatprep.subr.mxu0 %v413
    %2961 = vmatpush1.msra.mxu0 %v412
    %2962 = vmatprep.subr.mxu0 %v410
    %2963 = vmatpush1.msra.mxu0 %v409
    %2964 = vmatprep.subr.mxu0 %v407
    %2965 = vmatpush1.msra.mxu0 %v406
    %2966 = vmatprep.subr.mxu0 %v404
    %2967 = vmatpush1.msra.mxu0 %v403
    %2968 = vmatprep.subr.mxu0 %v401
    %2969 = vmatpush1.msra.mxu0 %v400
    %2970 = vmatprep.subr.mxu0 %v398
    %2971 = vmatpush1.msra.mxu0 %v397
    %2972 = vmatprep.subr.mxu0 %v395
    %2973 = vmatpush1.msra.mxu0 %v394
    %2974 = vmatprep.subr.mxu0 %v392
    %2975 = vmatpush1.msra.mxu0 %v391
    %2976 = vmatprep.subr.mxu0 %v389
    %2977 = vmatpush1.msra.mxu0 %v388
    %2978 = vmatprep.subr.mxu0 %v386
    %2979 = vmatpush1.msra.mxu0 %v385
    %2980 = vmatprep.subr.mxu0 %v383
    %2981 = vmatpush1.msra.mxu0 %v382
    %2982 = vmatprep.subr.mxu0 %v380
    %2983 = vmatpush1.msra.mxu0 %v379
    %2984 = vmatprep.subr.mxu0 0.0
    %2985 = vmatpush2.msra.mxu0 0.0
    %2986 = vmatprep.subr.mxu0 0.0
    %2987 = vmatpush2.msra.mxu0 0.0
    %2988 = vmatprep.subr.mxu0 0.0
    %2989 = vmatpush2.msra.mxu0 0.0
    %2990 = vmatprep.subr.mxu0 0.0
    %2991 = vmatpush2.msra.mxu0 0.0
    %2992 = vmatprep.subr.mxu0 0.0
    %2993 = vmatpush2.msra.mxu0 0.0
    %2994 = vmatprep.subr.mxu0 0.0
    %2995 = vmatpush2.msra.mxu0 0.0
    %2996 = vmatprep.subr.mxu0 0.0
    %2997 = vmatpush2.msra.mxu0 0.0
    %2998 = vmatprep.subr.mxu0 0.0
    %2999 = vmatpush2.msra.mxu0 0.0
    %3000 = vmatprep.subr.mxu0 0.0
    %3001 = vmatpush2.msra.mxu0 0.0
    %3002 = vmatprep.subr.mxu0 0.0
    %3003 = vmatpush2.msra.mxu0 0.0
    %3004 = vmatprep.subr.mxu0 0.0
    %3005 = vmatpush2.msra.mxu0 0.0
    %3006 = vmatprep.subr.mxu0 0.0
    %3007 = vmatpush2.msra.mxu0 0.0
    %3008 = vmatprep.subr.mxu0 0.0
    %3009 = vmatpush2.msra.mxu0 0.0
    %3010 = vmatprep.subr.mxu0 0.0
    %3011 = vmatpush2.msra.mxu0 0.0
    %3012 = vmatprep.subr.mxu0 0.0
    %3013 = vmatpush2.msra.mxu0 0.0
    %3014 = vmatprep.subr.mxu0 0.0
    %3015 = vmatpush2.msra.mxu0 0.0
    %3016 = vmatprep.mubr.f32.mxu0 0.0
    %3017 = vmatmul.mubr.f32.gmra.mxu0 %v2641
    %v3018 = vpop.f32.mrf.mxu0
    %v3019 = vadd.f32 0.0, %v3018
    %v3020 = vpop.f32.mrf.mxu0
    %v3021 = vadd.f32 0.0, %v3020
    %3022 = vdwg.mxu0
    %3023 = vmatprep.subr.mxu0 0.0
    %3024 = vmatpush1.msra.mxu0 %v426
    %3025 = vmatprep.subr.mxu0 0.0
    %3026 = vmatpush1.msra.mxu0 %v423
    %3027 = vmatprep.subr.mxu0 0.0
    %3028 = vmatpush1.msra.mxu0 %v420
    %3029 = vmatprep.subr.mxu0 0.0
    %3030 = vmatpush1.msra.mxu0 %v417
    %3031 = vmatprep.subr.mxu0 0.0
    %3032 = vmatpush1.msra.mxu0 %v414
    %3033 = vmatprep.subr.mxu0 0.0
    %3034 = vmatpush1.msra.mxu0 %v411
    %3035 = vmatprep.subr.mxu0 0.0
    %3036 = vmatpush1.msra.mxu0 %v408
    %3037 = vmatprep.subr.mxu0 0.0
    %3038 = vmatpush1.msra.mxu0 %v405
    %3039 = vmatprep.subr.mxu0 0.0
    %3040 = vmatpush1.msra.mxu0 %v402
    %3041 = vmatprep.subr.mxu0 0.0
    %3042 = vmatpush1.msra.mxu0 %v399
    %3043 = vmatprep.subr.mxu0 0.0
    %3044 = vmatpush1.msra.mxu0 %v396
    %3045 = vmatprep.subr.mxu0 0.0
    %3046 = vmatpush1.msra.mxu0 %v393
    %3047 = vmatprep.subr.mxu0 0.0
    %3048 = vmatpush1.msra.mxu0 %v390
    %3049 = vmatprep.subr.mxu0 0.0
    %3050 = vmatpush1.msra.mxu0 %v387
    %3051 = vmatprep.subr.mxu0 0.0
    %3052 = vmatpush1.msra.mxu0 %v384
    %3053 = vmatprep.subr.mxu0 0.0
    %3054 = vmatpush1.msra.mxu0 %v381
    %3055 = vmatprep.subr.mxu0 0.0
    %3056 = vmatpush2.msra.mxu0 0.0
    %3057 = vmatprep.subr.mxu0 0.0
    %3058 = vmatpush2.msra.mxu0 0.0
    %3059 = vmatprep.subr.mxu0 0.0
    %3060 = vmatpush2.msra.mxu0 0.0
    %3061 = vmatprep.subr.mxu0 0.0
    %3062 = vmatpush2.msra.mxu0 0.0
    %3063 = vmatprep.subr.mxu0 0.0
    %3064 = vmatpush2.msra.mxu0 0.0
    %3065 = vmatprep.subr.mxu0 0.0
    %3066 = vmatpush2.msra.mxu0 0.0
    %3067 = vmatprep.subr.mxu0 0.0
    %3068 = vmatpush2.msra.mxu0 0.0
    %3069 = vmatprep.subr.mxu0 0.0
    %3070 = vmatpush2.msra.mxu0 0.0
    %3071 = vmatprep.subr.mxu0 0.0
    %3072 = vmatpush2.msra.mxu0 0.0
    %3073 = vmatprep.subr.mxu0 0.0
    %3074 = vmatpush2.msra.mxu0 0.0
    %3075 = vmatprep.subr.mxu0 0.0
    %3076 = vmatpush2.msra.mxu0 0.0
    %3077 = vmatprep.subr.mxu0 0.0
    %3078 = vmatpush2.msra.mxu0 0.0
    %3079 = vmatprep.subr.mxu0 0.0
    %3080 = vmatpush2.msra.mxu0 0.0
    %3081 = vmatprep.subr.mxu0 0.0
    %3082 = vmatpush2.msra.mxu0 0.0
    %3083 = vmatprep.subr.mxu0 0.0
    %3084 = vmatpush2.msra.mxu0 0.0
    %3085 = vmatprep.subr.mxu0 0.0
    %3086 = vmatpush2.msra.mxu0 0.0
    %3087 = vmatprep.mubr.f32.mxu0 0.0
    %3088 = vmatmul.mubr.f32.gmra.mxu0 %v2641
    %v3089 = vpop.f32.mrf.mxu0
    %v3090 = vadd.f32 0.0, %v3089
    %v3091 = vpop.f32.mrf.mxu0
    %3092 = vdwg.mxu0
    %v3093 = vadd.f32 %v2949, %v3019
    %v3094 = vadd.f32 %v2950, %v3021
    %v3095 = vadd.f32 %v3093, %v574
    %v3096 = vadd.f32 %v3094, %v578
    %v3097 = vxor.u32 %v3095, 2147483648
    %v3098 = vxor.u32 %v3096, 2147483648
    %v3099 = vmul.f32 %v3097, 1.442695
    %v3100 = vpow.pop %v3099
    %v3101 = vmul.f32 %v3098, 1.442695
    %v3102 = vpow.pop %v3101
    %v3103 = vadd.f32 %v3100, 1.0
    %v3104 = vadd.f32 %v3102, 1.0
    %v3105 = vrcp.pop %v3103
    %v3106 = vmul.f32 1.0, %v3105
    %v3107 = vrcp.pop %v3104
    %v3108 = vmul.f32 1.0, %v3107
    %v3109 = vadd.f32 %v2951, %v599
    %v3110 = vadd.f32 %v3090, %v606
    %v3111 = vmul.f32 %v3106, %v3110
    %v3112 = vadd.f32 %v3109, %v3111
    %v3113 = vtanh.pop %v3112
    %v3114 = vsub.f32 1.0, %v3108
    %v3115 = vmul.f32 %v3114, %v3113
    %v3116 = vmul.f32 %v3108, %v2641
    %v3117 = vadd.f32 %v3115, %v3116
    %3118 = vmatprep.subr.mxu0 %v665
    %3119 = vmatpush1.msra.mxu0 %v664
    %3120 = vmatprep.subr.mxu0 %v662
    %3121 = vmatpush1.msra.mxu0 %v661
    %3122 = vmatprep.subr.mxu0 %v659
    %3123 = vmatpush1.msra.mxu0 %v658
    %3124 = vmatprep.subr.mxu0 %v656
    %3125 = vmatpush1.msra.mxu0 %v655
    %3126 = vmatprep.subr.mxu0 %v653
    %3127 = vmatpush1.msra.mxu0 %v652
    %3128 = vmatprep.subr.mxu0 %v650
    %3129 = vmatpush1.msra.mxu0 %v649
    %3130 = vmatprep.subr.mxu0 %v647
    %3131 = vmatpush1.msra.mxu0 %v646
    %3132 = vmatprep.subr.mxu0 %v644
    %3133 = vmatpush1.msra.mxu0 %v643
    %3134 = vmatprep.subr.mxu0 %v641
    %3135 = vmatpush1.msra.mxu0 %v640
    %3136 = vmatprep.subr.mxu0 %v638
    %3137 = vmatpush1.msra.mxu0 %v637
    %3138 = vmatprep.subr.mxu0 %v635
    %3139 = vmatpush1.msra.mxu0 %v634
    %3140 = vmatprep.subr.mxu0 %v632
    %3141 = vmatpush1.msra.mxu0 %v631
    %3142 = vmatprep.subr.mxu0 %v629
    %3143 = vmatpush1.msra.mxu0 %v628
    %3144 = vmatprep.subr.mxu0 %v626
    %3145 = vmatpush1.msra.mxu0 %v625
    %3146 = vmatprep.subr.mxu0 %v623
    %3147 = vmatpush1.msra.mxu0 %v622
    %3148 = vmatprep.subr.mxu0 %v620
    %3149 = vmatpush1.msra.mxu0 %v619
    %3150 = vmatprep.subr.mxu0 0.0
    %3151 = vmatpush2.msra.mxu0 0.0
    %3152 = vmatprep.subr.mxu0 0.0
    %3153 = vmatpush2.msra.mxu0 0.0
    %3154 = vmatprep.subr.mxu0 0.0
    %3155 = vmatpush2.msra.mxu0 0.0
    %3156 = vmatprep.subr.mxu0 0.0
    %3157 = vmatpush2.msra.mxu0 0.0
    %3158 = vmatprep.subr.mxu0 0.0
    %3159 = vmatpush2.msra.mxu0 0.0
    %3160 = vmatprep.subr.mxu0 0.0
    %3161 = vmatpush2.msra.mxu0 0.0
    %3162 = vmatprep.subr.mxu0 0.0
    %3163 = vmatpush2.msra.mxu0 0.0
    %3164 = vmatprep.subr.mxu0 0.0
    %3165 = vmatpush2.msra.mxu0 0.0
    %3166 = vmatprep.subr.mxu0 0.0
    %3167 = vmatpush2.msra.mxu0 0.0
    %3168 = vmatprep.subr.mxu0 0.0
    %3169 = vmatpush2.msra.mxu0 0.0
    %3170 = vmatprep.subr.mxu0 0.0
    %3171 = vmatpush2.msra.mxu0 0.0
    %3172 = vmatprep.subr.mxu0 0.0
    %3173 = vmatpush2.msra.mxu0 0.0
    %3174 = vmatprep.subr.mxu0 0.0
    %3175 = vmatpush2.msra.mxu0 0.0
    %3176 = vmatprep.subr.mxu0 0.0
    %3177 = vmatpush2.msra.mxu0 0.0
    %3178 = vmatprep.subr.mxu0 0.0
    %3179 = vmatpush2.msra.mxu0 0.0
    %3180 = vmatprep.subr.mxu0 0.0
    %3181 = vmatpush2.msra.mxu0 0.0
    %3182 = vmatprep.mubr.f32.mxu0 0.0
    %3183 = vmatmul.mubr.f32.gmra.mxu0 %v3117
    %v3184 = vpop.f32.mrf.mxu0
    %v3185 = vadd.f32 0.0, %v3184
    %v3186 = vpop.f32.mrf.mxu0
    %v3187 = vadd.f32 0.0, %v3186
    %3188 = vdwg.mxu0
    %3189 = vmatprep.subr.mxu0 0.0
    %3190 = vmatpush1.msra.mxu0 %v666
    %3191 = vmatprep.subr.mxu0 0.0
    %3192 = vmatpush1.msra.mxu0 %v663
    %3193 = vmatprep.subr.mxu0 0.0
    %3194 = vmatpush1.msra.mxu0 %v660
    %3195 = vmatprep.subr.mxu0 0.0
    %3196 = vmatpush1.msra.mxu0 %v657
    %3197 = vmatprep.subr.mxu0 0.0
    %3198 = vmatpush1.msra.mxu0 %v654
    %3199 = vmatprep.subr.mxu0 0.0
    %3200 = vmatpush1.msra.mxu0 %v651
    %3201 = vmatprep.subr.mxu0 0.0
    %3202 = vmatpush1.msra.mxu0 %v648
    %3203 = vmatprep.subr.mxu0 0.0
    %3204 = vmatpush1.msra.mxu0 %v645
    %3205 = vmatprep.subr.mxu0 0.0
    %3206 = vmatpush1.msra.mxu0 %v642
    %3207 = vmatprep.subr.mxu0 0.0
    %3208 = vmatpush1.msra.mxu0 %v639
    %3209 = vmatprep.subr.mxu0 0.0
    %3210 = vmatpush1.msra.mxu0 %v636
    %3211 = vmatprep.subr.mxu0 0.0
    %3212 = vmatpush1.msra.mxu0 %v633
    %3213 = vmatprep.subr.mxu0 0.0
    %3214 = vmatpush1.msra.mxu0 %v630
    %3215 = vmatprep.subr.mxu0 0.0
    %3216 = vmatpush1.msra.mxu0 %v627
    %3217 = vmatprep.subr.mxu0 0.0
    %3218 = vmatpush1.msra.mxu0 %v624
    %3219 = vmatprep.subr.mxu0 0.0
    %3220 = vmatpush1.msra.mxu0 %v621
    %3221 = vmatprep.subr.mxu0 0.0
    %3222 = vmatpush2.msra.mxu0 0.0
    %3223 = vmatprep.subr.mxu0 0.0
    %3224 = vmatpush2.msra.mxu0 0.0
    %3225 = vmatprep.subr.mxu0 0.0
    %3226 = vmatpush2.msra.mxu0 0.0
    %3227 = vmatprep.subr.mxu0 0.0
    %3228 = vmatpush2.msra.mxu0 0.0
    %3229 = vmatprep.subr.mxu0 0.0
    %3230 = vmatpush2.msra.mxu0 0.0
    %3231 = vmatprep.subr.mxu0 0.0
    %3232 = vmatpush2.msra.mxu0 0.0
    %3233 = vmatprep.subr.mxu0 0.0
    %3234 = vmatpush2.msra.mxu0 0.0
    %3235 = vmatprep.subr.mxu0 0.0
    %3236 = vmatpush2.msra.mxu0 0.0
    %3237 = vmatprep.subr.mxu0 0.0
    %3238 = vmatpush2.msra.mxu0 0.0
    %3239 = vmatprep.subr.mxu0 0.0
    %3240 = vmatpush2.msra.mxu0 0.0
    %3241 = vmatprep.subr.mxu0 0.0
    %3242 = vmatpush2.msra.mxu0 0.0
    %3243 = vmatprep.subr.mxu0 0.0
    %3244 = vmatpush2.msra.mxu0 0.0
    %3245 = vmatprep.subr.mxu0 0.0
    %3246 = vmatpush2.msra.mxu0 0.0
    %3247 = vmatprep.subr.mxu0 0.0
    %3248 = vmatpush2.msra.mxu0 0.0
    %3249 = vmatprep.subr.mxu0 0.0
    %3250 = vmatpush2.msra.mxu0 0.0
    %3251 = vmatprep.subr.mxu0 0.0
    %3252 = vmatpush2.msra.mxu0 0.0
    %3253 = vmatprep.mubr.f32.mxu0 0.0
    %3254 = vmatmul.mubr.f32.gmra.mxu0 %v3117
    %v3255 = vpop.f32.mrf.mxu0
    %v3256 = vadd.f32 0.0, %v3255
    %v3257 = vpop.f32.mrf.mxu0
    %3258 = vdwg.mxu0
    %3259 = vmatprep.subr.mxu0 %v854
    %3260 = vmatpush1.msra.mxu0 %v853
    %3261 = vmatprep.subr.mxu0 %v851
    %3262 = vmatpush1.msra.mxu0 %v850
    %3263 = vmatprep.subr.mxu0 %v848
    %3264 = vmatpush1.msra.mxu0 %v847
    %3265 = vmatprep.subr.mxu0 %v845
    %3266 = vmatpush1.msra.mxu0 %v844
    %3267 = vmatprep.subr.mxu0 %v842
    %3268 = vmatpush1.msra.mxu0 %v841
    %3269 = vmatprep.subr.mxu0 %v839
    %3270 = vmatpush1.msra.mxu0 %v838
    %3271 = vmatprep.subr.mxu0 %v836
    %3272 = vmatpush1.msra.mxu0 %v835
    %3273 = vmatprep.subr.mxu0 %v833
    %3274 = vmatpush1.msra.mxu0 %v832
    %3275 = vmatprep.subr.mxu0 %v830
    %3276 = vmatpush1.msra.mxu0 %v829
    %3277 = vmatprep.subr.mxu0 %v827
    %3278 = vmatpush1.msra.mxu0 %v826
    %3279 = vmatprep.subr.mxu0 %v824
    %3280 = vmatpush1.msra.mxu0 %v823
    %3281 = vmatprep.subr.mxu0 %v821
    %3282 = vmatpush1.msra.mxu0 %v820
    %3283 = vmatprep.subr.mxu0 %v818
    %3284 = vmatpush1.msra.mxu0 %v817
    %3285 = vmatprep.subr.mxu0 %v815
    %3286 = vmatpush1.msra.mxu0 %v814
    %3287 = vmatprep.subr.mxu0 %v812
    %3288 = vmatpush1.msra.mxu0 %v811
    %3289 = vmatprep.subr.mxu0 %v809
    %3290 = vmatpush1.msra.mxu0 %v808
    %3291 = vmatprep.subr.mxu0 0.0
    %3292 = vmatpush2.msra.mxu0 0.0
    %3293 = vmatprep.subr.mxu0 0.0
    %3294 = vmatpush2.msra.mxu0 0.0
    %3295 = vmatprep.subr.mxu0 0.0
    %3296 = vmatpush2.msra.mxu0 0.0
    %3297 = vmatprep.subr.mxu0 0.0
    %3298 = vmatpush2.msra.mxu0 0.0
    %3299 = vmatprep.subr.mxu0 0.0
    %3300 = vmatpush2.msra.mxu0 0.0
    %3301 = vmatprep.subr.mxu0 0.0
    %3302 = vmatpush2.msra.mxu0 0.0
    %3303 = vmatprep.subr.mxu0 0.0
    %3304 = vmatpush2.msra.mxu0 0.0
    %3305 = vmatprep.subr.mxu0 0.0
    %3306 = vmatpush2.msra.mxu0 0.0
    %3307 = vmatprep.subr.mxu0 0.0
    %3308 = vmatpush2.msra.mxu0 0.0
    %3309 = vmatprep.subr.mxu0 0.0
    %3310 = vmatpush2.msra.mxu0 0.0
    %3311 = vmatprep.subr.mxu0 0.0
    %3312 = vmatpush2.msra.mxu0 0.0
    %3313 = vmatprep.subr.mxu0 0.0
    %3314 = vmatpush2.msra.mxu0 0.0
    %3315 = vmatprep.subr.mxu0 0.0
    %3316 = vmatpush2.msra.mxu0 0.0
    %3317 = vmatprep.subr.mxu0 0.0
    %3318 = vmatpush2.msra.mxu0 0.0
    %3319 = vmatprep.subr.mxu0 0.0
    %3320 = vmatpush2.msra.mxu0 0.0
    %3321 = vmatprep.subr.mxu0 0.0
    %3322 = vmatpush2.msra.mxu0 0.0
    %3323 = vmatprep.mubr.f32.mxu0 0.0
    %3324 = vmatmul.mubr.f32.gmra.mxu0 %v2948
    %v3325 = vpop.f32.mrf.mxu0
    %v3326 = vadd.f32 0.0, %v3325
    %v3327 = vpop.f32.mrf.mxu0
    %v3328 = vadd.f32 0.0, %v3327
    %3329 = vdwg.mxu0
    %3330 = vmatprep.subr.mxu0 0.0
    %3331 = vmatpush1.msra.mxu0 %v855
    %3332 = vmatprep.subr.mxu0 0.0
    %3333 = vmatpush1.msra.mxu0 %v852
    %3334 = vmatprep.subr.mxu0 0.0
    %3335 = vmatpush1.msra.mxu0 %v849
    %3336 = vmatprep.subr.mxu0 0.0
    %3337 = vmatpush1.msra.mxu0 %v846
    %3338 = vmatprep.subr.mxu0 0.0
    %3339 = vmatpush1.msra.mxu0 %v843
    %3340 = vmatprep.subr.mxu0 0.0
    %3341 = vmatpush1.msra.mxu0 %v840
    %3342 = vmatprep.subr.mxu0 0.0
    %3343 = vmatpush1.msra.mxu0 %v837
    %3344 = vmatprep.subr.mxu0 0.0
    %3345 = vmatpush1.msra.mxu0 %v834
    %3346 = vmatprep.subr.mxu0 0.0
    %3347 = vmatpush1.msra.mxu0 %v831
    %3348 = vmatprep.subr.mxu0 0.0
    %3349 = vmatpush1.msra.mxu0 %v828
    %3350 = vmatprep.subr.mxu0 0.0
    %3351 = vmatpush1.msra.mxu0 %v825
    %3352 = vmatprep.subr.mxu0 0.0
    %3353 = vmatpush1.msra.mxu0 %v822
    %3354 = vmatprep.subr.mxu0 0.0
    %3355 = vmatpush1.msra.mxu0 %v819
    %3356 = vmatprep.subr.mxu0 0.0
    %3357 = vmatpush1.msra.mxu0 %v816
    %3358 = vmatprep.subr.mxu0 0.0
    %3359 = vmatpush1.msra.mxu0 %v813
    %3360 = vmatprep.subr.mxu0 0.0
    %3361 = vmatpush1.msra.mxu0 %v810
    %3362 = vmatprep.subr.mxu0 0.0
    %3363 = vmatpush2.msra.mxu0 0.0
    %3364 = vmatprep.subr.mxu0 0.0
    %3365 = vmatpush2.msra.mxu0 0.0
    %3366 = vmatprep.subr.mxu0 0.0
    %3367 = vmatpush2.msra.mxu0 0.0
    %3368 = vmatprep.subr.mxu0 0.0
    %3369 = vmatpush2.msra.mxu0 0.0
    %3370 = vmatprep.subr.mxu0 0.0
    %3371 = vmatpush2.msra.mxu0 0.0
    %3372 = vmatprep.subr.mxu0 0.0
    %3373 = vmatpush2.msra.mxu0 0.0
    %3374 = vmatprep.subr.mxu0 0.0
    %3375 = vmatpush2.msra.mxu0 0.0
    %3376 = vmatprep.subr.mxu0 0.0
    %3377 = vmatpush2.msra.mxu0 0.0
    %3378 = vmatprep.subr.mxu0 0.0
    %3379 = vmatpush2.msra.mxu0 0.0
    %3380 = vmatprep.subr.mxu0 0.0
    %3381 = vmatpush2.msra.mxu0 0.0
    %3382 = vmatprep.subr.mxu0 0.0
    %3383 = vmatpush2.msra.mxu0 0.0
    %3384 = vmatprep.subr.mxu0 0.0
    %3385 = vmatpush2.msra.mxu0 0.0
    %3386 = vmatprep.subr.mxu0 0.0
    %3387 = vmatpush2.msra.mxu0 0.0
    %3388 = vmatprep.subr.mxu0 0.0
    %3389 = vmatpush2.msra.mxu0 0.0
    %3390 = vmatprep.subr.mxu0 0.0
    %3391 = vmatpush2.msra.mxu0 0.0
    %3392 = vmatprep.subr.mxu0 0.0
    %3393 = vmatpush2.msra.mxu0 0.0
    %3394 = vmatprep.mubr.f32.mxu0 0.0
    %3395 = vmatmul.mubr.f32.gmra.mxu0 %v2948
    %v3396 = vpop.f32.mrf.mxu0
    %v3397 = vadd.f32 0.0, %v3396
    %v3398 = vpop.f32.mrf.mxu0
    %3399 = vdwg.mxu0
    %v3400 = vadd.f32 %v3185, %v3326
    %v3401 = vadd.f32 %v3187, %v3328
    %v3402 = vadd.f32 %v3400, %v1003
    %v3403 = vadd.f32 %v3401, %v1007
    %v3404 = vxor.u32 %v3402, 2147483648
    %v3405 = vxor.u32 %v3403, 2147483648
    %v3406 = vmul.f32 %v3404, 1.442695
    %v3407 = vpow.pop %v3406
    %v3408 = vmul.f32 %v3405, 1.442695
    %v3409 = vpow.pop %v3408
    %v3410 = vadd.f32 %v3407, 1.0
    %v3411 = vadd.f32 %v3409, 1.0
    %v3412 = vrcp.pop %v3410
    %v3413 = vmul.f32 1.0, %v3412
    %v3414 = vrcp.pop %v3411
    %v3415 = vmul.f32 1.0, %v3414
    %v3416 = vadd.f32 %v3256, %v1028
    %v3417 = vadd.f32 %v3397, %v1035
    %v3418 = vmul.f32 %v3413, %v3417
    %v3419 = vadd.f32 %v3416, %v3418
    %v3420 = vtanh.pop %v3419
    %v3421 = vsub.f32 1.0, %v3415
    %v3422 = vmul.f32 %v3421, %v3420
    %v3423 = vmul.f32 %v3415, %v2948
    %v3424 = vadd.f32 %v3422, %v3423
    %v3425 = vld [vmem:[#allocation2 + $0x90] sm:$0xff]
    %v3426 = vld [vmem:[#allocation2 + $0x98] sm:$0xff]
    %v3427 = vld [vmem:[#allocation2 + $0xa0] sm:$0xff]
    %3428 = vmatprep.subr.mxu0 %v425
    %3429 = vmatpush1.msra.mxu0 %v424
    %3430 = vmatprep.subr.mxu0 %v422
    %3431 = vmatpush1.msra.mxu0 %v421
    %3432 = vmatprep.subr.mxu0 %v419
    %3433 = vmatpush1.msra.mxu0 %v418
    %3434 = vmatprep.subr.mxu0 %v416
    %3435 = vmatpush1.msra.mxu0 %v415
    %3436 = vmatprep.subr.mxu0 %v413
    %3437 = vmatpush1.msra.mxu0 %v412
    %3438 = vmatprep.subr.mxu0 %v410
    %3439 = vmatpush1.msra.mxu0 %v409
    %3440 = vmatprep.subr.mxu0 %v407
    %3441 = vmatpush1.msra.mxu0 %v406
    %3442 = vmatprep.subr.mxu0 %v404
    %3443 = vmatpush1.msra.mxu0 %v403
    %3444 = vmatprep.subr.mxu0 %v401
    %3445 = vmatpush1.msra.mxu0 %v400
    %3446 = vmatprep.subr.mxu0 %v398
    %3447 = vmatpush1.msra.mxu0 %v397
    %3448 = vmatprep.subr.mxu0 %v395
    %3449 = vmatpush1.msra.mxu0 %v394
    %3450 = vmatprep.subr.mxu0 %v392
    %3451 = vmatpush1.msra.mxu0 %v391
    %3452 = vmatprep.subr.mxu0 %v389
    %3453 = vmatpush1.msra.mxu0 %v388
    %3454 = vmatprep.subr.mxu0 %v386
    %3455 = vmatpush1.msra.mxu0 %v385
    %3456 = vmatprep.subr.mxu0 %v383
    %3457 = vmatpush1.msra.mxu0 %v382
    %3458 = vmatprep.subr.mxu0 %v380
    %3459 = vmatpush1.msra.mxu0 %v379
    %3460 = vmatprep.subr.mxu0 0.0
    %3461 = vmatpush2.msra.mxu0 0.0
    %3462 = vmatprep.subr.mxu0 0.0
    %3463 = vmatpush2.msra.mxu0 0.0
    %3464 = vmatprep.subr.mxu0 0.0
    %3465 = vmatpush2.msra.mxu0 0.0
    %3466 = vmatprep.subr.mxu0 0.0
    %3467 = vmatpush2.msra.mxu0 0.0
    %3468 = vmatprep.subr.mxu0 0.0
    %3469 = vmatpush2.msra.mxu0 0.0
    %3470 = vmatprep.subr.mxu0 0.0
    %3471 = vmatpush2.msra.mxu0 0.0
    %3472 = vmatprep.subr.mxu0 0.0
    %3473 = vmatpush2.msra.mxu0 0.0
    %3474 = vmatprep.subr.mxu0 0.0
    %3475 = vmatpush2.msra.mxu0 0.0
    %3476 = vmatprep.subr.mxu0 0.0
    %3477 = vmatpush2.msra.mxu0 0.0
    %3478 = vmatprep.subr.mxu0 0.0
    %3479 = vmatpush2.msra.mxu0 0.0
    %3480 = vmatprep.subr.mxu0 0.0
    %3481 = vmatpush2.msra.mxu0 0.0
    %3482 = vmatprep.subr.mxu0 0.0
    %3483 = vmatpush2.msra.mxu0 0.0
    %3484 = vmatprep.subr.mxu0 0.0
    %3485 = vmatpush2.msra.mxu0 0.0
    %3486 = vmatprep.subr.mxu0 0.0
    %3487 = vmatpush2.msra.mxu0 0.0
    %3488 = vmatprep.subr.mxu0 0.0
    %3489 = vmatpush2.msra.mxu0 0.0
    %3490 = vmatprep.subr.mxu0 0.0
    %3491 = vmatpush2.msra.mxu0 0.0
    %3492 = vmatprep.mubr.f32.mxu0 0.0
    %3493 = vmatmul.mubr.f32.gmra.mxu0 %v3117
    %v3494 = vpop.f32.mrf.mxu0
    %v3495 = vadd.f32 0.0, %v3494
    %v3496 = vpop.f32.mrf.mxu0
    %v3497 = vadd.f32 0.0, %v3496
    %3498 = vdwg.mxu0
    %3499 = vmatprep.subr.mxu0 0.0
    %3500 = vmatpush1.msra.mxu0 %v426
    %3501 = vmatprep.subr.mxu0 0.0
    %3502 = vmatpush1.msra.mxu0 %v423
    %3503 = vmatprep.subr.mxu0 0.0
    %3504 = vmatpush1.msra.mxu0 %v420
    %3505 = vmatprep.subr.mxu0 0.0
    %3506 = vmatpush1.msra.mxu0 %v417
    %3507 = vmatprep.subr.mxu0 0.0
    %3508 = vmatpush1.msra.mxu0 %v414
    %3509 = vmatprep.subr.mxu0 0.0
    %3510 = vmatpush1.msra.mxu0 %v411
    %3511 = vmatprep.subr.mxu0 0.0
    %3512 = vmatpush1.msra.mxu0 %v408
    %3513 = vmatprep.subr.mxu0 0.0
    %3514 = vmatpush1.msra.mxu0 %v405
    %3515 = vmatprep.subr.mxu0 0.0
    %3516 = vmatpush1.msra.mxu0 %v402
    %3517 = vmatprep.subr.mxu0 0.0
    %3518 = vmatpush1.msra.mxu0 %v399
    %3519 = vmatprep.subr.mxu0 0.0
    %3520 = vmatpush1.msra.mxu0 %v396
    %3521 = vmatprep.subr.mxu0 0.0
    %3522 = vmatpush1.msra.mxu0 %v393
    %3523 = vmatprep.subr.mxu0 0.0
    %3524 = vmatpush1.msra.mxu0 %v390
    %3525 = vmatprep.subr.mxu0 0.0
    %3526 = vmatpush1.msra.mxu0 %v387
    %3527 = vmatprep.subr.mxu0 0.0
    %3528 = vmatpush1.msra.mxu0 %v384
    %3529 = vmatprep.subr.mxu0 0.0
    %3530 = vmatpush1.msra.mxu0 %v381
    %3531 = vmatprep.subr.mxu0 0.0
    %3532 = vmatpush2.msra.mxu0 0.0
    %3533 = vmatprep.subr.mxu0 0.0
    %3534 = vmatpush2.msra.mxu0 0.0
    %3535 = vmatprep.subr.mxu0 0.0
    %3536 = vmatpush2.msra.mxu0 0.0
    %3537 = vmatprep.subr.mxu0 0.0
    %3538 = vmatpush2.msra.mxu0 0.0
    %3539 = vmatprep.subr.mxu0 0.0
    %3540 = vmatpush2.msra.mxu0 0.0
    %3541 = vmatprep.subr.mxu0 0.0
    %3542 = vmatpush2.msra.mxu0 0.0
    %3543 = vmatprep.subr.mxu0 0.0
    %3544 = vmatpush2.msra.mxu0 0.0
    %3545 = vmatprep.subr.mxu0 0.0
    %3546 = vmatpush2.msra.mxu0 0.0
    %3547 = vmatprep.subr.mxu0 0.0
    %3548 = vmatpush2.msra.mxu0 0.0
    %3549 = vmatprep.subr.mxu0 0.0
    %3550 = vmatpush2.msra.mxu0 0.0
    %3551 = vmatprep.subr.mxu0 0.0
    %3552 = vmatpush2.msra.mxu0 0.0
    %3553 = vmatprep.subr.mxu0 0.0
    %3554 = vmatpush2.msra.mxu0 0.0
    %3555 = vmatprep.subr.mxu0 0.0
    %3556 = vmatpush2.msra.mxu0 0.0
    %3557 = vmatprep.subr.mxu0 0.0
    %3558 = vmatpush2.msra.mxu0 0.0
    %3559 = vmatprep.subr.mxu0 0.0
    %3560 = vmatpush2.msra.mxu0 0.0
    %3561 = vmatprep.subr.mxu0 0.0
    %3562 = vmatpush2.msra.mxu0 0.0
    %3563 = vmatprep.mubr.f32.mxu0 0.0
    %3564 = vmatmul.mubr.f32.gmra.mxu0 %v3117
    %v3565 = vpop.f32.mrf.mxu0
    %v3566 = vadd.f32 0.0, %v3565
    %v3567 = vpop.f32.mrf.mxu0
    %3568 = vdwg.mxu0
    %v3569 = vadd.f32 %v3425, %v3495
    %v3570 = vadd.f32 %v3426, %v3497
    %v3571 = vadd.f32 %v3569, %v574
    %v3572 = vadd.f32 %v3570, %v578
    %v3573 = vxor.u32 %v3571, 2147483648
    %v3574 = vxor.u32 %v3572, 2147483648
    %v3575 = vmul.f32 %v3573, 1.442695
    %v3576 = vpow.pop %v3575
    %v3577 = vmul.f32 %v3574, 1.442695
    %v3578 = vpow.pop %v3577
    %v3579 = vadd.f32 %v3576, 1.0
    %v3580 = vadd.f32 %v3578, 1.0
    %v3581 = vrcp.pop %v3579
    %v3582 = vmul.f32 1.0, %v3581
    %v3583 = vrcp.pop %v3580
    %v3584 = vmul.f32 1.0, %v3583
    %v3585 = vadd.f32 %v3427, %v599
    %v3586 = vadd.f32 %v3566, %v606
    %v3587 = vmul.f32 %v3582, %v3586
    %v3588 = vadd.f32 %v3585, %v3587
    %v3589 = vtanh.pop %v3588
    %v3590 = vsub.f32 1.0, %v3584
    %v3591 = vmul.f32 %v3590, %v3589
    %v3592 = vmul.f32 %v3584, %v3117
    %v3593 = vadd.f32 %v3591, %v3592
    %3594 = vmatprep.subr.mxu0 %v665
    %3595 = vmatpush1.msra.mxu0 %v664
    %3596 = vmatprep.subr.mxu0 %v662
    %3597 = vmatpush1.msra.mxu0 %v661
    %3598 = vmatprep.subr.mxu0 %v659
    %3599 = vmatpush1.msra.mxu0 %v658
    %3600 = vmatprep.subr.mxu0 %v656
    %3601 = vmatpush1.msra.mxu0 %v655
    %3602 = vmatprep.subr.mxu0 %v653
    %3603 = vmatpush1.msra.mxu0 %v652
    %3604 = vmatprep.subr.mxu0 %v650
    %3605 = vmatpush1.msra.mxu0 %v649
    %3606 = vmatprep.subr.mxu0 %v647
    %3607 = vmatpush1.msra.mxu0 %v646
    %3608 = vmatprep.subr.mxu0 %v644
    %3609 = vmatpush1.msra.mxu0 %v643
    %3610 = vmatprep.subr.mxu0 %v641
    %3611 = vmatpush1.msra.mxu0 %v640
    %3612 = vmatprep.subr.mxu0 %v638
    %3613 = vmatpush1.msra.mxu0 %v637
    %3614 = vmatprep.subr.mxu0 %v635
    %3615 = vmatpush1.msra.mxu0 %v634
    %3616 = vmatprep.subr.mxu0 %v632
    %3617 = vmatpush1.msra.mxu0 %v631
    %3618 = vmatprep.subr.mxu0 %v629
    %3619 = vmatpush1.msra.mxu0 %v628
    %3620 = vmatprep.subr.mxu0 %v626
    %3621 = vmatpush1.msra.mxu0 %v625
    %3622 = vmatprep.subr.mxu0 %v623
    %3623 = vmatpush1.msra.mxu0 %v622
    %3624 = vmatprep.subr.mxu0 %v620
    %3625 = vmatpush1.msra.mxu0 %v619
    %3626 = vmatprep.subr.mxu0 0.0
    %3627 = vmatpush2.msra.mxu0 0.0
    %3628 = vmatprep.subr.mxu0 0.0
    %3629 = vmatpush2.msra.mxu0 0.0
    %3630 = vmatprep.subr.mxu0 0.0
    %3631 = vmatpush2.msra.mxu0 0.0
    %3632 = vmatprep.subr.mxu0 0.0
    %3633 = vmatpush2.msra.mxu0 0.0
    %3634 = vmatprep.subr.mxu0 0.0
    %3635 = vmatpush2.msra.mxu0 0.0
    %3636 = vmatprep.subr.mxu0 0.0
    %3637 = vmatpush2.msra.mxu0 0.0
    %3638 = vmatprep.subr.mxu0 0.0
    %3639 = vmatpush2.msra.mxu0 0.0
    %3640 = vmatprep.subr.mxu0 0.0
    %3641 = vmatpush2.msra.mxu0 0.0
    %3642 = vmatprep.subr.mxu0 0.0
    %3643 = vmatpush2.msra.mxu0 0.0
    %3644 = vmatprep.subr.mxu0 0.0
    %3645 = vmatpush2.msra.mxu0 0.0
    %3646 = vmatprep.subr.mxu0 0.0
    %3647 = vmatpush2.msra.mxu0 0.0
    %3648 = vmatprep.subr.mxu0 0.0
    %3649 = vmatpush2.msra.mxu0 0.0
    %3650 = vmatprep.subr.mxu0 0.0
    %3651 = vmatpush2.msra.mxu0 0.0
    %3652 = vmatprep.subr.mxu0 0.0
    %3653 = vmatpush2.msra.mxu0 0.0
    %3654 = vmatprep.subr.mxu0 0.0
    %3655 = vmatpush2.msra.mxu0 0.0
    %3656 = vmatprep.subr.mxu0 0.0
    %3657 = vmatpush2.msra.mxu0 0.0
    %3658 = vmatprep.mubr.f32.mxu0 0.0
    %3659 = vmatmul.mubr.f32.gmra.mxu0 %v3593
    %v3660 = vpop.f32.mrf.mxu0
    %v3661 = vadd.f32 0.0, %v3660
    %v3662 = vpop.f32.mrf.mxu0
    %v3663 = vadd.f32 0.0, %v3662
    %3664 = vdwg.mxu0
    %3665 = vmatprep.subr.mxu0 0.0
    %3666 = vmatpush1.msra.mxu0 %v666
    %3667 = vmatprep.subr.mxu0 0.0
    %3668 = vmatpush1.msra.mxu0 %v663
    %3669 = vmatprep.subr.mxu0 0.0
    %3670 = vmatpush1.msra.mxu0 %v660
    %3671 = vmatprep.subr.mxu0 0.0
    %3672 = vmatpush1.msra.mxu0 %v657
    %3673 = vmatprep.subr.mxu0 0.0
    %3674 = vmatpush1.msra.mxu0 %v654
    %3675 = vmatprep.subr.mxu0 0.0
    %3676 = vmatpush1.msra.mxu0 %v651
    %3677 = vmatprep.subr.mxu0 0.0
    %3678 = vmatpush1.msra.mxu0 %v648
    %3679 = vmatprep.subr.mxu0 0.0
    %3680 = vmatpush1.msra.mxu0 %v645
    %3681 = vmatprep.subr.mxu0 0.0
    %3682 = vmatpush1.msra.mxu0 %v642
    %3683 = vmatprep.subr.mxu0 0.0
    %3684 = vmatpush1.msra.mxu0 %v639
    %3685 = vmatprep.subr.mxu0 0.0
    %3686 = vmatpush1.msra.mxu0 %v636
    %3687 = vmatprep.subr.mxu0 0.0
    %3688 = vmatpush1.msra.mxu0 %v633
    %3689 = vmatprep.subr.mxu0 0.0
    %3690 = vmatpush1.msra.mxu0 %v630
    %3691 = vmatprep.subr.mxu0 0.0
    %3692 = vmatpush1.msra.mxu0 %v627
    %3693 = vmatprep.subr.mxu0 0.0
    %3694 = vmatpush1.msra.mxu0 %v624
    %3695 = vmatprep.subr.mxu0 0.0
    %3696 = vmatpush1.msra.mxu0 %v621
    %3697 = vmatprep.subr.mxu0 0.0
    %3698 = vmatpush2.msra.mxu0 0.0
    %3699 = vmatprep.subr.mxu0 0.0
    %3700 = vmatpush2.msra.mxu0 0.0
    %3701 = vmatprep.subr.mxu0 0.0
    %3702 = vmatpush2.msra.mxu0 0.0
    %3703 = vmatprep.subr.mxu0 0.0
    %3704 = vmatpush2.msra.mxu0 0.0
    %3705 = vmatprep.subr.mxu0 0.0
    %3706 = vmatpush2.msra.mxu0 0.0
    %3707 = vmatprep.subr.mxu0 0.0
    %3708 = vmatpush2.msra.mxu0 0.0
    %3709 = vmatprep.subr.mxu0 0.0
    %3710 = vmatpush2.msra.mxu0 0.0
    %3711 = vmatprep.subr.mxu0 0.0
    %3712 = vmatpush2.msra.mxu0 0.0
    %3713 = vmatprep.subr.mxu0 0.0
    %3714 = vmatpush2.msra.mxu0 0.0
    %3715 = vmatprep.subr.mxu0 0.0
    %3716 = vmatpush2.msra.mxu0 0.0
    %3717 = vmatprep.subr.mxu0 0.0
    %3718 = vmatpush2.msra.mxu0 0.0
    %3719 = vmatprep.subr.mxu0 0.0
    %3720 = vmatpush2.msra.mxu0 0.0
    %3721 = vmatprep.subr.mxu0 0.0
    %3722 = vmatpush2.msra.mxu0 0.0
    %3723 = vmatprep.subr.mxu0 0.0
    %3724 = vmatpush2.msra.mxu0 0.0
    %3725 = vmatprep.subr.mxu0 0.0
    %3726 = vmatpush2.msra.mxu0 0.0
    %3727 = vmatprep.subr.mxu0 0.0
    %3728 = vmatpush2.msra.mxu0 0.0
    %3729 = vmatprep.mubr.f32.mxu0 0.0
    %3730 = vmatmul.mubr.f32.gmra.mxu0 %v3593
    %v3731 = vpop.f32.mrf.mxu0
    %v3732 = vadd.f32 0.0, %v3731
    %v3733 = vpop.f32.mrf.mxu0
    %3734 = vdwg.mxu0
    %3735 = vmatprep.subr.mxu0 %v854
    %3736 = vmatpush1.msra.mxu0 %v853
    %3737 = vmatprep.subr.mxu0 %v851
    %3738 = vmatpush1.msra.mxu0 %v850
    %3739 = vmatprep.subr.mxu0 %v848
    %3740 = vmatpush1.msra.mxu0 %v847
    %3741 = vmatprep.subr.mxu0 %v845
    %3742 = vmatpush1.msra.mxu0 %v844
    %3743 = vmatprep.subr.mxu0 %v842
    %3744 = vmatpush1.msra.mxu0 %v841
    %3745 = vmatprep.subr.mxu0 %v839
    %3746 = vmatpush1.msra.mxu0 %v838
    %3747 = vmatprep.subr.mxu0 %v836
    %3748 = vmatpush1.msra.mxu0 %v835
    %3749 = vmatprep.subr.mxu0 %v833
    %3750 = vmatpush1.msra.mxu0 %v832
    %3751 = vmatprep.subr.mxu0 %v830
    %3752 = vmatpush1.msra.mxu0 %v829
    %3753 = vmatprep.subr.mxu0 %v827
    %3754 = vmatpush1.msra.mxu0 %v826
    %3755 = vmatprep.subr.mxu0 %v824
    %3756 = vmatpush1.msra.mxu0 %v823
    %3757 = vmatprep.subr.mxu0 %v821
    %3758 = vmatpush1.msra.mxu0 %v820
    %3759 = vmatprep.subr.mxu0 %v818
    %3760 = vmatpush1.msra.mxu0 %v817
    %3761 = vmatprep.subr.mxu0 %v815
    %3762 = vmatpush1.msra.mxu0 %v814
    %3763 = vmatprep.subr.mxu0 %v812
    %3764 = vmatpush1.msra.mxu0 %v811
    %3765 = vmatprep.subr.mxu0 %v809
    %3766 = vmatpush1.msra.mxu0 %v808
    %3767 = vmatprep.subr.mxu0 0.0
    %3768 = vmatpush2.msra.mxu0 0.0
    %3769 = vmatprep.subr.mxu0 0.0
    %3770 = vmatpush2.msra.mxu0 0.0
    %3771 = vmatprep.subr.mxu0 0.0
    %3772 = vmatpush2.msra.mxu0 0.0
    %3773 = vmatprep.subr.mxu0 0.0
    %3774 = vmatpush2.msra.mxu0 0.0
    %3775 = vmatprep.subr.mxu0 0.0
    %3776 = vmatpush2.msra.mxu0 0.0
    %3777 = vmatprep.subr.mxu0 0.0
    %3778 = vmatpush2.msra.mxu0 0.0
    %3779 = vmatprep.subr.mxu0 0.0
    %3780 = vmatpush2.msra.mxu0 0.0
    %3781 = vmatprep.subr.mxu0 0.0
    %3782 = vmatpush2.msra.mxu0 0.0
    %3783 = vmatprep.subr.mxu0 0.0
    %3784 = vmatpush2.msra.mxu0 0.0
    %3785 = vmatprep.subr.mxu0 0.0
    %3786 = vmatpush2.msra.mxu0 0.0
    %3787 = vmatprep.subr.mxu0 0.0
    %3788 = vmatpush2.msra.mxu0 0.0
    %3789 = vmatprep.subr.mxu0 0.0
    %3790 = vmatpush2.msra.mxu0 0.0
    %3791 = vmatprep.subr.mxu0 0.0
    %3792 = vmatpush2.msra.mxu0 0.0
    %3793 = vmatprep.subr.mxu0 0.0
    %3794 = vmatpush2.msra.mxu0 0.0
    %3795 = vmatprep.subr.mxu0 0.0
    %3796 = vmatpush2.msra.mxu0 0.0
    %3797 = vmatprep.subr.mxu0 0.0
    %3798 = vmatpush2.msra.mxu0 0.0
    %3799 = vmatprep.mubr.f32.mxu0 0.0
    %3800 = vmatmul.mubr.f32.gmra.mxu0 %v3424
    %v3801 = vpop.f32.mrf.mxu0
    %v3802 = vadd.f32 0.0, %v3801
    %v3803 = vpop.f32.mrf.mxu0
    %v3804 = vadd.f32 0.0, %v3803
    %3805 = vdwg.mxu0
    %3806 = vmatprep.subr.mxu0 0.0
    %3807 = vmatpush1.msra.mxu0 %v855
    %3808 = vmatprep.subr.mxu0 0.0
    %3809 = vmatpush1.msra.mxu0 %v852
    %3810 = vmatprep.subr.mxu0 0.0
    %3811 = vmatpush1.msra.mxu0 %v849
    %3812 = vmatprep.subr.mxu0 0.0
    %3813 = vmatpush1.msra.mxu0 %v846
    %3814 = vmatprep.subr.mxu0 0.0
    %3815 = vmatpush1.msra.mxu0 %v843
    %3816 = vmatprep.subr.mxu0 0.0
    %3817 = vmatpush1.msra.mxu0 %v840
    %3818 = vmatprep.subr.mxu0 0.0
    %3819 = vmatpush1.msra.mxu0 %v837
    %3820 = vmatprep.subr.mxu0 0.0
    %3821 = vmatpush1.msra.mxu0 %v834
    %3822 = vmatprep.subr.mxu0 0.0
    %3823 = vmatpush1.msra.mxu0 %v831
    %3824 = vmatprep.subr.mxu0 0.0
    %3825 = vmatpush1.msra.mxu0 %v828
    %3826 = vmatprep.subr.mxu0 0.0
    %3827 = vmatpush1.msra.mxu0 %v825
    %3828 = vmatprep.subr.mxu0 0.0
    %3829 = vmatpush1.msra.mxu0 %v822
    %3830 = vmatprep.subr.mxu0 0.0
    %3831 = vmatpush1.msra.mxu0 %v819
    %3832 = vmatprep.subr.mxu0 0.0
    %3833 = vmatpush1.msra.mxu0 %v816
    %3834 = vmatprep.subr.mxu0 0.0
    %3835 = vmatpush1.msra.mxu0 %v813
    %3836 = vmatprep.subr.mxu0 0.0
    %3837 = vmatpush1.msra.mxu0 %v810
    %3838 = vmatprep.subr.mxu0 0.0
    %3839 = vmatpush2.msra.mxu0 0.0
    %3840 = vmatprep.subr.mxu0 0.0
    %3841 = vmatpush2.msra.mxu0 0.0
    %3842 = vmatprep.subr.mxu0 0.0
    %3843 = vmatpush2.msra.mxu0 0.0
    %3844 = vmatprep.subr.mxu0 0.0
    %3845 = vmatpush2.msra.mxu0 0.0
    %3846 = vmatprep.subr.mxu0 0.0
    %3847 = vmatpush2.msra.mxu0 0.0
    %3848 = vmatprep.subr.mxu0 0.0
    %3849 = vmatpush2.msra.mxu0 0.0
    %3850 = vmatprep.subr.mxu0 0.0
    %3851 = vmatpush2.msra.mxu0 0.0
    %3852 = vmatprep.subr.mxu0 0.0
    %3853 = vmatpush2.msra.mxu0 0.0
    %3854 = vmatprep.subr.mxu0 0.0
    %3855 = vmatpush2.msra.mxu0 0.0
    %3856 = vmatprep.subr.mxu0 0.0
    %3857 = vmatpush2.msra.mxu0 0.0
    %3858 = vmatprep.subr.mxu0 0.0
    %3859 = vmatpush2.msra.mxu0 0.0
    %3860 = vmatprep.subr.mxu0 0.0
    %3861 = vmatpush2.msra.mxu0 0.0
    %3862 = vmatprep.subr.mxu0 0.0
    %3863 = vmatpush2.msra.mxu0 0.0
    %3864 = vmatprep.subr.mxu0 0.0
    %3865 = vmatpush2.msra.mxu0 0.0
    %3866 = vmatprep.subr.mxu0 0.0
    %3867 = vmatpush2.msra.mxu0 0.0
    %3868 = vmatprep.subr.mxu0 0.0
    %3869 = vmatpush2.msra.mxu0 0.0
    %3870 = vmatprep.mubr.f32.mxu0 0.0
    %3871 = vmatmul.mubr.f32.gmra.mxu0 %v3424
    %v3872 = vpop.f32.mrf.mxu0
    %v3873 = vadd.f32 0.0, %v3872
    %v3874 = vpop.f32.mrf.mxu0
    %3875 = vdwg.mxu0
    %v3876 = vadd.f32 %v3661, %v3802
    %v3877 = vadd.f32 %v3663, %v3804
    %v3878 = vadd.f32 %v3876, %v1003
    %v3879 = vadd.f32 %v3877, %v1007
    %v3880 = vxor.u32 %v3878, 2147483648
    %v3881 = vxor.u32 %v3879, 2147483648
    %v3882 = vmul.f32 %v3880, 1.442695
    %v3883 = vpow.pop %v3882
    %v3884 = vmul.f32 %v3881, 1.442695
    %v3885 = vpow.pop %v3884
    %v3886 = vadd.f32 %v3883, 1.0
    %v3887 = vadd.f32 %v3885, 1.0
    %v3888 = vrcp.pop %v3886
    %v3889 = vmul.f32 1.0, %v3888
    %v3890 = vrcp.pop %v3887
    %v3891 = vmul.f32 1.0, %v3890
    %v3892 = vadd.f32 %v3732, %v1028
    %v3893 = vadd.f32 %v3873, %v1035
    %v3894 = vmul.f32 %v3889, %v3893
    %v3895 = vadd.f32 %v3892, %v3894
    %v3896 = vtanh.pop %v3895
    %v3897 = vsub.f32 1.0, %v3891
    %v3898 = vmul.f32 %v3897, %v3896
    %v3899 = vmul.f32 %v3891, %v3424
    %v3900 = vadd.f32 %v3898, %v3899
    %v3901 = vld [vmem:[#allocation2 + $0xa8] sm:$0xff]
    %v3902 = vld [vmem:[#allocation2 + $0xb0] sm:$0xff]
    %v3903 = vld [vmem:[#allocation2 + $0xb8] sm:$0xff]
    %3904 = vmatprep.subr.mxu0 %v425
    %3905 = vmatpush1.msra.mxu0 %v424
    %3906 = vmatprep.subr.mxu0 %v422
    %3907 = vmatpush1.msra.mxu0 %v421
    %3908 = vmatprep.subr.mxu0 %v419
    %3909 = vmatpush1.msra.mxu0 %v418
    %3910 = vmatprep.subr.mxu0 %v416
    %3911 = vmatpush1.msra.mxu0 %v415
    %3912 = vmatprep.subr.mxu0 %v413
    %3913 = vmatpush1.msra.mxu0 %v412
    %3914 = vmatprep.subr.mxu0 %v410
    %3915 = vmatpush1.msra.mxu0 %v409
    %3916 = vmatprep.subr.mxu0 %v407
    %3917 = vmatpush1.msra.mxu0 %v406
    %3918 = vmatprep.subr.mxu0 %v404
    %3919 = vmatpush1.msra.mxu0 %v403
    %3920 = vmatprep.subr.mxu0 %v401
    %3921 = vmatpush1.msra.mxu0 %v400
    %3922 = vmatprep.subr.mxu0 %v398
    %3923 = vmatpush1.msra.mxu0 %v397
    %3924 = vmatprep.subr.mxu0 %v395
    %3925 = vmatpush1.msra.mxu0 %v394
    %3926 = vmatprep.subr.mxu0 %v392
    %3927 = vmatpush1.msra.mxu0 %v391
    %3928 = vmatprep.subr.mxu0 %v389
    %3929 = vmatpush1.msra.mxu0 %v388
    %3930 = vmatprep.subr.mxu0 %v386
    %3931 = vmatpush1.msra.mxu0 %v385
    %3932 = vmatprep.subr.mxu0 %v383
    %3933 = vmatpush1.msra.mxu0 %v382
    %3934 = vmatprep.subr.mxu0 %v380
    %3935 = vmatpush1.msra.mxu0 %v379
    %3936 = vmatprep.subr.mxu0 0.0
    %3937 = vmatpush2.msra.mxu0 0.0
    %3938 = vmatprep.subr.mxu0 0.0
    %3939 = vmatpush2.msra.mxu0 0.0
    %3940 = vmatprep.subr.mxu0 0.0
    %3941 = vmatpush2.msra.mxu0 0.0
    %3942 = vmatprep.subr.mxu0 0.0
    %3943 = vmatpush2.msra.mxu0 0.0
    %3944 = vmatprep.subr.mxu0 0.0
    %3945 = vmatpush2.msra.mxu0 0.0
    %3946 = vmatprep.subr.mxu0 0.0
    %3947 = vmatpush2.msra.mxu0 0.0
    %3948 = vmatprep.subr.mxu0 0.0
    %3949 = vmatpush2.msra.mxu0 0.0
    %3950 = vmatprep.subr.mxu0 0.0
    %3951 = vmatpush2.msra.mxu0 0.0
    %3952 = vmatprep.subr.mxu0 0.0
    %3953 = vmatpush2.msra.mxu0 0.0
    %3954 = vmatprep.subr.mxu0 0.0
    %3955 = vmatpush2.msra.mxu0 0.0
    %3956 = vmatprep.subr.mxu0 0.0
    %3957 = vmatpush2.msra.mxu0 0.0
    %3958 = vmatprep.subr.mxu0 0.0
    %3959 = vmatpush2.msra.mxu0 0.0
    %3960 = vmatprep.subr.mxu0 0.0
    %3961 = vmatpush2.msra.mxu0 0.0
    %3962 = vmatprep.subr.mxu0 0.0
    %3963 = vmatpush2.msra.mxu0 0.0
    %3964 = vmatprep.subr.mxu0 0.0
    %3965 = vmatpush2.msra.mxu0 0.0
    %3966 = vmatprep.subr.mxu0 0.0
    %3967 = vmatpush2.msra.mxu0 0.0
    %3968 = vmatprep.mubr.f32.mxu0 0.0
    %3969 = vmatmul.mubr.f32.gmra.mxu0 %v3593
    %v3970 = vpop.f32.mrf.mxu0
    %v3971 = vadd.f32 0.0, %v3970
    %v3972 = vpop.f32.mrf.mxu0
    %v3973 = vadd.f32 0.0, %v3972
    %3974 = vdwg.mxu0
    %3975 = vmatprep.subr.mxu0 0.0
    %3976 = vmatpush1.msra.mxu0 %v426
    %3977 = vmatprep.subr.mxu0 0.0
    %3978 = vmatpush1.msra.mxu0 %v423
    %3979 = vmatprep.subr.mxu0 0.0
    %3980 = vmatpush1.msra.mxu0 %v420
    %3981 = vmatprep.subr.mxu0 0.0
    %3982 = vmatpush1.msra.mxu0 %v417
    %3983 = vmatprep.subr.mxu0 0.0
    %3984 = vmatpush1.msra.mxu0 %v414
    %3985 = vmatprep.subr.mxu0 0.0
    %3986 = vmatpush1.msra.mxu0 %v411
    %3987 = vmatprep.subr.mxu0 0.0
    %3988 = vmatpush1.msra.mxu0 %v408
    %3989 = vmatprep.subr.mxu0 0.0
    %3990 = vmatpush1.msra.mxu0 %v405
    %3991 = vmatprep.subr.mxu0 0.0
    %3992 = vmatpush1.msra.mxu0 %v402
    %3993 = vmatprep.subr.mxu0 0.0
    %3994 = vmatpush1.msra.mxu0 %v399
    %3995 = vmatprep.subr.mxu0 0.0
    %3996 = vmatpush1.msra.mxu0 %v396
    %3997 = vmatprep.subr.mxu0 0.0
    %3998 = vmatpush1.msra.mxu0 %v393
    %3999 = vmatprep.subr.mxu0 0.0
    %4000 = vmatpush1.msra.mxu0 %v390
    %4001 = vmatprep.subr.mxu0 0.0
    %4002 = vmatpush1.msra.mxu0 %v387
    %4003 = vmatprep.subr.mxu0 0.0
    %4004 = vmatpush1.msra.mxu0 %v384
    %4005 = vmatprep.subr.mxu0 0.0
    %4006 = vmatpush1.msra.mxu0 %v381
    %4007 = vmatprep.subr.mxu0 0.0
    %4008 = vmatpush2.msra.mxu0 0.0
    %4009 = vmatprep.subr.mxu0 0.0
    %4010 = vmatpush2.msra.mxu0 0.0
    %4011 = vmatprep.subr.mxu0 0.0
    %4012 = vmatpush2.msra.mxu0 0.0
    %4013 = vmatprep.subr.mxu0 0.0
    %4014 = vmatpush2.msra.mxu0 0.0
    %4015 = vmatprep.subr.mxu0 0.0
    %4016 = vmatpush2.msra.mxu0 0.0
    %4017 = vmatprep.subr.mxu0 0.0
    %4018 = vmatpush2.msra.mxu0 0.0
    %4019 = vmatprep.subr.mxu0 0.0
    %4020 = vmatpush2.msra.mxu0 0.0
    %4021 = vmatprep.subr.mxu0 0.0
    %4022 = vmatpush2.msra.mxu0 0.0
    %4023 = vmatprep.subr.mxu0 0.0
    %4024 = vmatpush2.msra.mxu0 0.0
    %4025 = vmatprep.subr.mxu0 0.0
    %4026 = vmatpush2.msra.mxu0 0.0
    %4027 = vmatprep.subr.mxu0 0.0
    %4028 = vmatpush2.msra.mxu0 0.0
    %4029 = vmatprep.subr.mxu0 0.0
    %4030 = vmatpush2.msra.mxu0 0.0
    %4031 = vmatprep.subr.mxu0 0.0
    %4032 = vmatpush2.msra.mxu0 0.0
    %4033 = vmatprep.subr.mxu0 0.0
    %4034 = vmatpush2.msra.mxu0 0.0
    %4035 = vmatprep.subr.mxu0 0.0
    %4036 = vmatpush2.msra.mxu0 0.0
    %4037 = vmatprep.subr.mxu0 0.0
    %4038 = vmatpush2.msra.mxu0 0.0
    %4039 = vmatprep.mubr.f32.mxu0 0.0
    %4040 = vmatmul.mubr.f32.gmra.mxu0 %v3593
    %v4041 = vpop.f32.mrf.mxu0
    %v4042 = vadd.f32 0.0, %v4041
    %v4043 = vpop.f32.mrf.mxu0
    %4044 = vdwg.mxu0
    %v4045 = vadd.f32 %v3901, %v3971
    %v4046 = vadd.f32 %v3902, %v3973
    %v4047 = vadd.f32 %v4045, %v574
    %v4048 = vadd.f32 %v4046, %v578
    %v4049 = vxor.u32 %v4047, 2147483648
    %v4050 = vxor.u32 %v4048, 2147483648
    %v4051 = vmul.f32 %v4049, 1.442695
    %v4052 = vpow.pop %v4051
    %v4053 = vmul.f32 %v4050, 1.442695
    %v4054 = vpow.pop %v4053
    %v4055 = vadd.f32 %v4052, 1.0
    %v4056 = vadd.f32 %v4054, 1.0
    %v4057 = vrcp.pop %v4055
    %v4058 = vmul.f32 1.0, %v4057
    %v4059 = vrcp.pop %v4056
    %v4060 = vmul.f32 1.0, %v4059
    %v4061 = vadd.f32 %v3903, %v599
    %v4062 = vadd.f32 %v4042, %v606
    %v4063 = vmul.f32 %v4058, %v4062
    %v4064 = vadd.f32 %v4061, %v4063
    %v4065 = vtanh.pop %v4064
    %v4066 = vsub.f32 1.0, %v4060
    %v4067 = vmul.f32 %v4066, %v4065
    %v4068 = vmul.f32 %v4060, %v3593
    %v4069 = vadd.f32 %v4067, %v4068
    %4070 = vmatprep.subr.mxu0 %v665
    %4071 = vmatpush1.msra.mxu0 %v664
    %4072 = vmatprep.subr.mxu0 %v662
    %4073 = vmatpush1.msra.mxu0 %v661
    %4074 = vmatprep.subr.mxu0 %v659
    %4075 = vmatpush1.msra.mxu0 %v658
    %4076 = vmatprep.subr.mxu0 %v656
    %4077 = vmatpush1.msra.mxu0 %v655
    %4078 = vmatprep.subr.mxu0 %v653
    %4079 = vmatpush1.msra.mxu0 %v652
    %4080 = vmatprep.subr.mxu0 %v650
    %4081 = vmatpush1.msra.mxu0 %v649
    %4082 = vmatprep.subr.mxu0 %v647
    %4083 = vmatpush1.msra.mxu0 %v646
    %4084 = vmatprep.subr.mxu0 %v644
    %4085 = vmatpush1.msra.mxu0 %v643
    %4086 = vmatprep.subr.mxu0 %v641
    %4087 = vmatpush1.msra.mxu0 %v640
    %4088 = vmatprep.subr.mxu0 %v638
    %4089 = vmatpush1.msra.mxu0 %v637
    %4090 = vmatprep.subr.mxu0 %v635
    %4091 = vmatpush1.msra.mxu0 %v634
    %4092 = vmatprep.subr.mxu0 %v632
    %4093 = vmatpush1.msra.mxu0 %v631
    %4094 = vmatprep.subr.mxu0 %v629
    %4095 = vmatpush1.msra.mxu0 %v628
    %4096 = vmatprep.subr.mxu0 %v626
    %4097 = vmatpush1.msra.mxu0 %v625
    %4098 = vmatprep.subr.mxu0 %v623
    %4099 = vmatpush1.msra.mxu0 %v622
    %4100 = vmatprep.subr.mxu0 %v620
    %4101 = vmatpush1.msra.mxu0 %v619
    %4102 = vmatprep.subr.mxu0 0.0
    %4103 = vmatpush2.msra.mxu0 0.0
    %4104 = vmatprep.subr.mxu0 0.0
    %4105 = vmatpush2.msra.mxu0 0.0
    %4106 = vmatprep.subr.mxu0 0.0
    %4107 = vmatpush2.msra.mxu0 0.0
    %4108 = vmatprep.subr.mxu0 0.0
    %4109 = vmatpush2.msra.mxu0 0.0
    %4110 = vmatprep.subr.mxu0 0.0
    %4111 = vmatpush2.msra.mxu0 0.0
    %4112 = vmatprep.subr.mxu0 0.0
    %4113 = vmatpush2.msra.mxu0 0.0
    %4114 = vmatprep.subr.mxu0 0.0
    %4115 = vmatpush2.msra.mxu0 0.0
    %4116 = vmatprep.subr.mxu0 0.0
    %4117 = vmatpush2.msra.mxu0 0.0
    %4118 = vmatprep.subr.mxu0 0.0
    %4119 = vmatpush2.msra.mxu0 0.0
    %4120 = vmatprep.subr.mxu0 0.0
    %4121 = vmatpush2.msra.mxu0 0.0
    %4122 = vmatprep.subr.mxu0 0.0
    %4123 = vmatpush2.msra.mxu0 0.0
    %4124 = vmatprep.subr.mxu0 0.0
    %4125 = vmatpush2.msra.mxu0 0.0
    %4126 = vmatprep.subr.mxu0 0.0
    %4127 = vmatpush2.msra.mxu0 0.0
    %4128 = vmatprep.subr.mxu0 0.0
    %4129 = vmatpush2.msra.mxu0 0.0
    %4130 = vmatprep.subr.mxu0 0.0
    %4131 = vmatpush2.msra.mxu0 0.0
    %4132 = vmatprep.subr.mxu0 0.0
    %4133 = vmatpush2.msra.mxu0 0.0
    %4134 = vmatprep.mubr.f32.mxu0 0.0
    %4135 = vmatmul.mubr.f32.gmra.mxu0 %v4069
    %v4136 = vpop.f32.mrf.mxu0
    %v4137 = vadd.f32 0.0, %v4136
    %v4138 = vpop.f32.mrf.mxu0
    %v4139 = vadd.f32 0.0, %v4138
    %4140 = vdwg.mxu0
    %4141 = vmatprep.subr.mxu0 0.0
    %4142 = vmatpush1.msra.mxu0 %v666
    %4143 = vmatprep.subr.mxu0 0.0
    %4144 = vmatpush1.msra.mxu0 %v663
    %4145 = vmatprep.subr.mxu0 0.0
    %4146 = vmatpush1.msra.mxu0 %v660
    %4147 = vmatprep.subr.mxu0 0.0
    %4148 = vmatpush1.msra.mxu0 %v657
    %4149 = vmatprep.subr.mxu0 0.0
    %4150 = vmatpush1.msra.mxu0 %v654
    %4151 = vmatprep.subr.mxu0 0.0
    %4152 = vmatpush1.msra.mxu0 %v651
    %4153 = vmatprep.subr.mxu0 0.0
    %4154 = vmatpush1.msra.mxu0 %v648
    %4155 = vmatprep.subr.mxu0 0.0
    %4156 = vmatpush1.msra.mxu0 %v645
    %4157 = vmatprep.subr.mxu0 0.0
    %4158 = vmatpush1.msra.mxu0 %v642
    %4159 = vmatprep.subr.mxu0 0.0
    %4160 = vmatpush1.msra.mxu0 %v639
    %4161 = vmatprep.subr.mxu0 0.0
    %4162 = vmatpush1.msra.mxu0 %v636
    %4163 = vmatprep.subr.mxu0 0.0
    %4164 = vmatpush1.msra.mxu0 %v633
    %4165 = vmatprep.subr.mxu0 0.0
    %4166 = vmatpush1.msra.mxu0 %v630
    %4167 = vmatprep.subr.mxu0 0.0
    %4168 = vmatpush1.msra.mxu0 %v627
    %4169 = vmatprep.subr.mxu0 0.0
    %4170 = vmatpush1.msra.mxu0 %v624
    %4171 = vmatprep.subr.mxu0 0.0
    %4172 = vmatpush1.msra.mxu0 %v621
    %4173 = vmatprep.subr.mxu0 0.0
    %4174 = vmatpush2.msra.mxu0 0.0
    %4175 = vmatprep.subr.mxu0 0.0
    %4176 = vmatpush2.msra.mxu0 0.0
    %4177 = vmatprep.subr.mxu0 0.0
    %4178 = vmatpush2.msra.mxu0 0.0
    %4179 = vmatprep.subr.mxu0 0.0
    %4180 = vmatpush2.msra.mxu0 0.0
    %4181 = vmatprep.subr.mxu0 0.0
    %4182 = vmatpush2.msra.mxu0 0.0
    %4183 = vmatprep.subr.mxu0 0.0
    %4184 = vmatpush2.msra.mxu0 0.0
    %4185 = vmatprep.subr.mxu0 0.0
    %4186 = vmatpush2.msra.mxu0 0.0
    %4187 = vmatprep.subr.mxu0 0.0
    %4188 = vmatpush2.msra.mxu0 0.0
    %4189 = vmatprep.subr.mxu0 0.0
    %4190 = vmatpush2.msra.mxu0 0.0
    %4191 = vmatprep.subr.mxu0 0.0
    %4192 = vmatpush2.msra.mxu0 0.0
    %4193 = vmatprep.subr.mxu0 0.0
    %4194 = vmatpush2.msra.mxu0 0.0
    %4195 = vmatprep.subr.mxu0 0.0
    %4196 = vmatpush2.msra.mxu0 0.0
    %4197 = vmatprep.subr.mxu0 0.0
    %4198 = vmatpush2.msra.mxu0 0.0
    %4199 = vmatprep.subr.mxu0 0.0
    %4200 = vmatpush2.msra.mxu0 0.0
    %4201 = vmatprep.subr.mxu0 0.0
    %4202 = vmatpush2.msra.mxu0 0.0
    %4203 = vmatprep.subr.mxu0 0.0
    %4204 = vmatpush2.msra.mxu0 0.0
    %4205 = vmatprep.mubr.f32.mxu0 0.0
    %4206 = vmatmul.mubr.f32.gmra.mxu0 %v4069
    %v4207 = vpop.f32.mrf.mxu0
    %v4208 = vadd.f32 0.0, %v4207
    %v4209 = vpop.f32.mrf.mxu0
    %4210 = vdwg.mxu0
    %4211 = vmatprep.subr.mxu0 %v854
    %4212 = vmatpush1.msra.mxu0 %v853
    %4213 = vmatprep.subr.mxu0 %v851
    %4214 = vmatpush1.msra.mxu0 %v850
    %4215 = vmatprep.subr.mxu0 %v848
    %4216 = vmatpush1.msra.mxu0 %v847
    %4217 = vmatprep.subr.mxu0 %v845
    %4218 = vmatpush1.msra.mxu0 %v844
    %4219 = vmatprep.subr.mxu0 %v842
    %4220 = vmatpush1.msra.mxu0 %v841
    %4221 = vmatprep.subr.mxu0 %v839
    %4222 = vmatpush1.msra.mxu0 %v838
    %4223 = vmatprep.subr.mxu0 %v836
    %4224 = vmatpush1.msra.mxu0 %v835
    %4225 = vmatprep.subr.mxu0 %v833
    %4226 = vmatpush1.msra.mxu0 %v832
    %4227 = vmatprep.subr.mxu0 %v830
    %4228 = vmatpush1.msra.mxu0 %v829
    %4229 = vmatprep.subr.mxu0 %v827
    %4230 = vmatpush1.msra.mxu0 %v826
    %4231 = vmatprep.subr.mxu0 %v824
    %4232 = vmatpush1.msra.mxu0 %v823
    %4233 = vmatprep.subr.mxu0 %v821
    %4234 = vmatpush1.msra.mxu0 %v820
    %4235 = vmatprep.subr.mxu0 %v818
    %4236 = vmatpush1.msra.mxu0 %v817
    %4237 = vmatprep.subr.mxu0 %v815
    %4238 = vmatpush1.msra.mxu0 %v814
    %4239 = vmatprep.subr.mxu0 %v812
    %4240 = vmatpush1.msra.mxu0 %v811
    %4241 = vmatprep.subr.mxu0 %v809
    %4242 = vmatpush1.msra.mxu0 %v808
    %4243 = vmatprep.subr.mxu0 0.0
    %4244 = vmatpush2.msra.mxu0 0.0
    %4245 = vmatprep.subr.mxu0 0.0
    %4246 = vmatpush2.msra.mxu0 0.0
    %4247 = vmatprep.subr.mxu0 0.0
    %4248 = vmatpush2.msra.mxu0 0.0
    %4249 = vmatprep.subr.mxu0 0.0
    %4250 = vmatpush2.msra.mxu0 0.0
    %4251 = vmatprep.subr.mxu0 0.0
    %4252 = vmatpush2.msra.mxu0 0.0
    %4253 = vmatprep.subr.mxu0 0.0
    %4254 = vmatpush2.msra.mxu0 0.0
    %4255 = vmatprep.subr.mxu0 0.0
    %4256 = vmatpush2.msra.mxu0 0.0
    %4257 = vmatprep.subr.mxu0 0.0
    %4258 = vmatpush2.msra.mxu0 0.0
    %4259 = vmatprep.subr.mxu0 0.0
    %4260 = vmatpush2.msra.mxu0 0.0
    %4261 = vmatprep.subr.mxu0 0.0
    %4262 = vmatpush2.msra.mxu0 0.0
    %4263 = vmatprep.subr.mxu0 0.0
    %4264 = vmatpush2.msra.mxu0 0.0
    %4265 = vmatprep.subr.mxu0 0.0
    %4266 = vmatpush2.msra.mxu0 0.0
    %4267 = vmatprep.subr.mxu0 0.0
    %4268 = vmatpush2.msra.mxu0 0.0
    %4269 = vmatprep.subr.mxu0 0.0
    %4270 = vmatpush2.msra.mxu0 0.0
    %4271 = vmatprep.subr.mxu0 0.0
    %4272 = vmatpush2.msra.mxu0 0.0
    %4273 = vmatprep.subr.mxu0 0.0
    %4274 = vmatpush2.msra.mxu0 0.0
    %4275 = vmatprep.mubr.f32.mxu0 0.0
    %4276 = vmatmul.mubr.f32.gmra.mxu0 %v3900
    %v4277 = vpop.f32.mrf.mxu0
    %v4278 = vadd.f32 0.0, %v4277
    %v4279 = vpop.f32.mrf.mxu0
    %v4280 = vadd.f32 0.0, %v4279
    %4281 = vdwg.mxu0
    %4282 = vmatprep.subr.mxu0 0.0
    %4283 = vmatpush1.msra.mxu0 %v855
    %4284 = vmatprep.subr.mxu0 0.0
    %4285 = vmatpush1.msra.mxu0 %v852
    %4286 = vmatprep.subr.mxu0 0.0
    %4287 = vmatpush1.msra.mxu0 %v849
    %4288 = vmatprep.subr.mxu0 0.0
    %4289 = vmatpush1.msra.mxu0 %v846
    %4290 = vmatprep.subr.mxu0 0.0
    %4291 = vmatpush1.msra.mxu0 %v843
    %4292 = vmatprep.subr.mxu0 0.0
    %4293 = vmatpush1.msra.mxu0 %v840
    %4294 = vmatprep.subr.mxu0 0.0
    %4295 = vmatpush1.msra.mxu0 %v837
    %4296 = vmatprep.subr.mxu0 0.0
    %4297 = vmatpush1.msra.mxu0 %v834
    %4298 = vmatprep.subr.mxu0 0.0
    %4299 = vmatpush1.msra.mxu0 %v831
    %4300 = vmatprep.subr.mxu0 0.0
    %4301 = vmatpush1.msra.mxu0 %v828
    %4302 = vmatprep.subr.mxu0 0.0
    %4303 = vmatpush1.msra.mxu0 %v825
    %4304 = vmatprep.subr.mxu0 0.0
    %4305 = vmatpush1.msra.mxu0 %v822
    %4306 = vmatprep.subr.mxu0 0.0
    %4307 = vmatpush1.msra.mxu0 %v819
    %4308 = vmatprep.subr.mxu0 0.0
    %4309 = vmatpush1.msra.mxu0 %v816
    %4310 = vmatprep.subr.mxu0 0.0
    %4311 = vmatpush1.msra.mxu0 %v813
    %4312 = vmatprep.subr.mxu0 0.0
    %4313 = vmatpush1.msra.mxu0 %v810
    %4314 = vmatprep.subr.mxu0 0.0
    %4315 = vmatpush2.msra.mxu0 0.0
    %4316 = vmatprep.subr.mxu0 0.0
    %4317 = vmatpush2.msra.mxu0 0.0
    %4318 = vmatprep.subr.mxu0 0.0
    %4319 = vmatpush2.msra.mxu0 0.0
    %4320 = vmatprep.subr.mxu0 0.0
    %4321 = vmatpush2.msra.mxu0 0.0
    %4322 = vmatprep.subr.mxu0 0.0
    %4323 = vmatpush2.msra.mxu0 0.0
    %4324 = vmatprep.subr.mxu0 0.0
    %4325 = vmatpush2.msra.mxu0 0.0
    %4326 = vmatprep.subr.mxu0 0.0
    %4327 = vmatpush2.msra.mxu0 0.0
    %4328 = vmatprep.subr.mxu0 0.0
    %4329 = vmatpush2.msra.mxu0 0.0
    %4330 = vmatprep.subr.mxu0 0.0
    %4331 = vmatpush2.msra.mxu0 0.0
    %4332 = vmatprep.subr.mxu0 0.0
    %4333 = vmatpush2.msra.mxu0 0.0
    %4334 = vmatprep.subr.mxu0 0.0
    %4335 = vmatpush2.msra.mxu0 0.0
    %4336 = vmatprep.subr.mxu0 0.0
    %4337 = vmatpush2.msra.mxu0 0.0
    %4338 = vmatprep.subr.mxu0 0.0
    %4339 = vmatpush2.msra.mxu0 0.0
    %4340 = vmatprep.subr.mxu0 0.0
    %4341 = vmatpush2.msra.mxu0 0.0
    %4342 = vmatprep.subr.mxu0 0.0
    %4343 = vmatpush2.msra.mxu0 0.0
    %4344 = vmatprep.subr.mxu0 0.0
    %4345 = vmatpush2.msra.mxu0 0.0
    %4346 = vmatprep.mubr.f32.mxu0 0.0
    %4347 = vmatmul.mubr.f32.gmra.mxu0 %v3900
    %v4348 = vpop.f32.mrf.mxu0
    %v4349 = vadd.f32 0.0, %v4348
    %v4350 = vpop.f32.mrf.mxu0
    %4351 = vdwg.mxu0
    %v4352 = vadd.f32 %v4137, %v4278
    %v4353 = vadd.f32 %v4139, %v4280
    %v4354 = vadd.f32 %v4352, %v1003
    %v4355 = vadd.f32 %v4353, %v1007
    %v4356 = vxor.u32 %v4354, 2147483648
    %v4357 = vxor.u32 %v4355, 2147483648
    %v4358 = vmul.f32 %v4356, 1.442695
    %v4359 = vpow.pop %v4358
    %v4360 = vmul.f32 %v4357, 1.442695
    %v4361 = vpow.pop %v4360
    %v4362 = vadd.f32 %v4359, 1.0
    %v4363 = vadd.f32 %v4361, 1.0
    %v4364 = vrcp.pop %v4362
    %v4365 = vmul.f32 1.0, %v4364
    %v4366 = vrcp.pop %v4363
    %v4367 = vmul.f32 1.0, %v4366
    %v4368 = vadd.f32 %v4208, %v1028
    %v4369 = vadd.f32 %v4349, %v1035
    %v4370 = vmul.f32 %v4365, %v4369
    %v4371 = vadd.f32 %v4368, %v4370
    %v4372 = vtanh.pop %v4371
    %v4373 = vsub.f32 1.0, %v4367
    %v4374 = vmul.f32 %v4373, %v4372
    %v4375 = vmul.f32 %v4367, %v3900
    %v4376 = vadd.f32 %v4374, %v4375
    %v4377 = vld [vmem:[%s11] sm:$0xff]
    %v4378 = vld [vmem:[%s11 + $0x8] sm:$0xff]
    %v4379 = vld [vmem:[%s11 + $0x10] sm:$0xff]
    %v4380 = vld [vmem:[%s11 + $0x18] sm:$0xff]
    %v4381 = vld [vmem:[%s11 + $0x20] sm:$0xff]
    %v4382 = vld [vmem:[%s11 + $0x28] sm:$0xff]
    %v4383 = vld [vmem:[%s11 + $0x30] sm:$0xff]
    %v4384 = vld [vmem:[%s11 + $0x38] sm:$0xff]
    %v4385 = vld [vmem:[%s11 + $0x40] sm:$0xff]
    %v4386 = vld [vmem:[%s11 + $0x48] sm:$0xff]
    %v4387 = vld [vmem:[%s11 + $0x50] sm:$0xff]
    %v4388 = vld [vmem:[%s11 + $0x58] sm:$0xff]
    %v4389 = vld [vmem:[%s11 + $0x60] sm:$0xff]
    %v4390 = vld [vmem:[%s11 + $0x68] sm:$0xff]
    %v4391 = vld [vmem:[%s11 + $0x70] sm:$0xff]
    %v4392 = vld [vmem:[%s11 + $0x78] sm:$0xff]
    %v4393 = vld [vmem:[%s12] sm:$0x1]
    %v4395 = vlaneseq
    %v4396 = vshrl.u32 %v4395, 7
    %v4397 = vsub.s32 0, %v4396
    %v4398 = vrot.slane %v4393, %v4397
    %4400 = vmatprep.subr.mxu0 0.0
    %4401 = vmatpush1.msra.mxu0 %v4392
    %4402 = vmatprep.subr.mxu0 0.0
    %4403 = vmatpush1.msra.mxu0 %v4391
    %4404 = vmatprep.subr.mxu0 0.0
    %4405 = vmatpush1.msra.mxu0 %v4390
    %4406 = vmatprep.subr.mxu0 0.0
    %4407 = vmatpush1.msra.mxu0 %v4389
    %4408 = vmatprep.subr.mxu0 0.0
    %4409 = vmatpush1.msra.mxu0 %v4388
    %4410 = vmatprep.subr.mxu0 0.0
    %4411 = vmatpush1.msra.mxu0 %v4387
    %4412 = vmatprep.subr.mxu0 0.0
    %4413 = vmatpush1.msra.mxu0 %v4386
    %4414 = vmatprep.subr.mxu0 0.0
    %4415 = vmatpush1.msra.mxu0 %v4385
    %4416 = vmatprep.subr.mxu0 0.0
    %4417 = vmatpush1.msra.mxu0 %v4384
    %4418 = vmatprep.subr.mxu0 0.0
    %4419 = vmatpush1.msra.mxu0 %v4383
    %4420 = vmatprep.subr.mxu0 0.0
    %4421 = vmatpush1.msra.mxu0 %v4382
    %4422 = vmatprep.subr.mxu0 0.0
    %4423 = vmatpush1.msra.mxu0 %v4381
    %4424 = vmatprep.subr.mxu0 0.0
    %4425 = vmatpush1.msra.mxu0 %v4380
    %4426 = vmatprep.subr.mxu0 0.0
    %4427 = vmatpush1.msra.mxu0 %v4379
    %4428 = vmatprep.subr.mxu0 0.0
    %4429 = vmatpush1.msra.mxu0 %v4378
    %4430 = vmatprep.subr.mxu0 0.0
    %4431 = vmatpush1.msra.mxu0 %v4377
    %4432 = vmatprep.subr.mxu0 0.0
    %4433 = vmatpush2.msra.mxu0 0.0
    %4434 = vmatprep.subr.mxu0 0.0
    %4435 = vmatpush2.msra.mxu0 0.0
    %4436 = vmatprep.subr.mxu0 0.0
    %4437 = vmatpush2.msra.mxu0 0.0
    %4438 = vmatprep.subr.mxu0 0.0
    %4439 = vmatpush2.msra.mxu0 0.0
    %4440 = vmatprep.subr.mxu0 0.0
    %4441 = vmatpush2.msra.mxu0 0.0
    %4442 = vmatprep.subr.mxu0 0.0
    %4443 = vmatpush2.msra.mxu0 0.0
    %4444 = vmatprep.subr.mxu0 0.0
    %4445 = vmatpush2.msra.mxu0 0.0
    %4446 = vmatprep.subr.mxu0 0.0
    %4447 = vmatpush2.msra.mxu0 0.0
    %4448 = vmatprep.subr.mxu0 0.0
    %4449 = vmatpush2.msra.mxu0 0.0
    %4450 = vmatprep.subr.mxu0 0.0
    %4451 = vmatpush2.msra.mxu0 0.0
    %4452 = vmatprep.subr.mxu0 0.0
    %4453 = vmatpush2.msra.mxu0 0.0
    %4454 = vmatprep.subr.mxu0 0.0
    %4455 = vmatpush2.msra.mxu0 0.0
    %4456 = vmatprep.subr.mxu0 0.0
    %4457 = vmatpush2.msra.mxu0 0.0
    %4458 = vmatprep.subr.mxu0 0.0
    %4459 = vmatpush2.msra.mxu0 0.0
    %4460 = vmatprep.subr.mxu0 0.0
    %4461 = vmatpush2.msra.mxu0 0.0
    %4462 = vmatprep.subr.mxu0 0.0
    %4463 = vmatpush2.msra.mxu0 0.0
    %4464 = vmatprep.mubr.f32.mxu0 0.0
    %4465 = vmatmul.mubr.f32.gmra.mxu0 %v4376
    %v4466 = vpop.f32.mrf.mxu0
    %v4467 = vadd.f32 %v4398, %v4466
    %v4468 = vpop.f32.mrf.mxu0
    %4469 = vdwg.mxu0
    %vm4470 = vcmask 130048
    %4471 = vst.msk [vmem:[#allocation9] sm:$0xff] %vm4470, %v4467
    // Predicated region
    $region66: #{tpu_custom_call.1} parent=1 // pred_check
      _
    $region67: #{tpu_custom_call.1} parent=1 // pred_check_branch
      %4473 = sbr.rel (0) target = $region69
    $region68: #{tpu_custom_call.1} parent=1 // pred_region
      %s4475 = ssub.s32 128, 128
      %4476 = vsyncadd [#allocation5], %s4475
      %s4478 = sshll.u32 [#allocation9], 4
      %s4479 = int_to_ptr.vmem [resolvable:$true] %s4478
      %4481 = dma.vmem_to_hbm [thread:$0]  %s4479, 128, %s13, [#allocation5]
    $region69: #{tpu_custom_call.1} parent=1 // pred_fallthru
      _
    // Predicated region
    $region70: #{tpu_custom_call.1} parent=1 // pred_check
      _
    $region71: #{tpu_custom_call.1} parent=1 // pred_check_branch
      %4483 = sbr.rel (0) target = $region73
    $region72: #{tpu_custom_call.1} parent=1 // pred_region
      %4484 = dma.done [#allocation5], 128
    $region73: #{tpu_custom_call.1} parent=1 // pred_fallthru
      _
    %4485 = vsyncpa [#allocation4], 1
    %4486 = vsyncpa [#allocation7], 1
    %4487 = vsyncpa [#allocation5], 1

</llo_original>
